<compile_context>
chip_gen: v7x
topology: tpu7x:2x2x1
jax: 0.10.0
libtpu: 0.0.40
codegen_flags: <defaults>
</compile_context>

<pallas_src>
import functools
import math

import jax
import jax.numpy as jnp
from jax.experimental import pallas as pl
from jax.experimental.pallas import tpu as pltpu


def _mha_kernel(vl_ref, q_ref, k_ref, v_ref, wq_ref, wk_ref, wv_ref, wo_ref,
                o_ref, *, num_heads):
    H = num_heads
    B, Tq, Dq = q_ref.shape
    _, Tk, Dk = k_ref.shape
    Dv = v_ref.shape[-1]
    dh = wq_ref.shape[-1]
    NH = wo_ref.shape[-1]
    BH = B * H

    q = q_ref[...]                                   # (B, Tq, Dq)
    k = k_ref[...]                                   # (B, Tk, Dk)
    v = v_ref[...]                                   # (B, Tk, Dv)

    # ---- replicate activations over heads / weights over batch -------------
    # Only leading-dim broadcasts + leading-dim merges: no lane/sublane
    # relayout, no transposes.
    qb = jnp.broadcast_to(q[:, None], (B, H, Tq, Dq)).reshape(BH, Tq, Dq)
    kb = jnp.broadcast_to(k[:, None], (B, H, Tk, Dk)).reshape(BH, Tk, Dk)
    vb = jnp.broadcast_to(v[:, None], (B, H, Tk, Dv)).reshape(BH, Tk, Dv)

    wq = jnp.broadcast_to(wq_ref[...][None], (B, H, Dq, dh)).reshape(BH, Dq, dh)
    wk = jnp.broadcast_to(wk_ref[...][None], (B, H, Dk, dh)).reshape(BH, Dk, dh)
    wv = jnp.broadcast_to(wv_ref[...][None], (B, H, Dv, dh)).reshape(BH, Dv, dh)
    wo = jnp.broadcast_to(wo_ref[...][None], (B, H, dh, NH)).reshape(BH, dh, NH)

    # ---- head-batched projections (one batched MXU contraction each) -------
    # 1/sqrt(dh) is already folded into wq by the wrapper.
    qh = jax.lax.dot_general(qb, wq, (((2,), (1,)), ((0,), (0,))),
                             preferred_element_type=jnp.float32)   # (BH, Tq, dh)
    kh = jax.lax.dot_general(kb, wk, (((2,), (1,)), ((0,), (0,))),
                             preferred_element_type=jnp.float32)   # (BH, Tk, dh)
    vh = jax.lax.dot_general(vb, wv, (((2,), (1,)), ((0,), (0,))),
                             preferred_element_type=jnp.float32)   # (BH, Tk, dh)

    # ---- scores + masked softmax, merged over all B*H rows -----------------
    s = jax.lax.dot_general(qh, kh, (((2,), (2,)), ((0,), (0,))),
                            preferred_element_type=jnp.float32)    # (BH, Tq, Tk)

    # masked_softmax: key positions >= valid_lens[b] get -1e6 (d2l value).
    # All H heads of batch b share valid_lens[b]
    # (== torch.repeat_interleave(valid_lens, H, 0)).
    col = jax.lax.broadcasted_iota(jnp.int32, (BH, Tq, Tk), 2)
    limit = jnp.concatenate(
        [jnp.full((H, Tq, Tk), vl_ref[b], dtype=jnp.int32) for b in range(B)],
        axis=0)                                                    # (BH, Tq, Tk)
    s = jnp.where(col < limit, s, jnp.float32(-1e6))

    m = jnp.max(s, axis=-1, keepdims=True)
    p = jnp.exp(s - m)
    attn = p * pl.reciprocal(jnp.sum(p, axis=-1, keepdims=True), approx=True)
    # TODO(synk): dropout omitted (eval/inference semantics; dropout is a no-op).

    # ---- PV and output projection (no lane concat) --------------------------
    ctx = jax.lax.dot_general(attn, vh, (((2,), (1,)), ((0,), (0,))),
                              preferred_element_type=jnp.float32)  # (BH, Tq, dh)
    part = jax.lax.dot_general(ctx, wo, (((2,), (1,)), ((0,), (0,))),
                               preferred_element_type=jnp.float32) # (BH, Tq, NH)
    # Sum the per-head partial outputs over the (major) head axis == concat@W_o.T.
    o_ref[...] = part.reshape(B, H, Tq, NH).sum(axis=1)            # (B, Tq, NH)


def multi_head_attention(queries, keys, values, valid_lens,
                         w_q, w_k, w_v, w_o, num_heads):
    """Pallas forward of MultiHeadAttention. Weights are PyTorch-layout (out, in)."""
    B, Tq, Dq = queries.shape
    _, Tk, Dk = keys.shape
    _, _, Dv = values.shape
    H = num_heads
    NH = w_q.shape[0]              # num_hiddens
    assert NH % H == 0
    dh = NH // H
    # TODO(synk): only 1-D (per-batch) valid_lens supported; d2l also allows
    # 2-D per-query valid_lens.
    assert valid_lens.ndim == 1 and valid_lens.shape[0] == B

    scale = jnp.float32(1.0 / math.sqrt(dh))

    # Per-head weight stacks (done once on constants in the wrapper, so the
    # kernel never splits the lane dimension):
    #   x @ W.T, W: (NH, D)  ->  per-head weight h is W.T[:, h*dh:(h+1)*dh].
    def per_head_in(w):                                   # (NH, D) -> (H, D, dh)
        d_in = w.shape[1]
        return jnp.transpose(w.T.reshape(d_in, H, dh), (1, 0, 2)).astype(jnp.float32)

    wq_h = per_head_in(w_q) * scale        # fold 1/sqrt(dh) into W_q
    wk_h = per_head_in(w_k)
    wv_h = per_head_in(w_v)
    wo_h = w_o.T.reshape(H, dh, NH).astype(jnp.float32)   # rows h*dh:(h+1)*dh of W_o.T

    kernel = functools.partial(_mha_kernel, num_heads=H)

    out = pl.pallas_call(
        kernel,
        out_shape=jax.ShapeDtypeStruct((B, Tq, NH), jnp.float32),
        grid_spec=pltpu.PrefetchScalarGridSpec(
            num_scalar_prefetch=1,          # valid_lens -> SMEM
            grid=(1,),                      # whole problem in ONE grid step
            in_specs=[
                pl.BlockSpec((B, Tq, Dq), lambda i, vl: (0, 0, 0)),
                pl.BlockSpec((B, Tk, Dk), lambda i, vl: (0, 0, 0)),
                pl.BlockSpec((B, Tk, Dv), lambda i, vl: (0, 0, 0)),
                pl.BlockSpec((H, Dq, dh), lambda i, vl: (0, 0, 0)),
                pl.BlockSpec((H, Dk, dh), lambda i, vl: (0, 0, 0)),
                pl.BlockSpec((H, Dv, dh), lambda i, vl: (0, 0, 0)),
                pl.BlockSpec((H, dh, NH), lambda i, vl: (0, 0, 0)),
            ],
            out_specs=pl.BlockSpec((B, Tq, NH), lambda i, vl: (0, 0, 0)),
        ),
        compiler_params=pltpu.CompilerParams(
            dimension_semantics=("arbitrary",)),
    )(valid_lens.astype(jnp.int32),
      queries.astype(jnp.float32), keys.astype(jnp.float32),
      values.astype(jnp.float32),
      wq_h, wk_h, wv_h, wo_h)
    return out


def _reference(queries, keys, values, valid_lens, w_q, w_k, w_v, w_o, num_heads):
    """Pure-JAX replica of the PyTorch forward for verification."""
    def transpose_qkv(X, H):
        B, T, NH = X.shape
        X = X.reshape(B, T, H, NH // H).transpose(0, 2, 1, 3)
        return X.reshape(B * H, T, NH // H)

    def transpose_output(X, H):
        BH, T, dh = X.shape
        X = X.reshape(-1, H, T, dh).transpose(0, 2, 1, 3)
        return X.reshape(X.shape[0], T, -1)

    q = transpose_qkv(queries @ w_q.T, num_heads)
    k = transpose_qkv(keys @ w_k.T, num_heads)
    v = transpose_qkv(values @ w_v.T, num_heads)
    vl = jnp.repeat(valid_lens, num_heads, axis=0)

    d = q.shape[-1]
    scores = jnp.einsum('bqd,bkd->bqk', q, k) / math.sqrt(d)
    mask = jnp.arange(k.shape[1])[None, None, :] < vl[:, None, None]
    scores = jnp.where(mask, scores, -1e6)
    attn = jax.nn.softmax(scores, axis=-1)
    out = jnp.einsum('bqk,bkd->bqd', attn, v)
    return transpose_output(out, num_heads) @ w_o.T


if __name__ == "__main__":
    # Small shapes consistent with the module:
    # key_size = query_size = value_size = num_hiddens = 32, num_heads = 4
    B, Tq, Tk = 2, 4, 6
    num_hiddens, num_heads = 32, 4
    key_size = query_size = value_size = num_hiddens

    root = jax.random.PRNGKey(0)
    kq, kk, kv, kwq, kwk, kwv, kwo = jax.random.split(root, 7)

    queries = jax.random.normal(kq, (B, Tq, query_size), dtype=jnp.float32)
    keys = jax.random.normal(kk, (B, Tk, key_size), dtype=jnp.float32)
    values = jax.random.normal(kv, (B, Tk, value_size), dtype=jnp.float32)
    valid_lens = jnp.array([3, 6], dtype=jnp.int32)

    def init_linear(key, out_f, in_f):
        # deterministic, PyTorch-like uniform(-1/sqrt(in), 1/sqrt(in))
        bound = 1.0 / math.sqrt(in_f)
        return jax.random.uniform(key, (out_f, in_f), jnp.float32, -bound, bound)

    w_q = init_linear(kwq, num_hiddens, query_size)
    w_k = init_linear(kwk, num_hiddens, key_size)
    w_v = init_linear(kwv, num_hiddens, value_size)
    w_o = init_linear(kwo, num_hiddens, num_hiddens)

    out = multi_head_attention(queries, keys, values, valid_lens,
                               w_q, w_k, w_v, w_o, num_heads)
    out = jax.block_until_ready(out)

    ref = _reference(queries, keys, values, valid_lens,
                     w_q, w_k, w_v, w_o, num_heads)
    assert out.shape == (B, Tq, num_hiddens)
    # slightly loosened tolerance: softmax denominator uses the EUP approx
    # reciprocal (pl.reciprocal(..., approx=True))
    assert jnp.allclose(out, ref, atol=2e-3, rtol=2e-3), "mismatch vs pure-JAX reference"

    print("KERNEL_OK")
</pallas_src>

<mosaic_0001>
module attributes {stable_mosaic.version = 11 : i64} {
  func.func @_mha_kernel(%arg0: i32, %arg1: memref<2xi32, #tpu.memory_space<smem>>, %arg2: memref<2x4x32xf32, #tpu.memory_space<vmem>>, %arg3: memref<2x6x32xf32, #tpu.memory_space<vmem>>, %arg4: memref<2x6x32xf32, #tpu.memory_space<vmem>>, %arg5: memref<4x32x8xf32, #tpu.memory_space<vmem>>, %arg6: memref<4x32x8xf32, #tpu.memory_space<vmem>>, %arg7: memref<4x32x8xf32, #tpu.memory_space<vmem>>, %arg8: memref<4x8x32xf32, #tpu.memory_space<vmem>>, %arg9: memref<2x4x32xf32, #tpu.memory_space<vmem>>) attributes {dimension_semantics = [#tpu.dimension_semantics<arbitrary>], iteration_bounds = array<i64: 1>, scalar_prefetch = 1 : i64, scratch_operands = 0 : i64, tpu.core_type = #tpu.core_type<tc>, window_params = [{pipeline_mode = #tpu.pipeline_mode<synchronous>, transform_indices = @transform_0, window_bounds = array<i64: 2, 4, 32>}, {pipeline_mode = #tpu.pipeline_mode<synchronous>, transform_indices = @transform_1, window_bounds = array<i64: 2, 6, 32>}, {pipeline_mode = #tpu.pipeline_mode<synchronous>, transform_indices = @transform_2, window_bounds = array<i64: 2, 6, 32>}, {pipeline_mode = #tpu.pipeline_mode<synchronous>, transform_indices = @transform_3, window_bounds = array<i64: 4, 32, 8>}, {pipeline_mode = #tpu.pipeline_mode<synchronous>, transform_indices = @transform_4, window_bounds = array<i64: 4, 32, 8>}, {pipeline_mode = #tpu.pipeline_mode<synchronous>, transform_indices = @transform_5, window_bounds = array<i64: 4, 32, 8>}, {pipeline_mode = #tpu.pipeline_mode<synchronous>, transform_indices = @transform_6, window_bounds = array<i64: 4, 8, 32>}, {pipeline_mode = #tpu.pipeline_mode<synchronous>, transform_indices = @transform_7, window_bounds = array<i64: 2, 4, 32>}]} {
    %c0 = arith.constant 0 : index
    %c0_0 = arith.constant 0 : index
    %c0_1 = arith.constant 0 : index
    %0 = vector.load %arg2[%c0, %c0_0, %c0_1] : memref<2x4x32xf32, #tpu.memory_space<vmem>>, vector<2x4x32xf32>
    %c0_2 = arith.constant 0 : index
    %c0_3 = arith.constant 0 : index
    %c0_4 = arith.constant 0 : index
    %1 = vector.load %arg3[%c0_2, %c0_3, %c0_4] : memref<2x6x32xf32, #tpu.memory_space<vmem>>, vector<2x6x32xf32>
    %c0_5 = arith.constant 0 : index
    %c0_6 = arith.constant 0 : index
    %c0_7 = arith.constant 0 : index
    %2 = vector.load %arg4[%c0_5, %c0_6, %c0_7] : memref<2x6x32xf32, #tpu.memory_space<vmem>>, vector<2x6x32xf32>
    %3 = vector.shape_cast %0 : vector<2x4x32xf32> to vector<2x1x4x32xf32>
    %4 = vector.shape_cast %3 : vector<2x1x4x32xf32> to vector<2x1x4x32xf32>
    %5 = vector.broadcast %4 : vector<2x1x4x32xf32> to vector<2x4x4x32xf32>
    %6 = vector.shape_cast %5 : vector<2x4x4x32xf32> to vector<8x4x32xf32>
    %7 = vector.shape_cast %1 : vector<2x6x32xf32> to vector<2x1x6x32xf32>
    %8 = vector.shape_cast %7 : vector<2x1x6x32xf32> to vector<2x1x6x32xf32>
    %9 = vector.broadcast %8 : vector<2x1x6x32xf32> to vector<2x4x6x32xf32>
    %10 = vector.shape_cast %9 : vector<2x4x6x32xf32> to vector<8x6x32xf32>
    %11 = vector.shape_cast %2 : vector<2x6x32xf32> to vector<2x1x6x32xf32>
    %12 = vector.shape_cast %11 : vector<2x1x6x32xf32> to vector<2x1x6x32xf32>
    %13 = vector.broadcast %12 : vector<2x1x6x32xf32> to vector<2x4x6x32xf32>
    %14 = vector.shape_cast %13 : vector<2x4x6x32xf32> to vector<8x6x32xf32>
    %c0_8 = arith.constant 0 : index
    %c0_9 = arith.constant 0 : index
    %c0_10 = arith.constant 0 : index
    %15 = vector.load %arg5[%c0_8, %c0_9, %c0_10] : memref<4x32x8xf32, #tpu.memory_space<vmem>>, vector<4x32x8xf32>
    %16 = vector.shape_cast %15 : vector<4x32x8xf32> to vector<1x4x32x8xf32>
    %17 = vector.shape_cast %16 : vector<1x4x32x8xf32> to vector<1x4x32x8xf32>
    %18 = vector.broadcast %17 : vector<1x4x32x8xf32> to vector<2x4x32x8xf32>
    %19 = vector.shape_cast %18 : vector<2x4x32x8xf32> to vector<8x32x8xf32>
    %c0_11 = arith.constant 0 : index
    %c0_12 = arith.constant 0 : index
    %c0_13 = arith.constant 0 : index
    %20 = vector.load %arg6[%c0_11, %c0_12, %c0_13] : memref<4x32x8xf32, #tpu.memory_space<vmem>>, vector<4x32x8xf32>
    %21 = vector.shape_cast %20 : vector<4x32x8xf32> to vector<1x4x32x8xf32>
    %22 = vector.shape_cast %21 : vector<1x4x32x8xf32> to vector<1x4x32x8xf32>
    %23 = vector.broadcast %22 : vector<1x4x32x8xf32> to vector<2x4x32x8xf32>
    %24 = vector.shape_cast %23 : vector<2x4x32x8xf32> to vector<8x32x8xf32>
    %c0_14 = arith.constant 0 : index
    %c0_15 = arith.constant 0 : index
    %c0_16 = arith.constant 0 : index
    %25 = vector.load %arg7[%c0_14, %c0_15, %c0_16] : memref<4x32x8xf32, #tpu.memory_space<vmem>>, vector<4x32x8xf32>
    %26 = vector.shape_cast %25 : vector<4x32x8xf32> to vector<1x4x32x8xf32>
    %27 = vector.shape_cast %26 : vector<1x4x32x8xf32> to vector<1x4x32x8xf32>
    %28 = vector.broadcast %27 : vector<1x4x32x8xf32> to vector<2x4x32x8xf32>
    %29 = vector.shape_cast %28 : vector<2x4x32x8xf32> to vector<8x32x8xf32>
    %c0_17 = arith.constant 0 : index
    %c0_18 = arith.constant 0 : index
    %c0_19 = arith.constant 0 : index
    %30 = vector.load %arg8[%c0_17, %c0_18, %c0_19] : memref<4x8x32xf32, #tpu.memory_space<vmem>>, vector<4x8x32xf32>
    %31 = vector.shape_cast %30 : vector<4x8x32xf32> to vector<1x4x8x32xf32>
    %32 = vector.shape_cast %31 : vector<1x4x8x32xf32> to vector<1x4x8x32xf32>
    %33 = vector.broadcast %32 : vector<1x4x8x32xf32> to vector<2x4x8x32xf32>
    %34 = vector.shape_cast %33 : vector<2x4x8x32xf32> to vector<8x8x32xf32>
    %cst = arith.constant dense<0.000000e+00> : vector<8x4x8xf32>
    %35 = tpu.matmul %6, %19, %cst {dimension_numbers = #tpu.dot_dimension_numbers<[2], [1], [1], [2], [0, 0, 0, 1, 1, 2], [0], [0]>} : vector<8x4x32xf32>, vector<8x32x8xf32>, vector<8x4x8xf32> -> vector<8x4x8xf32>
    %cst_20 = arith.constant dense<0.000000e+00> : vector<8x6x8xf32>
    %36 = tpu.matmul %10, %24, %cst_20 {dimension_numbers = #tpu.dot_dimension_numbers<[2], [1], [1], [2], [0, 0, 0, 1, 1, 2], [0], [0]>} : vector<8x6x32xf32>, vector<8x32x8xf32>, vector<8x6x8xf32> -> vector<8x6x8xf32>
    %cst_21 = arith.constant dense<0.000000e+00> : vector<8x6x8xf32>
    %37 = tpu.matmul %14, %29, %cst_21 {dimension_numbers = #tpu.dot_dimension_numbers<[2], [1], [1], [2], [0, 0, 0, 1, 1, 2], [0], [0]>} : vector<8x6x32xf32>, vector<8x32x8xf32>, vector<8x6x8xf32> -> vector<8x6x8xf32>
    %cst_22 = arith.constant dense<0.000000e+00> : vector<8x4x6xf32>
    %38 = tpu.matmul %35, %36, %cst_22 {dimension_numbers = #tpu.dot_dimension_numbers<[2], [2], [1], [1], [0, 0, 0, 1, 1, 1], [0], [0]>} : vector<8x4x8xf32>, vector<8x6x8xf32>, vector<8x4x6xf32> -> vector<8x4x6xf32>
    %39 = tpu.iota {dimensions = array<i32: 2>} : vector<8x4x6xi32>
    %c0_23 = arith.constant 0 : index
    %40 = memref.load %arg1[%c0_23] : memref<2xi32, #tpu.memory_space<smem>>
    %41 = vector.broadcast %40 : i32 to vector<4x4x6xi32>
    %c1 = arith.constant 1 : index
    %42 = memref.load %arg1[%c1] : memref<2xi32, #tpu.memory_space<smem>>
    %43 = vector.broadcast %42 : i32 to vector<4x4x6xi32>
    %44 = tpu.concatenate %41, %43 in 0 : vector<4x4x6xi32>, vector<4x4x6xi32> -> vector<8x4x6xi32>
    %45 = arith.cmpi slt, %39, %44 : vector<8x4x6xi32>
    %cst_24 = arith.constant -1.000000e+06 : f32
    %46 = vector.broadcast %cst_24 : f32 to vector<8x4x6xf32>
    %47 = arith.select %45, %38, %46 : vector<8x4x6xi1>, vector<8x4x6xf32>
    %cst_25 = arith.constant dense<0xFF800000> : vector<8x4xf32>
    %48 = vector.multi_reduction <maximumf>, %47, %cst_25 [2] : vector<8x4x6xf32> to vector<8x4xf32>
    %49 = vector.shape_cast %48 : vector<8x4xf32> to vector<8x4x1xf32>
    %50 = vector.broadcast %49 : vector<8x4x1xf32> to vector<8x4x6xf32>
    %51 = arith.subf %47, %50 : vector<8x4x6xf32>
    %52 = math.exp %51 : vector<8x4x6xf32>
    %cst_26 = arith.constant dense<0.000000e+00> : vector<8x4xf32>
    %53 = vector.multi_reduction <add>, %52, %cst_26 [2] : vector<8x4x6xf32> to vector<8x4xf32>
    %54 = vector.shape_cast %53 : vector<8x4xf32> to vector<8x4x1xf32>
    %55 = tpu.reciprocal %54 {approx = true} : vector<8x4x1xf32> -> vector<8x4x1xf32>
    %56 = vector.broadcast %55 : vector<8x4x1xf32> to vector<8x4x6xf32>
    %57 = arith.mulf %52, %56 : vector<8x4x6xf32>
    %cst_27 = arith.constant dense<0.000000e+00> : vector<8x4x8xf32>
    %58 = tpu.matmul %57, %37, %cst_27 {dimension_numbers = #tpu.dot_dimension_numbers<[2], [1], [1], [2], [0, 0, 0, 1, 1, 2], [0], [0]>} : vector<8x4x6xf32>, vector<8x6x8xf32>, vector<8x4x8xf32> -> vector<8x4x8xf32>
    %cst_28 = arith.constant dense<0.000000e+00> : vector<8x4x32xf32>
    %59 = tpu.matmul %58, %34, %cst_28 {dimension_numbers = #tpu.dot_dimension_numbers<[2], [1], [1], [2], [0, 0, 0, 1, 1, 2], [0], [0]>} : vector<8x4x8xf32>, vector<8x8x32xf32>, vector<8x4x32xf32> -> vector<8x4x32xf32>
    %60 = vector.shape_cast %59 : vector<8x4x32xf32> to vector<2x4x4x32xf32>
    %cst_29 = arith.constant dense<0.000000e+00> : vector<2x4x32xf32>
    %61 = vector.multi_reduction <add>, %60, %cst_29 [1] : vector<2x4x4x32xf32> to vector<2x4x32xf32>
    %c0_30 = arith.constant 0 : index
    %c0_31 = arith.constant 0 : index
    %c0_32 = arith.constant 0 : index
    %62 = vector.load %arg9[%c0_30, %c0_31, %c0_32] : memref<2x4x32xf32, #tpu.memory_space<vmem>>, vector<2x4x32xf32>
    tpu.vector_store %arg9[%c0_30, %c0_31, %c0_32], %61 {strides = array<i32>} : memref<2x4x32xf32, #tpu.memory_space<vmem>>, vector<2x4x32xf32>,
    return
  }
  func.func @transform_0(%arg0: i32, %arg1: memref<2xi32, #tpu.memory_space<smem>>) -> (i32, i32, i32) {
    %c0_i32 = arith.constant 0 : i32
    %c0_i32_0 = arith.constant 0 : i32
    %c0_i32_1 = arith.constant 0 : i32
    %c0_i32_2 = arith.constant 0 : i32
    return %c0_i32, %c0_i32_0, %c0_i32_1 : i32, i32, i32
  }
  func.func @transform_1(%arg0: i32, %arg1: memref<2xi32, #tpu.memory_space<smem>>) -> (i32, i32, i32) {
    %c0_i32 = arith.constant 0 : i32
    %c0_i32_0 = arith.constant 0 : i32
    %c0_i32_1 = arith.constant 0 : i32
    %c0_i32_2 = arith.constant 0 : i32
    return %c0_i32, %c0_i32_0, %c0_i32_1 : i32, i32, i32
  }
  func.func @transform_2(%arg0: i32, %arg1: memref<2xi32, #tpu.memory_space<smem>>) -> (i32, i32, i32) {
    %c0_i32 = arith.constant 0 : i32
    %c0_i32_0 = arith.constant 0 : i32
    %c0_i32_1 = arith.constant 0 : i32
    %c0_i32_2 = arith.constant 0 : i32
    return %c0_i32, %c0_i32_0, %c0_i32_1 : i32, i32, i32
  }
  func.func @transform_3(%arg0: i32, %arg1: memref<2xi32, #tpu.memory_space<smem>>) -> (i32, i32, i32) {
    %c0_i32 = arith.constant 0 : i32
    %c0_i32_0 = arith.constant 0 : i32
    %c0_i32_1 = arith.constant 0 : i32
    %c0_i32_2 = arith.constant 0 : i32
    return %c0_i32, %c0_i32_0, %c0_i32_1 : i32, i32, i32
  }
  func.func @transform_4(%arg0: i32, %arg1: memref<2xi32, #tpu.memory_space<smem>>) -> (i32, i32, i32) {
    %c0_i32 = arith.constant 0 : i32
    %c0_i32_0 = arith.constant 0 : i32
    %c0_i32_1 = arith.constant 0 : i32
    %c0_i32_2 = arith.constant 0 : i32
    return %c0_i32, %c0_i32_0, %c0_i32_1 : i32, i32, i32
  }
  func.func @transform_5(%arg0: i32, %arg1: memref<2xi32, #tpu.memory_space<smem>>) -> (i32, i32, i32) {
    %c0_i32 = arith.constant 0 : i32
    %c0_i32_0 = arith.constant 0 : i32
    %c0_i32_1 = arith.constant 0 : i32
    %c0_i32_2 = arith.constant 0 : i32
    return %c0_i32, %c0_i32_0, %c0_i32_1 : i32, i32, i32
  }
  func.func @transform_6(%arg0: i32, %arg1: memref<2xi32, #tpu.memory_space<smem>>) -> (i32, i32, i32) {
    %c0_i32 = arith.constant 0 : i32
    %c0_i32_0 = arith.constant 0 : i32
    %c0_i32_1 = arith.constant 0 : i32
    %c0_i32_2 = arith.constant 0 : i32
    return %c0_i32, %c0_i32_0, %c0_i32_1 : i32, i32, i32
  }
  func.func @transform_7(%arg0: i32, %arg1: memref<2xi32, #tpu.memory_space<smem>>) -> (i32, i32, i32) {
    %c0_i32 = arith.constant 0 : i32
    %c0_i32_0 = arith.constant 0 : i32
    %c0_i32_1 = arith.constant 0 : i32
    %c0_i32_2 = arith.constant 0 : i32
    return %c0_i32, %c0_i32_0, %c0_i32_1 : i32, i32, i32
  }
}

</mosaic_0001>

<llo_original>
// kernel: tpu_custom_call.1
$region0: #{tpu_custom_call.1}
  #allocation0 [shape = 'u32[]', space=smem, size = 0x4, offset = 0x4, fixed_abs, tag = 'smem constant byte address 0x4 - core index']
  #allocation1 [shape = 'u32[144,128]{1,0:T(1,128)}', space=vmem, size = 0x12000, scoped, tag = 'internal scratch']
  #allocation2 [shape = 's32[1]{0}', space=sflag, size = 0x4, scoped, tag = 'scoped memory for tpu_custom_call.1']
  #allocation3 [shape = 'u8[512]{0}', space=smem, size = 0x200, scoped, tag = 'prefetched SMEM operand 0']
  %s0 = inlined_call_operand.vmem [shape: s32[2], index: 0, kind: input, shape index: {}]
  %s1 = inlined_call_operand.vmem [shape: f32[2,4,32], index: 1, kind: input, shape index: {}]
  %s2 = inlined_call_operand.vmem [shape: f32[2,6,32], index: 2, kind: input, shape index: {}]
  %s3 = inlined_call_operand.vmem [shape: f32[2,6,32], index: 3, kind: input, shape index: {}]
  %s4 = inlined_call_operand.vmem [shape: f32[4,32,8], index: 4, kind: input, shape index: {}]
  %s5 = inlined_call_operand.vmem [shape: f32[4,32,8], index: 5, kind: input, shape index: {}]
  %s6 = inlined_call_operand.vmem [shape: f32[4,32,8], index: 6, kind: input, shape index: {}]
  %s7 = inlined_call_operand.vmem [shape: f32[4,8,32], index: 7, kind: input, shape index: {}]
  %s8 = inlined_call_operand.hbm [shape: f32[2,4,32], index: 8, kind: output, shape index: {}]
  %s9 = sld [smem:[#allocation0]]
  $region38: #{tpu_custom_call.1} parent=0
    _
  %s11 = ssub.s32 1, %s9
  %s12 = scalar_select 0, %s11, %s9
  %s13 = sshll.u32 %s0, 4
  %s14 = int_to_ptr.vmem [resolvable:$true] %s13
  %16 = dma.vmem_to_smem %s14, 16, [#allocation3], [#allocation2]
  %17 = dma.done [#allocation2], 16
  %18 = sfence
  $region1: #{tpu_custom_call.1} parent=0
    #allocation4 [shape = 'u8[4096]{0}', space=vmem, size = 0x1000, scoped, tag = 'output window, operand 0, single buffered']
    #allocation5 [shape = 's32[1]{0}', space=sflag, size = 0x4, scoped, tag = 'scoped memory for tpu_custom_call.1']
    %19 = vsyncpa [#allocation5], 0
    // Predicated region
    $region2: #{tpu_custom_call.1} parent=1 // pred_check
      _
    $region3: #{tpu_custom_call.1} parent=1 // pred_check_branch
      %21 = sbr.rel (0) target = $region5
    $region4: #{tpu_custom_call.1} parent=1 // pred_region
      _
    $region5: #{tpu_custom_call.1} parent=1 // pred_fallthru
      _
    // Predicated region
    $region6: #{tpu_custom_call.1} parent=1 // pred_check
      _
    $region7: #{tpu_custom_call.1} parent=1 // pred_check_branch
      %23 = sbr.rel (0) target = $region9
    $region8: #{tpu_custom_call.1} parent=1 // pred_region
      _
    $region9: #{tpu_custom_call.1} parent=1 // pred_fallthru
      _
    // Predicated region
    $region10: #{tpu_custom_call.1} parent=1 // pred_check
      _
    $region11: #{tpu_custom_call.1} parent=1 // pred_check_branch
      %25 = sbr.rel (0) target = $region13
    $region12: #{tpu_custom_call.1} parent=1 // pred_region
      _
    $region13: #{tpu_custom_call.1} parent=1 // pred_fallthru
      _
    // Predicated region
    $region14: #{tpu_custom_call.1} parent=1 // pred_check
      _
    $region15: #{tpu_custom_call.1} parent=1 // pred_check_branch
      %27 = sbr.rel (0) target = $region17
    $region16: #{tpu_custom_call.1} parent=1 // pred_region
      _
    $region17: #{tpu_custom_call.1} parent=1 // pred_fallthru
      _
    // Predicated region
    $region18: #{tpu_custom_call.1} parent=1 // pred_check
      _
    $region19: #{tpu_custom_call.1} parent=1 // pred_check_branch
      %29 = sbr.rel (0) target = $region21
    $region20: #{tpu_custom_call.1} parent=1 // pred_region
      _
    $region21: #{tpu_custom_call.1} parent=1 // pred_fallthru
      _
    // Predicated region
    $region22: #{tpu_custom_call.1} parent=1 // pred_check
      _
    $region23: #{tpu_custom_call.1} parent=1 // pred_check_branch
      %31 = sbr.rel (0) target = $region25
    $region24: #{tpu_custom_call.1} parent=1 // pred_region
      _
    $region25: #{tpu_custom_call.1} parent=1 // pred_fallthru
      _
    // Predicated region
    $region26: #{tpu_custom_call.1} parent=1 // pred_check
      _
    $region27: #{tpu_custom_call.1} parent=1 // pred_check_branch
      %33 = sbr.rel (0) target = $region29
    $region28: #{tpu_custom_call.1} parent=1 // pred_region
      _
    $region29: #{tpu_custom_call.1} parent=1 // pred_fallthru
      _
    %v34 = vld [vmem:[%s1] sm:$0xf]
    %v35 = vld [vmem:[%s1 + $0x4] sm:$0xf]
    %v36 = vld [vmem:[%s2] sm:$0x3f]
    %v37 = vld [vmem:[%s2 + $0x8] sm:$0x3f]
    %v38 = vld [vmem:[%s3] sm:$0x3f]
    %v39 = vld [vmem:[%s3 + $0x8] sm:$0x3f]
    %v40 = vld [vmem:[%s4] sm:$0xff]
    %v41 = vld [vmem:[%s4 + $0x8] sm:$0xff]
    %v42 = vld [vmem:[%s4 + $0x10] sm:$0xff]
    %v43 = vld [vmem:[%s4 + $0x18] sm:$0xff]
    %v44 = vld [vmem:[%s4 + $0x20] sm:$0xff]
    %v45 = vld [vmem:[%s4 + $0x28] sm:$0xff]
    %v46 = vld [vmem:[%s4 + $0x30] sm:$0xff]
    %v47 = vld [vmem:[%s4 + $0x38] sm:$0xff]
    %v48 = vld [vmem:[%s4 + $0x40] sm:$0xff]
    %v49 = vld [vmem:[%s4 + $0x48] sm:$0xff]
    %v50 = vld [vmem:[%s4 + $0x50] sm:$0xff]
    %v51 = vld [vmem:[%s4 + $0x58] sm:$0xff]
    %v52 = vld [vmem:[%s4 + $0x60] sm:$0xff]
    %v53 = vld [vmem:[%s4 + $0x68] sm:$0xff]
    %v54 = vld [vmem:[%s4 + $0x70] sm:$0xff]
    %v55 = vld [vmem:[%s4 + $0x78] sm:$0xff]
    %v56 = vld [vmem:[%s5] sm:$0xff]
    %v57 = vld [vmem:[%s5 + $0x8] sm:$0xff]
    %v58 = vld [vmem:[%s5 + $0x10] sm:$0xff]
    %v59 = vld [vmem:[%s5 + $0x18] sm:$0xff]
    %v60 = vld [vmem:[%s5 + $0x20] sm:$0xff]
    %v61 = vld [vmem:[%s5 + $0x28] sm:$0xff]
    %v62 = vld [vmem:[%s5 + $0x30] sm:$0xff]
    %v63 = vld [vmem:[%s5 + $0x38] sm:$0xff]
    %v64 = vld [vmem:[%s5 + $0x40] sm:$0xff]
    %v65 = vld [vmem:[%s5 + $0x48] sm:$0xff]
    %v66 = vld [vmem:[%s5 + $0x50] sm:$0xff]
    %v67 = vld [vmem:[%s5 + $0x58] sm:$0xff]
    %v68 = vld [vmem:[%s5 + $0x60] sm:$0xff]
    %v69 = vld [vmem:[%s5 + $0x68] sm:$0xff]
    %v70 = vld [vmem:[%s5 + $0x70] sm:$0xff]
    %v71 = vld [vmem:[%s5 + $0x78] sm:$0xff]
    %v72 = vld [vmem:[%s6] sm:$0xff]
    %v73 = vld [vmem:[%s6 + $0x8] sm:$0xff]
    %v74 = vld [vmem:[%s6 + $0x10] sm:$0xff]
    %v75 = vld [vmem:[%s6 + $0x18] sm:$0xff]
    %v76 = vld [vmem:[%s6 + $0x20] sm:$0xff]
    %v77 = vld [vmem:[%s6 + $0x28] sm:$0xff]
    %v78 = vld [vmem:[%s6 + $0x30] sm:$0xff]
    %v79 = vld [vmem:[%s6 + $0x38] sm:$0xff]
    %v80 = vld [vmem:[%s6 + $0x40] sm:$0xff]
    %v81 = vld [vmem:[%s6 + $0x48] sm:$0xff]
    %v82 = vld [vmem:[%s6 + $0x50] sm:$0xff]
    %v83 = vld [vmem:[%s6 + $0x58] sm:$0xff]
    %v84 = vld [vmem:[%s6 + $0x60] sm:$0xff]
    %v85 = vld [vmem:[%s6 + $0x68] sm:$0xff]
    %v86 = vld [vmem:[%s6 + $0x70] sm:$0xff]
    %v87 = vld [vmem:[%s6 + $0x78] sm:$0xff]
    %v88 = vld [vmem:[%s7] sm:$0xff]
    %v89 = vld [vmem:[%s7 + $0x8] sm:$0xff]
    %v90 = vld [vmem:[%s7 + $0x10] sm:$0xff]
    %v91 = vld [vmem:[%s7 + $0x18] sm:$0xff]
    %vm92 = vcmask 261120
    %v94 = vsel %vm92, %v34, 0
    %96 = vmatprep.subr.mxu0 0.0
    %97 = vmatpush1.msra.mxu0 %v40
    %98 = vmatprep.subr.mxu0 0.0
    %99 = vmatpush1.msra.mxu0 %v41
    %100 = vmatprep.subr.mxu0 0.0
    %101 = vmatpush1.msra.mxu0 %v42
    %102 = vmatprep.subr.mxu0 0.0
    %103 = vmatpush1.msra.mxu0 %v43
    %104 = vmatprep.subr.mxu0 0.0
    %105 = vmatpush1.msra.mxu0 0.0
    %106 = vmatprep.subr.mxu0 0.0
    %107 = vmatpush1.msra.mxu0 0.0
    %108 = vmatprep.subr.mxu0 0.0
    %109 = vmatpush1.msra.mxu0 0.0
    %110 = vmatprep.subr.mxu0 0.0
    %111 = vmatpush1.msra.mxu0 0.0
    %112 = vmatprep.subr.mxu0 0.0
    %113 = vmatpush1.msra.mxu0 0.0
    %114 = vmatprep.subr.mxu0 0.0
    %115 = vmatpush1.msra.mxu0 0.0
    %116 = vmatprep.subr.mxu0 0.0
    %117 = vmatpush1.msra.mxu0 0.0
    %118 = vmatprep.subr.mxu0 0.0
    %119 = vmatpush1.msra.mxu0 0.0
    %120 = vmatprep.subr.mxu0 0.0
    %121 = vmatpush1.msra.mxu0 0.0
    %122 = vmatprep.subr.mxu0 0.0
    %123 = vmatpush1.msra.mxu0 0.0
    %124 = vmatprep.subr.mxu0 0.0
    %125 = vmatpush1.msra.mxu0 0.0
    %126 = vmatprep.subr.mxu0 0.0
    %127 = vmatpush1.msra.mxu0 0.0
    %128 = vmatprep.subr.mxu0 0.0
    %129 = vmatpush1.msra.mxu0 0.0
    %130 = vmatprep.subr.mxu0 0.0
    %131 = vmatpush1.msra.mxu0 0.0
    %132 = vmatprep.subr.mxu0 0.0
    %133 = vmatpush1.msra.mxu0 0.0
    %134 = vmatprep.subr.mxu0 0.0
    %135 = vmatpush1.msra.mxu0 0.0
    %136 = vmatprep.subr.mxu0 0.0
    %137 = vmatpush1.msra.mxu0 0.0
    %138 = vmatprep.subr.mxu0 0.0
    %139 = vmatpush1.msra.mxu0 0.0
    %140 = vmatprep.subr.mxu0 0.0
    %141 = vmatpush1.msra.mxu0 0.0
    %142 = vmatprep.subr.mxu0 0.0
    %143 = vmatpush1.msra.mxu0 0.0
    %144 = vmatprep.subr.mxu0 0.0
    %145 = vmatpush1.msra.mxu0 0.0
    %146 = vmatprep.subr.mxu0 0.0
    %147 = vmatpush1.msra.mxu0 0.0
    %148 = vmatprep.subr.mxu0 0.0
    %149 = vmatpush1.msra.mxu0 0.0
    %150 = vmatprep.subr.mxu0 0.0
    %151 = vmatpush1.msra.mxu0 0.0
    %152 = vmatprep.subr.mxu0 0.0
    %153 = vmatpush1.msra.mxu0 0.0
    %154 = vmatprep.subr.mxu0 0.0
    %155 = vmatpush1.msra.mxu0 0.0
    %156 = vmatprep.subr.mxu0 0.0
    %157 = vmatpush1.msra.mxu0 0.0
    %158 = vmatprep.subr.mxu0 0.0
    %159 = vmatpush1.msra.mxu0 0.0
    %160 = vmatprep.mubr.f32.mxu0 0.0
    %161 = vmatmul.mubr.f32.gmra.mrb[0].mxu0 %v94
    %v162 = vpop.f32.mrb[0].mxu0
    %v163 = vadd.f32 0.0, %v162
    %v164 = vpop.f32.mrb[0].mxu0
    %165 = vdwg.mxu0
    %166 = vmatprep.subr.mxu0 0.0
    %167 = vmatpush1.msra.mxu0 %v44
    %168 = vmatprep.subr.mxu0 0.0
    %169 = vmatpush1.msra.mxu0 %v45
    %170 = vmatprep.subr.mxu0 0.0
    %171 = vmatpush1.msra.mxu0 %v46
    %172 = vmatprep.subr.mxu0 0.0
    %173 = vmatpush1.msra.mxu0 %v47
    %174 = vmatprep.subr.mxu0 0.0
    %175 = vmatpush1.msra.mxu0 0.0
    %176 = vmatprep.subr.mxu0 0.0
    %177 = vmatpush1.msra.mxu0 0.0
    %178 = vmatprep.subr.mxu0 0.0
    %179 = vmatpush1.msra.mxu0 0.0
    %180 = vmatprep.subr.mxu0 0.0
    %181 = vmatpush1.msra.mxu0 0.0
    %182 = vmatprep.subr.mxu0 0.0
    %183 = vmatpush1.msra.mxu0 0.0
    %184 = vmatprep.subr.mxu0 0.0
    %185 = vmatpush1.msra.mxu0 0.0
    %186 = vmatprep.subr.mxu0 0.0
    %187 = vmatpush1.msra.mxu0 0.0
    %188 = vmatprep.subr.mxu0 0.0
    %189 = vmatpush1.msra.mxu0 0.0
    %190 = vmatprep.subr.mxu0 0.0
    %191 = vmatpush1.msra.mxu0 0.0
    %192 = vmatprep.subr.mxu0 0.0
    %193 = vmatpush1.msra.mxu0 0.0
    %194 = vmatprep.subr.mxu0 0.0
    %195 = vmatpush1.msra.mxu0 0.0
    %196 = vmatprep.subr.mxu0 0.0
    %197 = vmatpush1.msra.mxu0 0.0
    %198 = vmatprep.subr.mxu0 0.0
    %199 = vmatpush1.msra.mxu0 0.0
    %200 = vmatprep.subr.mxu0 0.0
    %201 = vmatpush1.msra.mxu0 0.0
    %202 = vmatprep.subr.mxu0 0.0
    %203 = vmatpush1.msra.mxu0 0.0
    %204 = vmatprep.subr.mxu0 0.0
    %205 = vmatpush1.msra.mxu0 0.0
    %206 = vmatprep.subr.mxu0 0.0
    %207 = vmatpush1.msra.mxu0 0.0
    %208 = vmatprep.subr.mxu0 0.0
    %209 = vmatpush1.msra.mxu0 0.0
    %210 = vmatprep.subr.mxu0 0.0
    %211 = vmatpush1.msra.mxu0 0.0
    %212 = vmatprep.subr.mxu0 0.0
    %213 = vmatpush1.msra.mxu0 0.0
    %214 = vmatprep.subr.mxu0 0.0
    %215 = vmatpush1.msra.mxu0 0.0
    %216 = vmatprep.subr.mxu0 0.0
    %217 = vmatpush1.msra.mxu0 0.0
    %218 = vmatprep.subr.mxu0 0.0
    %219 = vmatpush1.msra.mxu0 0.0
    %220 = vmatprep.subr.mxu0 0.0
    %221 = vmatpush1.msra.mxu0 0.0
    %222 = vmatprep.subr.mxu0 0.0
    %223 = vmatpush1.msra.mxu0 0.0
    %224 = vmatprep.subr.mxu0 0.0
    %225 = vmatpush1.msra.mxu0 0.0
    %226 = vmatprep.subr.mxu0 0.0
    %227 = vmatpush1.msra.mxu0 0.0
    %228 = vmatprep.subr.mxu0 0.0
    %229 = vmatpush1.msra.mxu0 0.0
    %230 = vmatprep.mubr.f32.mxu0 0.0
    %231 = vmatmul.mubr.f32.gmra.mrb[0].mxu0 %v94
    %v232 = vpop.f32.mrb[0].mxu0
    %v233 = vadd.f32 0.0, %v232
    %v234 = vpop.f32.mrb[0].mxu0
    %235 = vdwg.mxu0
    %236 = vmatprep.subr.mxu0 0.0
    %237 = vmatpush1.msra.mxu0 %v48
    %238 = vmatprep.subr.mxu0 0.0
    %239 = vmatpush1.msra.mxu0 %v49
    %240 = vmatprep.subr.mxu0 0.0
    %241 = vmatpush1.msra.mxu0 %v50
    %242 = vmatprep.subr.mxu0 0.0
    %243 = vmatpush1.msra.mxu0 %v51
    %244 = vmatprep.subr.mxu0 0.0
    %245 = vmatpush1.msra.mxu0 0.0
    %246 = vmatprep.subr.mxu0 0.0
    %247 = vmatpush1.msra.mxu0 0.0
    %248 = vmatprep.subr.mxu0 0.0
    %249 = vmatpush1.msra.mxu0 0.0
    %250 = vmatprep.subr.mxu0 0.0
    %251 = vmatpush1.msra.mxu0 0.0
    %252 = vmatprep.subr.mxu0 0.0
    %253 = vmatpush1.msra.mxu0 0.0
    %254 = vmatprep.subr.mxu0 0.0
    %255 = vmatpush1.msra.mxu0 0.0
    %256 = vmatprep.subr.mxu0 0.0
    %257 = vmatpush1.msra.mxu0 0.0
    %258 = vmatprep.subr.mxu0 0.0
    %259 = vmatpush1.msra.mxu0 0.0
    %260 = vmatprep.subr.mxu0 0.0
    %261 = vmatpush1.msra.mxu0 0.0
    %262 = vmatprep.subr.mxu0 0.0
    %263 = vmatpush1.msra.mxu0 0.0
    %264 = vmatprep.subr.mxu0 0.0
    %265 = vmatpush1.msra.mxu0 0.0
    %266 = vmatprep.subr.mxu0 0.0
    %267 = vmatpush1.msra.mxu0 0.0
    %268 = vmatprep.subr.mxu0 0.0
    %269 = vmatpush1.msra.mxu0 0.0
    %270 = vmatprep.subr.mxu0 0.0
    %271 = vmatpush1.msra.mxu0 0.0
    %272 = vmatprep.subr.mxu0 0.0
    %273 = vmatpush1.msra.mxu0 0.0
    %274 = vmatprep.subr.mxu0 0.0
    %275 = vmatpush1.msra.mxu0 0.0
    %276 = vmatprep.subr.mxu0 0.0
    %277 = vmatpush1.msra.mxu0 0.0
    %278 = vmatprep.subr.mxu0 0.0
    %279 = vmatpush1.msra.mxu0 0.0
    %280 = vmatprep.subr.mxu0 0.0
    %281 = vmatpush1.msra.mxu0 0.0
    %282 = vmatprep.subr.mxu0 0.0
    %283 = vmatpush1.msra.mxu0 0.0
    %284 = vmatprep.subr.mxu0 0.0
    %285 = vmatpush1.msra.mxu0 0.0
    %286 = vmatprep.subr.mxu0 0.0
    %287 = vmatpush1.msra.mxu0 0.0
    %288 = vmatprep.subr.mxu0 0.0
    %289 = vmatpush1.msra.mxu0 0.0
    %290 = vmatprep.subr.mxu0 0.0
    %291 = vmatpush1.msra.mxu0 0.0
    %292 = vmatprep.subr.mxu0 0.0
    %293 = vmatpush1.msra.mxu0 0.0
    %294 = vmatprep.subr.mxu0 0.0
    %295 = vmatpush1.msra.mxu0 0.0
    %296 = vmatprep.subr.mxu0 0.0
    %297 = vmatpush1.msra.mxu0 0.0
    %298 = vmatprep.subr.mxu0 0.0
    %299 = vmatpush1.msra.mxu0 0.0
    %300 = vmatprep.mubr.f32.mxu0 0.0
    %301 = vmatmul.mubr.f32.gmra.mrb[0].mxu0 %v94
    %v302 = vpop.f32.mrb[0].mxu0
    %v303 = vadd.f32 0.0, %v302
    %v304 = vpop.f32.mrb[0].mxu0
    %305 = vdwg.mxu0
    %306 = vmatprep.subr.mxu0 0.0
    %307 = vmatpush1.msra.mxu0 %v52
    %308 = vmatprep.subr.mxu0 0.0
    %309 = vmatpush1.msra.mxu0 %v53
    %310 = vmatprep.subr.mxu0 0.0
    %311 = vmatpush1.msra.mxu0 %v54
    %312 = vmatprep.subr.mxu0 0.0
    %313 = vmatpush1.msra.mxu0 %v55
    %314 = vmatprep.subr.mxu0 0.0
    %315 = vmatpush1.msra.mxu0 0.0
    %316 = vmatprep.subr.mxu0 0.0
    %317 = vmatpush1.msra.mxu0 0.0
    %318 = vmatprep.subr.mxu0 0.0
    %319 = vmatpush1.msra.mxu0 0.0
    %320 = vmatprep.subr.mxu0 0.0
    %321 = vmatpush1.msra.mxu0 0.0
    %322 = vmatprep.subr.mxu0 0.0
    %323 = vmatpush1.msra.mxu0 0.0
    %324 = vmatprep.subr.mxu0 0.0
    %325 = vmatpush1.msra.mxu0 0.0
    %326 = vmatprep.subr.mxu0 0.0
    %327 = vmatpush1.msra.mxu0 0.0
    %328 = vmatprep.subr.mxu0 0.0
    %329 = vmatpush1.msra.mxu0 0.0
    %330 = vmatprep.subr.mxu0 0.0
    %331 = vmatpush1.msra.mxu0 0.0
    %332 = vmatprep.subr.mxu0 0.0
    %333 = vmatpush1.msra.mxu0 0.0
    %334 = vmatprep.subr.mxu0 0.0
    %335 = vmatpush1.msra.mxu0 0.0
    %336 = vmatprep.subr.mxu0 0.0
    %337 = vmatpush1.msra.mxu0 0.0
    %338 = vmatprep.subr.mxu0 0.0
    %339 = vmatpush1.msra.mxu0 0.0
    %340 = vmatprep.subr.mxu0 0.0
    %341 = vmatpush1.msra.mxu0 0.0
    %342 = vmatprep.subr.mxu0 0.0
    %343 = vmatpush1.msra.mxu0 0.0
    %344 = vmatprep.subr.mxu0 0.0
    %345 = vmatpush1.msra.mxu0 0.0
    %346 = vmatprep.subr.mxu0 0.0
    %347 = vmatpush1.msra.mxu0 0.0
    %348 = vmatprep.subr.mxu0 0.0
    %349 = vmatpush1.msra.mxu0 0.0
    %350 = vmatprep.subr.mxu0 0.0
    %351 = vmatpush1.msra.mxu0 0.0
    %352 = vmatprep.subr.mxu0 0.0
    %353 = vmatpush1.msra.mxu0 0.0
    %354 = vmatprep.subr.mxu0 0.0
    %355 = vmatpush1.msra.mxu0 0.0
    %356 = vmatprep.subr.mxu0 0.0
    %357 = vmatpush1.msra.mxu0 0.0
    %358 = vmatprep.subr.mxu0 0.0
    %359 = vmatpush1.msra.mxu0 0.0
    %360 = vmatprep.subr.mxu0 0.0
    %361 = vmatpush1.msra.mxu0 0.0
    %362 = vmatprep.subr.mxu0 0.0
    %363 = vmatpush1.msra.mxu0 0.0
    %364 = vmatprep.subr.mxu0 0.0
    %365 = vmatpush1.msra.mxu0 0.0
    %366 = vmatprep.subr.mxu0 0.0
    %367 = vmatpush1.msra.mxu0 0.0
    %368 = vmatprep.subr.mxu0 0.0
    %369 = vmatpush1.msra.mxu0 0.0
    %370 = vmatprep.mubr.f32.mxu0 0.0
    %371 = vmatmul.mubr.f32.gmra.mrb[0].mxu0 %v94
    %v372 = vpop.f32.mrb[0].mxu0
    %v373 = vadd.f32 0.0, %v372
    %v374 = vpop.f32.mrb[0].mxu0
    %375 = vdwg.mxu0
    %v377 = vsel %vm92, %v35, 0
    %379 = vmatprep.subr.mxu0 0.0
    %380 = vmatpush1.msra.mxu0 %v40
    %381 = vmatprep.subr.mxu0 0.0
    %382 = vmatpush1.msra.mxu0 %v41
    %383 = vmatprep.subr.mxu0 0.0
    %384 = vmatpush1.msra.mxu0 %v42
    %385 = vmatprep.subr.mxu0 0.0
    %386 = vmatpush1.msra.mxu0 %v43
    %387 = vmatprep.subr.mxu0 0.0
    %388 = vmatpush1.msra.mxu0 0.0
    %389 = vmatprep.subr.mxu0 0.0
    %390 = vmatpush1.msra.mxu0 0.0
    %391 = vmatprep.subr.mxu0 0.0
    %392 = vmatpush1.msra.mxu0 0.0
    %393 = vmatprep.subr.mxu0 0.0
    %394 = vmatpush1.msra.mxu0 0.0
    %395 = vmatprep.subr.mxu0 0.0
    %396 = vmatpush1.msra.mxu0 0.0
    %397 = vmatprep.subr.mxu0 0.0
    %398 = vmatpush1.msra.mxu0 0.0
    %399 = vmatprep.subr.mxu0 0.0
    %400 = vmatpush1.msra.mxu0 0.0
    %401 = vmatprep.subr.mxu0 0.0
    %402 = vmatpush1.msra.mxu0 0.0
    %403 = vmatprep.subr.mxu0 0.0
    %404 = vmatpush1.msra.mxu0 0.0
    %405 = vmatprep.subr.mxu0 0.0
    %406 = vmatpush1.msra.mxu0 0.0
    %407 = vmatprep.subr.mxu0 0.0
    %408 = vmatpush1.msra.mxu0 0.0
    %409 = vmatprep.subr.mxu0 0.0
    %410 = vmatpush1.msra.mxu0 0.0
    %411 = vmatprep.subr.mxu0 0.0
    %412 = vmatpush1.msra.mxu0 0.0
    %413 = vmatprep.subr.mxu0 0.0
    %414 = vmatpush1.msra.mxu0 0.0
    %415 = vmatprep.subr.mxu0 0.0
    %416 = vmatpush1.msra.mxu0 0.0
    %417 = vmatprep.subr.mxu0 0.0
    %418 = vmatpush1.msra.mxu0 0.0
    %419 = vmatprep.subr.mxu0 0.0
    %420 = vmatpush1.msra.mxu0 0.0
    %421 = vmatprep.subr.mxu0 0.0
    %422 = vmatpush1.msra.mxu0 0.0
    %423 = vmatprep.subr.mxu0 0.0
    %424 = vmatpush1.msra.mxu0 0.0
    %425 = vmatprep.subr.mxu0 0.0
    %426 = vmatpush1.msra.mxu0 0.0
    %427 = vmatprep.subr.mxu0 0.0
    %428 = vmatpush1.msra.mxu0 0.0
    %429 = vmatprep.subr.mxu0 0.0
    %430 = vmatpush1.msra.mxu0 0.0
    %431 = vmatprep.subr.mxu0 0.0
    %432 = vmatpush1.msra.mxu0 0.0
    %433 = vmatprep.subr.mxu0 0.0
    %434 = vmatpush1.msra.mxu0 0.0
    %435 = vmatprep.subr.mxu0 0.0
    %436 = vmatpush1.msra.mxu0 0.0
    %437 = vmatprep.subr.mxu0 0.0
    %438 = vmatpush1.msra.mxu0 0.0
    %439 = vmatprep.subr.mxu0 0.0
    %440 = vmatpush1.msra.mxu0 0.0
    %441 = vmatprep.subr.mxu0 0.0
    %442 = vmatpush1.msra.mxu0 0.0
    %443 = vmatprep.mubr.f32.mxu0 0.0
    %444 = vmatmul.mubr.f32.gmra.mrb[0].mxu0 %v377
    %v445 = vpop.f32.mrb[0].mxu0
    %v446 = vadd.f32 0.0, %v445
    %v447 = vpop.f32.mrb[0].mxu0
    %448 = vdwg.mxu0
    %449 = vmatprep.subr.mxu0 0.0
    %450 = vmatpush1.msra.mxu0 %v44
    %451 = vmatprep.subr.mxu0 0.0
    %452 = vmatpush1.msra.mxu0 %v45
    %453 = vmatprep.subr.mxu0 0.0
    %454 = vmatpush1.msra.mxu0 %v46
    %455 = vmatprep.subr.mxu0 0.0
    %456 = vmatpush1.msra.mxu0 %v47
    %457 = vmatprep.subr.mxu0 0.0
    %458 = vmatpush1.msra.mxu0 0.0
    %459 = vmatprep.subr.mxu0 0.0
    %460 = vmatpush1.msra.mxu0 0.0
    %461 = vmatprep.subr.mxu0 0.0
    %462 = vmatpush1.msra.mxu0 0.0
    %463 = vmatprep.subr.mxu0 0.0
    %464 = vmatpush1.msra.mxu0 0.0
    %465 = vmatprep.subr.mxu0 0.0
    %466 = vmatpush1.msra.mxu0 0.0
    %467 = vmatprep.subr.mxu0 0.0
    %468 = vmatpush1.msra.mxu0 0.0
    %469 = vmatprep.subr.mxu0 0.0
    %470 = vmatpush1.msra.mxu0 0.0
    %471 = vmatprep.subr.mxu0 0.0
    %472 = vmatpush1.msra.mxu0 0.0
    %473 = vmatprep.subr.mxu0 0.0
    %474 = vmatpush1.msra.mxu0 0.0
    %475 = vmatprep.subr.mxu0 0.0
    %476 = vmatpush1.msra.mxu0 0.0
    %477 = vmatprep.subr.mxu0 0.0
    %478 = vmatpush1.msra.mxu0 0.0
    %479 = vmatprep.subr.mxu0 0.0
    %480 = vmatpush1.msra.mxu0 0.0
    %481 = vmatprep.subr.mxu0 0.0
    %482 = vmatpush1.msra.mxu0 0.0
    %483 = vmatprep.subr.mxu0 0.0
    %484 = vmatpush1.msra.mxu0 0.0
    %485 = vmatprep.subr.mxu0 0.0
    %486 = vmatpush1.msra.mxu0 0.0
    %487 = vmatprep.subr.mxu0 0.0
    %488 = vmatpush1.msra.mxu0 0.0
    %489 = vmatprep.subr.mxu0 0.0
    %490 = vmatpush1.msra.mxu0 0.0
    %491 = vmatprep.subr.mxu0 0.0
    %492 = vmatpush1.msra.mxu0 0.0
    %493 = vmatprep.subr.mxu0 0.0
    %494 = vmatpush1.msra.mxu0 0.0
    %495 = vmatprep.subr.mxu0 0.0
    %496 = vmatpush1.msra.mxu0 0.0
    %497 = vmatprep.subr.mxu0 0.0
    %498 = vmatpush1.msra.mxu0 0.0
    %499 = vmatprep.subr.mxu0 0.0
    %500 = vmatpush1.msra.mxu0 0.0
    %501 = vmatprep.subr.mxu0 0.0
    %502 = vmatpush1.msra.mxu0 0.0
    %503 = vmatprep.subr.mxu0 0.0
    %504 = vmatpush1.msra.mxu0 0.0
    %505 = vmatprep.subr.mxu0 0.0
    %506 = vmatpush1.msra.mxu0 0.0
    %507 = vmatprep.subr.mxu0 0.0
    %508 = vmatpush1.msra.mxu0 0.0
    %509 = vmatprep.subr.mxu0 0.0
    %510 = vmatpush1.msra.mxu0 0.0
    %511 = vmatprep.subr.mxu0 0.0
    %512 = vmatpush1.msra.mxu0 0.0
    %513 = vmatprep.mubr.f32.mxu0 0.0
    %514 = vmatmul.mubr.f32.gmra.mrb[0].mxu0 %v377
    %v515 = vpop.f32.mrb[0].mxu0
    %v516 = vadd.f32 0.0, %v515
    %v517 = vpop.f32.mrb[0].mxu0
    %518 = vdwg.mxu0
    %519 = vmatprep.subr.mxu0 0.0
    %520 = vmatpush1.msra.mxu0 %v48
    %521 = vmatprep.subr.mxu0 0.0
    %522 = vmatpush1.msra.mxu0 %v49
    %523 = vmatprep.subr.mxu0 0.0
    %524 = vmatpush1.msra.mxu0 %v50
    %525 = vmatprep.subr.mxu0 0.0
    %526 = vmatpush1.msra.mxu0 %v51
    %527 = vmatprep.subr.mxu0 0.0
    %528 = vmatpush1.msra.mxu0 0.0
    %529 = vmatprep.subr.mxu0 0.0
    %530 = vmatpush1.msra.mxu0 0.0
    %531 = vmatprep.subr.mxu0 0.0
    %532 = vmatpush1.msra.mxu0 0.0
    %533 = vmatprep.subr.mxu0 0.0
    %534 = vmatpush1.msra.mxu0 0.0
    %535 = vmatprep.subr.mxu0 0.0
    %536 = vmatpush1.msra.mxu0 0.0
    %537 = vmatprep.subr.mxu0 0.0
    %538 = vmatpush1.msra.mxu0 0.0
    %539 = vmatprep.subr.mxu0 0.0
    %540 = vmatpush1.msra.mxu0 0.0
    %541 = vmatprep.subr.mxu0 0.0
    %542 = vmatpush1.msra.mxu0 0.0
    %543 = vmatprep.subr.mxu0 0.0
    %544 = vmatpush1.msra.mxu0 0.0
    %545 = vmatprep.subr.mxu0 0.0
    %546 = vmatpush1.msra.mxu0 0.0
    %547 = vmatprep.subr.mxu0 0.0
    %548 = vmatpush1.msra.mxu0 0.0
    %549 = vmatprep.subr.mxu0 0.0
    %550 = vmatpush1.msra.mxu0 0.0
    %551 = vmatprep.subr.mxu0 0.0
    %552 = vmatpush1.msra.mxu0 0.0
    %553 = vmatprep.subr.mxu0 0.0
    %554 = vmatpush1.msra.mxu0 0.0
    %555 = vmatprep.subr.mxu0 0.0
    %556 = vmatpush1.msra.mxu0 0.0
    %557 = vmatprep.subr.mxu0 0.0
    %558 = vmatpush1.msra.mxu0 0.0
    %559 = vmatprep.subr.mxu0 0.0
    %560 = vmatpush1.msra.mxu0 0.0
    %561 = vmatprep.subr.mxu0 0.0
    %562 = vmatpush1.msra.mxu0 0.0
    %563 = vmatprep.subr.mxu0 0.0
    %564 = vmatpush1.msra.mxu0 0.0
    %565 = vmatprep.subr.mxu0 0.0
    %566 = vmatpush1.msra.mxu0 0.0
    %567 = vmatprep.subr.mxu0 0.0
    %568 = vmatpush1.msra.mxu0 0.0
    %569 = vmatprep.subr.mxu0 0.0
    %570 = vmatpush1.msra.mxu0 0.0
    %571 = vmatprep.subr.mxu0 0.0
    %572 = vmatpush1.msra.mxu0 0.0
    %573 = vmatprep.subr.mxu0 0.0
    %574 = vmatpush1.msra.mxu0 0.0
    %575 = vmatprep.subr.mxu0 0.0
    %576 = vmatpush1.msra.mxu0 0.0
    %577 = vmatprep.subr.mxu0 0.0
    %578 = vmatpush1.msra.mxu0 0.0
    %579 = vmatprep.subr.mxu0 0.0
    %580 = vmatpush1.msra.mxu0 0.0
    %581 = vmatprep.subr.mxu0 0.0
    %582 = vmatpush1.msra.mxu0 0.0
    %583 = vmatprep.mubr.f32.mxu0 0.0
    %584 = vmatmul.mubr.f32.gmra.mrb[0].mxu0 %v377
    %v585 = vpop.f32.mrb[0].mxu0
    %v586 = vadd.f32 0.0, %v585
    %v587 = vpop.f32.mrb[0].mxu0
    %588 = vdwg.mxu0
    %589 = vmatprep.subr.mxu0 0.0
    %590 = vmatpush1.msra.mxu0 %v52
    %591 = vmatprep.subr.mxu0 0.0
    %592 = vmatpush1.msra.mxu0 %v53
    %593 = vmatprep.subr.mxu0 0.0
    %594 = vmatpush1.msra.mxu0 %v54
    %595 = vmatprep.subr.mxu0 0.0
    %596 = vmatpush1.msra.mxu0 %v55
    %597 = vmatprep.subr.mxu0 0.0
    %598 = vmatpush1.msra.mxu0 0.0
    %599 = vmatprep.subr.mxu0 0.0
    %600 = vmatpush1.msra.mxu0 0.0
    %601 = vmatprep.subr.mxu0 0.0
    %602 = vmatpush1.msra.mxu0 0.0
    %603 = vmatprep.subr.mxu0 0.0
    %604 = vmatpush1.msra.mxu0 0.0
    %605 = vmatprep.subr.mxu0 0.0
    %606 = vmatpush1.msra.mxu0 0.0
    %607 = vmatprep.subr.mxu0 0.0
    %608 = vmatpush1.msra.mxu0 0.0
    %609 = vmatprep.subr.mxu0 0.0
    %610 = vmatpush1.msra.mxu0 0.0
    %611 = vmatprep.subr.mxu0 0.0
    %612 = vmatpush1.msra.mxu0 0.0
    %613 = vmatprep.subr.mxu0 0.0
    %614 = vmatpush1.msra.mxu0 0.0
    %615 = vmatprep.subr.mxu0 0.0
    %616 = vmatpush1.msra.mxu0 0.0
    %617 = vmatprep.subr.mxu0 0.0
    %618 = vmatpush1.msra.mxu0 0.0
    %619 = vmatprep.subr.mxu0 0.0
    %620 = vmatpush1.msra.mxu0 0.0
    %621 = vmatprep.subr.mxu0 0.0
    %622 = vmatpush1.msra.mxu0 0.0
    %623 = vmatprep.subr.mxu0 0.0
    %624 = vmatpush1.msra.mxu0 0.0
    %625 = vmatprep.subr.mxu0 0.0
    %626 = vmatpush1.msra.mxu0 0.0
    %627 = vmatprep.subr.mxu0 0.0
    %628 = vmatpush1.msra.mxu0 0.0
    %629 = vmatprep.subr.mxu0 0.0
    %630 = vmatpush1.msra.mxu0 0.0
    %631 = vmatprep.subr.mxu0 0.0
    %632 = vmatpush1.msra.mxu0 0.0
    %633 = vmatprep.subr.mxu0 0.0
    %634 = vmatpush1.msra.mxu0 0.0
    %635 = vmatprep.subr.mxu0 0.0
    %636 = vmatpush1.msra.mxu0 0.0
    %637 = vmatprep.subr.mxu0 0.0
    %638 = vmatpush1.msra.mxu0 0.0
    %639 = vmatprep.subr.mxu0 0.0
    %640 = vmatpush1.msra.mxu0 0.0
    %641 = vmatprep.subr.mxu0 0.0
    %642 = vmatpush1.msra.mxu0 0.0
    %643 = vmatprep.subr.mxu0 0.0
    %644 = vmatpush1.msra.mxu0 0.0
    %645 = vmatprep.subr.mxu0 0.0
    %646 = vmatpush1.msra.mxu0 0.0
    %647 = vmatprep.subr.mxu0 0.0
    %648 = vmatpush1.msra.mxu0 0.0
    %649 = vmatprep.subr.mxu0 0.0
    %650 = vmatpush1.msra.mxu0 0.0
    %651 = vmatprep.subr.mxu0 0.0
    %652 = vmatpush1.msra.mxu0 0.0
    %653 = vmatprep.mubr.f32.mxu0 0.0
    %654 = vmatmul.mubr.f32.gmra.mrb[0].mxu0 %v377
    %v655 = vpop.f32.mrb[0].mxu0
    %v656 = vadd.f32 0.0, %v655
    %v657 = vpop.f32.mrb[0].mxu0
    %658 = vdwg.mxu0
    %v660 = vsel %vm92, %v36, 0
    %662 = vmatprep.subr.mxu0 0.0
    %663 = vmatpush1.msra.mxu0 %v56
    %664 = vmatprep.subr.mxu0 0.0
    %665 = vmatpush1.msra.mxu0 %v57
    %666 = vmatprep.subr.mxu0 0.0
    %667 = vmatpush1.msra.mxu0 %v58
    %668 = vmatprep.subr.mxu0 0.0
    %669 = vmatpush1.msra.mxu0 %v59
    %670 = vmatprep.subr.mxu0 0.0
    %671 = vmatpush1.msra.mxu0 0.0
    %672 = vmatprep.subr.mxu0 0.0
    %673 = vmatpush1.msra.mxu0 0.0
    %674 = vmatprep.subr.mxu0 0.0
    %675 = vmatpush1.msra.mxu0 0.0
    %676 = vmatprep.subr.mxu0 0.0
    %677 = vmatpush1.msra.mxu0 0.0
    %678 = vmatprep.subr.mxu0 0.0
    %679 = vmatpush1.msra.mxu0 0.0
    %680 = vmatprep.subr.mxu0 0.0
    %681 = vmatpush1.msra.mxu0 0.0
    %682 = vmatprep.subr.mxu0 0.0
    %683 = vmatpush1.msra.mxu0 0.0
    %684 = vmatprep.subr.mxu0 0.0
    %685 = vmatpush1.msra.mxu0 0.0
    %686 = vmatprep.subr.mxu0 0.0
    %687 = vmatpush1.msra.mxu0 0.0
    %688 = vmatprep.subr.mxu0 0.0
    %689 = vmatpush1.msra.mxu0 0.0
    %690 = vmatprep.subr.mxu0 0.0
    %691 = vmatpush1.msra.mxu0 0.0
    %692 = vmatprep.subr.mxu0 0.0
    %693 = vmatpush1.msra.mxu0 0.0
    %694 = vmatprep.subr.mxu0 0.0
    %695 = vmatpush1.msra.mxu0 0.0
    %696 = vmatprep.subr.mxu0 0.0
    %697 = vmatpush1.msra.mxu0 0.0
    %698 = vmatprep.subr.mxu0 0.0
    %699 = vmatpush1.msra.mxu0 0.0
    %700 = vmatprep.subr.mxu0 0.0
    %701 = vmatpush1.msra.mxu0 0.0
    %702 = vmatprep.subr.mxu0 0.0
    %703 = vmatpush1.msra.mxu0 0.0
    %704 = vmatprep.subr.mxu0 0.0
    %705 = vmatpush1.msra.mxu0 0.0
    %706 = vmatprep.subr.mxu0 0.0
    %707 = vmatpush1.msra.mxu0 0.0
    %708 = vmatprep.subr.mxu0 0.0
    %709 = vmatpush1.msra.mxu0 0.0
    %710 = vmatprep.subr.mxu0 0.0
    %711 = vmatpush1.msra.mxu0 0.0
    %712 = vmatprep.subr.mxu0 0.0
    %713 = vmatpush1.msra.mxu0 0.0
    %714 = vmatprep.subr.mxu0 0.0
    %715 = vmatpush1.msra.mxu0 0.0
    %716 = vmatprep.subr.mxu0 0.0
    %717 = vmatpush1.msra.mxu0 0.0
    %718 = vmatprep.subr.mxu0 0.0
    %719 = vmatpush1.msra.mxu0 0.0
    %720 = vmatprep.subr.mxu0 0.0
    %721 = vmatpush1.msra.mxu0 0.0
    %722 = vmatprep.subr.mxu0 0.0
    %723 = vmatpush1.msra.mxu0 0.0
    %724 = vmatprep.subr.mxu0 0.0
    %725 = vmatpush1.msra.mxu0 0.0
    %726 = vmatprep.mubr.f32.mxu0 0.0
    %727 = vmatmul.mubr.f32.gmra.mrb[0].mxu0 %v660
    %v728 = vpop.f32.mrb[0].mxu0
    %v729 = vadd.f32 0.0, %v728
    %v730 = vpop.f32.mrb[0].mxu0
    %731 = vdwg.mxu0
    %732 = vmatprep.subr.mxu0 0.0
    %733 = vmatpush1.msra.mxu0 %v60
    %734 = vmatprep.subr.mxu0 0.0
    %735 = vmatpush1.msra.mxu0 %v61
    %736 = vmatprep.subr.mxu0 0.0
    %737 = vmatpush1.msra.mxu0 %v62
    %738 = vmatprep.subr.mxu0 0.0
    %739 = vmatpush1.msra.mxu0 %v63
    %740 = vmatprep.subr.mxu0 0.0
    %741 = vmatpush1.msra.mxu0 0.0
    %742 = vmatprep.subr.mxu0 0.0
    %743 = vmatpush1.msra.mxu0 0.0
    %744 = vmatprep.subr.mxu0 0.0
    %745 = vmatpush1.msra.mxu0 0.0
    %746 = vmatprep.subr.mxu0 0.0
    %747 = vmatpush1.msra.mxu0 0.0
    %748 = vmatprep.subr.mxu0 0.0
    %749 = vmatpush1.msra.mxu0 0.0
    %750 = vmatprep.subr.mxu0 0.0
    %751 = vmatpush1.msra.mxu0 0.0
    %752 = vmatprep.subr.mxu0 0.0
    %753 = vmatpush1.msra.mxu0 0.0
    %754 = vmatprep.subr.mxu0 0.0
    %755 = vmatpush1.msra.mxu0 0.0
    %756 = vmatprep.subr.mxu0 0.0
    %757 = vmatpush1.msra.mxu0 0.0
    %758 = vmatprep.subr.mxu0 0.0
    %759 = vmatpush1.msra.mxu0 0.0
    %760 = vmatprep.subr.mxu0 0.0
    %761 = vmatpush1.msra.mxu0 0.0
    %762 = vmatprep.subr.mxu0 0.0
    %763 = vmatpush1.msra.mxu0 0.0
    %764 = vmatprep.subr.mxu0 0.0
    %765 = vmatpush1.msra.mxu0 0.0
    %766 = vmatprep.subr.mxu0 0.0
    %767 = vmatpush1.msra.mxu0 0.0
    %768 = vmatprep.subr.mxu0 0.0
    %769 = vmatpush1.msra.mxu0 0.0
    %770 = vmatprep.subr.mxu0 0.0
    %771 = vmatpush1.msra.mxu0 0.0
    %772 = vmatprep.subr.mxu0 0.0
    %773 = vmatpush1.msra.mxu0 0.0
    %774 = vmatprep.subr.mxu0 0.0
    %775 = vmatpush1.msra.mxu0 0.0
    %776 = vmatprep.subr.mxu0 0.0
    %777 = vmatpush1.msra.mxu0 0.0
    %778 = vmatprep.subr.mxu0 0.0
    %779 = vmatpush1.msra.mxu0 0.0
    %780 = vmatprep.subr.mxu0 0.0
    %781 = vmatpush1.msra.mxu0 0.0
    %782 = vmatprep.subr.mxu0 0.0
    %783 = vmatpush1.msra.mxu0 0.0
    %784 = vmatprep.subr.mxu0 0.0
    %785 = vmatpush1.msra.mxu0 0.0
    %786 = vmatprep.subr.mxu0 0.0
    %787 = vmatpush1.msra.mxu0 0.0
    %788 = vmatprep.subr.mxu0 0.0
    %789 = vmatpush1.msra.mxu0 0.0
    %790 = vmatprep.subr.mxu0 0.0
    %791 = vmatpush1.msra.mxu0 0.0
    %792 = vmatprep.subr.mxu0 0.0
    %793 = vmatpush1.msra.mxu0 0.0
    %794 = vmatprep.subr.mxu0 0.0
    %795 = vmatpush1.msra.mxu0 0.0
    %796 = vmatprep.mubr.f32.mxu0 0.0
    %797 = vmatmul.mubr.f32.gmra.mrb[0].mxu0 %v660
    %v798 = vpop.f32.mrb[0].mxu0
    %v799 = vadd.f32 0.0, %v798
    %v800 = vpop.f32.mrb[0].mxu0
    %801 = vdwg.mxu0
    %802 = vmatprep.subr.mxu0 0.0
    %803 = vmatpush1.msra.mxu0 %v64
    %804 = vmatprep.subr.mxu0 0.0
    %805 = vmatpush1.msra.mxu0 %v65
    %806 = vmatprep.subr.mxu0 0.0
    %807 = vmatpush1.msra.mxu0 %v66
    %808 = vmatprep.subr.mxu0 0.0
    %809 = vmatpush1.msra.mxu0 %v67
    %810 = vmatprep.subr.mxu0 0.0
    %811 = vmatpush1.msra.mxu0 0.0
    %812 = vmatprep.subr.mxu0 0.0
    %813 = vmatpush1.msra.mxu0 0.0
    %814 = vmatprep.subr.mxu0 0.0
    %815 = vmatpush1.msra.mxu0 0.0
    %816 = vmatprep.subr.mxu0 0.0
    %817 = vmatpush1.msra.mxu0 0.0
    %818 = vmatprep.subr.mxu0 0.0
    %819 = vmatpush1.msra.mxu0 0.0
    %820 = vmatprep.subr.mxu0 0.0
    %821 = vmatpush1.msra.mxu0 0.0
    %822 = vmatprep.subr.mxu0 0.0
    %823 = vmatpush1.msra.mxu0 0.0
    %824 = vmatprep.subr.mxu0 0.0
    %825 = vmatpush1.msra.mxu0 0.0
    %826 = vmatprep.subr.mxu0 0.0
    %827 = vmatpush1.msra.mxu0 0.0
    %828 = vmatprep.subr.mxu0 0.0
    %829 = vmatpush1.msra.mxu0 0.0
    %830 = vmatprep.subr.mxu0 0.0
    %831 = vmatpush1.msra.mxu0 0.0
    %832 = vmatprep.subr.mxu0 0.0
    %833 = vmatpush1.msra.mxu0 0.0
    %834 = vmatprep.subr.mxu0 0.0
    %835 = vmatpush1.msra.mxu0 0.0
    %836 = vmatprep.subr.mxu0 0.0
    %837 = vmatpush1.msra.mxu0 0.0
    %838 = vmatprep.subr.mxu0 0.0
    %839 = vmatpush1.msra.mxu0 0.0
    %840 = vmatprep.subr.mxu0 0.0
    %841 = vmatpush1.msra.mxu0 0.0
    %842 = vmatprep.subr.mxu0 0.0
    %843 = vmatpush1.msra.mxu0 0.0
    %844 = vmatprep.subr.mxu0 0.0
    %845 = vmatpush1.msra.mxu0 0.0
    %846 = vmatprep.subr.mxu0 0.0
    %847 = vmatpush1.msra.mxu0 0.0
    %848 = vmatprep.subr.mxu0 0.0
    %849 = vmatpush1.msra.mxu0 0.0
    %850 = vmatprep.subr.mxu0 0.0
    %851 = vmatpush1.msra.mxu0 0.0
    %852 = vmatprep.subr.mxu0 0.0
    %853 = vmatpush1.msra.mxu0 0.0
    %854 = vmatprep.subr.mxu0 0.0
    %855 = vmatpush1.msra.mxu0 0.0
    %856 = vmatprep.subr.mxu0 0.0
    %857 = vmatpush1.msra.mxu0 0.0
    %858 = vmatprep.subr.mxu0 0.0
    %859 = vmatpush1.msra.mxu0 0.0
    %860 = vmatprep.subr.mxu0 0.0
    %861 = vmatpush1.msra.mxu0 0.0
    %862 = vmatprep.subr.mxu0 0.0
    %863 = vmatpush1.msra.mxu0 0.0
    %864 = vmatprep.subr.mxu0 0.0
    %865 = vmatpush1.msra.mxu0 0.0
    %866 = vmatprep.mubr.f32.mxu0 0.0
    %867 = vmatmul.mubr.f32.gmra.mrb[0].mxu0 %v660
    %v868 = vpop.f32.mrb[0].mxu0
    %v869 = vadd.f32 0.0, %v868
    %v870 = vpop.f32.mrb[0].mxu0
    %871 = vdwg.mxu0
    %872 = vmatprep.subr.mxu0 0.0
    %873 = vmatpush1.msra.mxu0 %v68
    %874 = vmatprep.subr.mxu0 0.0
    %875 = vmatpush1.msra.mxu0 %v69
    %876 = vmatprep.subr.mxu0 0.0
    %877 = vmatpush1.msra.mxu0 %v70
    %878 = vmatprep.subr.mxu0 0.0
    %879 = vmatpush1.msra.mxu0 %v71
    %880 = vmatprep.subr.mxu0 0.0
    %881 = vmatpush1.msra.mxu0 0.0
    %882 = vmatprep.subr.mxu0 0.0
    %883 = vmatpush1.msra.mxu0 0.0
    %884 = vmatprep.subr.mxu0 0.0
    %885 = vmatpush1.msra.mxu0 0.0
    %886 = vmatprep.subr.mxu0 0.0
    %887 = vmatpush1.msra.mxu0 0.0
    %888 = vmatprep.subr.mxu0 0.0
    %889 = vmatpush1.msra.mxu0 0.0
    %890 = vmatprep.subr.mxu0 0.0
    %891 = vmatpush1.msra.mxu0 0.0
    %892 = vmatprep.subr.mxu0 0.0
    %893 = vmatpush1.msra.mxu0 0.0
    %894 = vmatprep.subr.mxu0 0.0
    %895 = vmatpush1.msra.mxu0 0.0
    %896 = vmatprep.subr.mxu0 0.0
    %897 = vmatpush1.msra.mxu0 0.0
    %898 = vmatprep.subr.mxu0 0.0
    %899 = vmatpush1.msra.mxu0 0.0
    %900 = vmatprep.subr.mxu0 0.0
    %901 = vmatpush1.msra.mxu0 0.0
    %902 = vmatprep.subr.mxu0 0.0
    %903 = vmatpush1.msra.mxu0 0.0
    %904 = vmatprep.subr.mxu0 0.0
    %905 = vmatpush1.msra.mxu0 0.0
    %906 = vmatprep.subr.mxu0 0.0
    %907 = vmatpush1.msra.mxu0 0.0
    %908 = vmatprep.subr.mxu0 0.0
    %909 = vmatpush1.msra.mxu0 0.0
    %910 = vmatprep.subr.mxu0 0.0
    %911 = vmatpush1.msra.mxu0 0.0
    %912 = vmatprep.subr.mxu0 0.0
    %913 = vmatpush1.msra.mxu0 0.0
    %914 = vmatprep.subr.mxu0 0.0
    %915 = vmatpush1.msra.mxu0 0.0
    %916 = vmatprep.subr.mxu0 0.0
    %917 = vmatpush1.msra.mxu0 0.0
    %918 = vmatprep.subr.mxu0 0.0
    %919 = vmatpush1.msra.mxu0 0.0
    %920 = vmatprep.subr.mxu0 0.0
    %921 = vmatpush1.msra.mxu0 0.0
    %922 = vmatprep.subr.mxu0 0.0
    %923 = vmatpush1.msra.mxu0 0.0
    %924 = vmatprep.subr.mxu0 0.0
    %925 = vmatpush1.msra.mxu0 0.0
    %926 = vmatprep.subr.mxu0 0.0
    %927 = vmatpush1.msra.mxu0 0.0
    %928 = vmatprep.subr.mxu0 0.0
    %929 = vmatpush1.msra.mxu0 0.0
    %930 = vmatprep.subr.mxu0 0.0
    %931 = vmatpush1.msra.mxu0 0.0
    %932 = vmatprep.subr.mxu0 0.0
    %933 = vmatpush1.msra.mxu0 0.0
    %934 = vmatprep.subr.mxu0 0.0
    %935 = vmatpush1.msra.mxu0 0.0
    %936 = vmatprep.mubr.f32.mxu0 0.0
    %937 = vmatmul.mubr.f32.gmra.mrb[0].mxu0 %v660
    %v938 = vpop.f32.mrb[0].mxu0
    %v939 = vadd.f32 0.0, %v938
    %v940 = vpop.f32.mrb[0].mxu0
    %941 = vdwg.mxu0
    %v943 = vsel %vm92, %v37, 0
    %945 = vmatprep.subr.mxu0 0.0
    %946 = vmatpush1.msra.mxu0 %v56
    %947 = vmatprep.subr.mxu0 0.0
    %948 = vmatpush1.msra.mxu0 %v57
    %949 = vmatprep.subr.mxu0 0.0
    %950 = vmatpush1.msra.mxu0 %v58
    %951 = vmatprep.subr.mxu0 0.0
    %952 = vmatpush1.msra.mxu0 %v59
    %953 = vmatprep.subr.mxu0 0.0
    %954 = vmatpush1.msra.mxu0 0.0
    %955 = vmatprep.subr.mxu0 0.0
    %956 = vmatpush1.msra.mxu0 0.0
    %957 = vmatprep.subr.mxu0 0.0
    %958 = vmatpush1.msra.mxu0 0.0
    %959 = vmatprep.subr.mxu0 0.0
    %960 = vmatpush1.msra.mxu0 0.0
    %961 = vmatprep.subr.mxu0 0.0
    %962 = vmatpush1.msra.mxu0 0.0
    %963 = vmatprep.subr.mxu0 0.0
    %964 = vmatpush1.msra.mxu0 0.0
    %965 = vmatprep.subr.mxu0 0.0
    %966 = vmatpush1.msra.mxu0 0.0
    %967 = vmatprep.subr.mxu0 0.0
    %968 = vmatpush1.msra.mxu0 0.0
    %969 = vmatprep.subr.mxu0 0.0
    %970 = vmatpush1.msra.mxu0 0.0
    %971 = vmatprep.subr.mxu0 0.0
    %972 = vmatpush1.msra.mxu0 0.0
    %973 = vmatprep.subr.mxu0 0.0
    %974 = vmatpush1.msra.mxu0 0.0
    %975 = vmatprep.subr.mxu0 0.0
    %976 = vmatpush1.msra.mxu0 0.0
    %977 = vmatprep.subr.mxu0 0.0
    %978 = vmatpush1.msra.mxu0 0.0
    %979 = vmatprep.subr.mxu0 0.0
    %980 = vmatpush1.msra.mxu0 0.0
    %981 = vmatprep.subr.mxu0 0.0
    %982 = vmatpush1.msra.mxu0 0.0
    %983 = vmatprep.subr.mxu0 0.0
    %984 = vmatpush1.msra.mxu0 0.0
    %985 = vmatprep.subr.mxu0 0.0
    %986 = vmatpush1.msra.mxu0 0.0
    %987 = vmatprep.subr.mxu0 0.0
    %988 = vmatpush1.msra.mxu0 0.0
    %989 = vmatprep.subr.mxu0 0.0
    %990 = vmatpush1.msra.mxu0 0.0
    %991 = vmatprep.subr.mxu0 0.0
    %992 = vmatpush1.msra.mxu0 0.0
    %993 = vmatprep.subr.mxu0 0.0
    %994 = vmatpush1.msra.mxu0 0.0
    %995 = vmatprep.subr.mxu0 0.0
    %996 = vmatpush1.msra.mxu0 0.0
    %997 = vmatprep.subr.mxu0 0.0
    %998 = vmatpush1.msra.mxu0 0.0
    %999 = vmatprep.subr.mxu0 0.0
    %1000 = vmatpush1.msra.mxu0 0.0
    %1001 = vmatprep.subr.mxu0 0.0
    %1002 = vmatpush1.msra.mxu0 0.0
    %1003 = vmatprep.subr.mxu0 0.0
    %1004 = vmatpush1.msra.mxu0 0.0
    %1005 = vmatprep.subr.mxu0 0.0
    %1006 = vmatpush1.msra.mxu0 0.0
    %1007 = vmatprep.subr.mxu0 0.0
    %1008 = vmatpush1.msra.mxu0 0.0
    %1009 = vmatprep.mubr.f32.mxu0 0.0
    %1010 = vmatmul.mubr.f32.gmra.mrb[0].mxu0 %v943
    %v1011 = vpop.f32.mrb[0].mxu0
    %v1012 = vadd.f32 0.0, %v1011
    %v1013 = vpop.f32.mrb[0].mxu0
    %1014 = vdwg.mxu0
    %1015 = vmatprep.subr.mxu0 0.0
    %1016 = vmatpush1.msra.mxu0 %v60
    %1017 = vmatprep.subr.mxu0 0.0
    %1018 = vmatpush1.msra.mxu0 %v61
    %1019 = vmatprep.subr.mxu0 0.0
    %1020 = vmatpush1.msra.mxu0 %v62
    %1021 = vmatprep.subr.mxu0 0.0
    %1022 = vmatpush1.msra.mxu0 %v63
    %1023 = vmatprep.subr.mxu0 0.0
    %1024 = vmatpush1.msra.mxu0 0.0
    %1025 = vmatprep.subr.mxu0 0.0
    %1026 = vmatpush1.msra.mxu0 0.0
    %1027 = vmatprep.subr.mxu0 0.0
    %1028 = vmatpush1.msra.mxu0 0.0
    %1029 = vmatprep.subr.mxu0 0.0
    %1030 = vmatpush1.msra.mxu0 0.0
    %1031 = vmatprep.subr.mxu0 0.0
    %1032 = vmatpush1.msra.mxu0 0.0
    %1033 = vmatprep.subr.mxu0 0.0
    %1034 = vmatpush1.msra.mxu0 0.0
    %1035 = vmatprep.subr.mxu0 0.0
    %1036 = vmatpush1.msra.mxu0 0.0
    %1037 = vmatprep.subr.mxu0 0.0
    %1038 = vmatpush1.msra.mxu0 0.0
    %1039 = vmatprep.subr.mxu0 0.0
    %1040 = vmatpush1.msra.mxu0 0.0
    %1041 = vmatprep.subr.mxu0 0.0
    %1042 = vmatpush1.msra.mxu0 0.0
    %1043 = vmatprep.subr.mxu0 0.0
    %1044 = vmatpush1.msra.mxu0 0.0
    %1045 = vmatprep.subr.mxu0 0.0
    %1046 = vmatpush1.msra.mxu0 0.0
    %1047 = vmatprep.subr.mxu0 0.0
    %1048 = vmatpush1.msra.mxu0 0.0
    %1049 = vmatprep.subr.mxu0 0.0
    %1050 = vmatpush1.msra.mxu0 0.0
    %1051 = vmatprep.subr.mxu0 0.0
    %1052 = vmatpush1.msra.mxu0 0.0
    %1053 = vmatprep.subr.mxu0 0.0
    %1054 = vmatpush1.msra.mxu0 0.0
    %1055 = vmatprep.subr.mxu0 0.0
    %1056 = vmatpush1.msra.mxu0 0.0
    %1057 = vmatprep.subr.mxu0 0.0
    %1058 = vmatpush1.msra.mxu0 0.0
    %1059 = vmatprep.subr.mxu0 0.0
    %1060 = vmatpush1.msra.mxu0 0.0
    %1061 = vmatprep.subr.mxu0 0.0
    %1062 = vmatpush1.msra.mxu0 0.0
    %1063 = vmatprep.subr.mxu0 0.0
    %1064 = vmatpush1.msra.mxu0 0.0
    %1065 = vmatprep.subr.mxu0 0.0
    %1066 = vmatpush1.msra.mxu0 0.0
    %1067 = vmatprep.subr.mxu0 0.0
    %1068 = vmatpush1.msra.mxu0 0.0
    %1069 = vmatprep.subr.mxu0 0.0
    %1070 = vmatpush1.msra.mxu0 0.0
    %1071 = vmatprep.subr.mxu0 0.0
    %1072 = vmatpush1.msra.mxu0 0.0
    %1073 = vmatprep.subr.mxu0 0.0
    %1074 = vmatpush1.msra.mxu0 0.0
    %1075 = vmatprep.subr.mxu0 0.0
    %1076 = vmatpush1.msra.mxu0 0.0
    %1077 = vmatprep.subr.mxu0 0.0
    %1078 = vmatpush1.msra.mxu0 0.0
    %1079 = vmatprep.mubr.f32.mxu0 0.0
    %1080 = vmatmul.mubr.f32.gmra.mrb[0].mxu0 %v943
    %v1081 = vpop.f32.mrb[0].mxu0
    %v1082 = vadd.f32 0.0, %v1081
    %v1083 = vpop.f32.mrb[0].mxu0
    %1084 = vdwg.mxu0
    %1085 = vmatprep.subr.mxu0 0.0
    %1086 = vmatpush1.msra.mxu0 %v64
    %1087 = vmatprep.subr.mxu0 0.0
    %1088 = vmatpush1.msra.mxu0 %v65
    %1089 = vmatprep.subr.mxu0 0.0
    %1090 = vmatpush1.msra.mxu0 %v66
    %1091 = vmatprep.subr.mxu0 0.0
    %1092 = vmatpush1.msra.mxu0 %v67
    %1093 = vmatprep.subr.mxu0 0.0
    %1094 = vmatpush1.msra.mxu0 0.0
    %1095 = vmatprep.subr.mxu0 0.0
    %1096 = vmatpush1.msra.mxu0 0.0
    %1097 = vmatprep.subr.mxu0 0.0
    %1098 = vmatpush1.msra.mxu0 0.0
    %1099 = vmatprep.subr.mxu0 0.0
    %1100 = vmatpush1.msra.mxu0 0.0
    %1101 = vmatprep.subr.mxu0 0.0
    %1102 = vmatpush1.msra.mxu0 0.0
    %1103 = vmatprep.subr.mxu0 0.0
    %1104 = vmatpush1.msra.mxu0 0.0
    %1105 = vmatprep.subr.mxu0 0.0
    %1106 = vmatpush1.msra.mxu0 0.0
    %1107 = vmatprep.subr.mxu0 0.0
    %1108 = vmatpush1.msra.mxu0 0.0
    %1109 = vmatprep.subr.mxu0 0.0
    %1110 = vmatpush1.msra.mxu0 0.0
    %1111 = vmatprep.subr.mxu0 0.0
    %1112 = vmatpush1.msra.mxu0 0.0
    %1113 = vmatprep.subr.mxu0 0.0
    %1114 = vmatpush1.msra.mxu0 0.0
    %1115 = vmatprep.subr.mxu0 0.0
    %1116 = vmatpush1.msra.mxu0 0.0
    %1117 = vmatprep.subr.mxu0 0.0
    %1118 = vmatpush1.msra.mxu0 0.0
    %1119 = vmatprep.subr.mxu0 0.0
    %1120 = vmatpush1.msra.mxu0 0.0
    %1121 = vmatprep.subr.mxu0 0.0
    %1122 = vmatpush1.msra.mxu0 0.0
    %1123 = vmatprep.subr.mxu0 0.0
    %1124 = vmatpush1.msra.mxu0 0.0
    %1125 = vmatprep.subr.mxu0 0.0
    %1126 = vmatpush1.msra.mxu0 0.0
    %1127 = vmatprep.subr.mxu0 0.0
    %1128 = vmatpush1.msra.mxu0 0.0
    %1129 = vmatprep.subr.mxu0 0.0
    %1130 = vmatpush1.msra.mxu0 0.0
    %1131 = vmatprep.subr.mxu0 0.0
    %1132 = vmatpush1.msra.mxu0 0.0
    %1133 = vmatprep.subr.mxu0 0.0
    %1134 = vmatpush1.msra.mxu0 0.0
    %1135 = vmatprep.subr.mxu0 0.0
    %1136 = vmatpush1.msra.mxu0 0.0
    %1137 = vmatprep.subr.mxu0 0.0
    %1138 = vmatpush1.msra.mxu0 0.0
    %1139 = vmatprep.subr.mxu0 0.0
    %1140 = vmatpush1.msra.mxu0 0.0
    %1141 = vmatprep.subr.mxu0 0.0
    %1142 = vmatpush1.msra.mxu0 0.0
    %1143 = vmatprep.subr.mxu0 0.0
    %1144 = vmatpush1.msra.mxu0 0.0
    %1145 = vmatprep.subr.mxu0 0.0
    %1146 = vmatpush1.msra.mxu0 0.0
    %1147 = vmatprep.subr.mxu0 0.0
    %1148 = vmatpush1.msra.mxu0 0.0
    %1149 = vmatprep.mubr.f32.mxu0 0.0
    %1150 = vmatmul.mubr.f32.gmra.mrb[0].mxu0 %v943
    %v1151 = vpop.f32.mrb[0].mxu0
    %v1152 = vadd.f32 0.0, %v1151
    %v1153 = vpop.f32.mrb[0].mxu0
    %1154 = vdwg.mxu0
    %1155 = vmatprep.subr.mxu0 0.0
    %1156 = vmatpush1.msra.mxu0 %v68
    %1157 = vmatprep.subr.mxu0 0.0
    %1158 = vmatpush1.msra.mxu0 %v69
    %1159 = vmatprep.subr.mxu0 0.0
    %1160 = vmatpush1.msra.mxu0 %v70
    %1161 = vmatprep.subr.mxu0 0.0
    %1162 = vmatpush1.msra.mxu0 %v71
    %1163 = vmatprep.subr.mxu0 0.0
    %1164 = vmatpush1.msra.mxu0 0.0
    %1165 = vmatprep.subr.mxu0 0.0
    %1166 = vmatpush1.msra.mxu0 0.0
    %1167 = vmatprep.subr.mxu0 0.0
    %1168 = vmatpush1.msra.mxu0 0.0
    %1169 = vmatprep.subr.mxu0 0.0
    %1170 = vmatpush1.msra.mxu0 0.0
    %1171 = vmatprep.subr.mxu0 0.0
    %1172 = vmatpush1.msra.mxu0 0.0
    %1173 = vmatprep.subr.mxu0 0.0
    %1174 = vmatpush1.msra.mxu0 0.0
    %1175 = vmatprep.subr.mxu0 0.0
    %1176 = vmatpush1.msra.mxu0 0.0
    %1177 = vmatprep.subr.mxu0 0.0
    %1178 = vmatpush1.msra.mxu0 0.0
    %1179 = vmatprep.subr.mxu0 0.0
    %1180 = vmatpush1.msra.mxu0 0.0
    %1181 = vmatprep.subr.mxu0 0.0
    %1182 = vmatpush1.msra.mxu0 0.0
    %1183 = vmatprep.subr.mxu0 0.0
    %1184 = vmatpush1.msra.mxu0 0.0
    %1185 = vmatprep.subr.mxu0 0.0
    %1186 = vmatpush1.msra.mxu0 0.0
    %1187 = vmatprep.subr.mxu0 0.0
    %1188 = vmatpush1.msra.mxu0 0.0
    %1189 = vmatprep.subr.mxu0 0.0
    %1190 = vmatpush1.msra.mxu0 0.0
    %1191 = vmatprep.subr.mxu0 0.0
    %1192 = vmatpush1.msra.mxu0 0.0
    %1193 = vmatprep.subr.mxu0 0.0
    %1194 = vmatpush1.msra.mxu0 0.0
    %1195 = vmatprep.subr.mxu0 0.0
    %1196 = vmatpush1.msra.mxu0 0.0
    %1197 = vmatprep.subr.mxu0 0.0
    %1198 = vmatpush1.msra.mxu0 0.0
    %1199 = vmatprep.subr.mxu0 0.0
    %1200 = vmatpush1.msra.mxu0 0.0
    %1201 = vmatprep.subr.mxu0 0.0
    %1202 = vmatpush1.msra.mxu0 0.0
    %1203 = vmatprep.subr.mxu0 0.0
    %1204 = vmatpush1.msra.mxu0 0.0
    %1205 = vmatprep.subr.mxu0 0.0
    %1206 = vmatpush1.msra.mxu0 0.0
    %1207 = vmatprep.subr.mxu0 0.0
    %1208 = vmatpush1.msra.mxu0 0.0
    %1209 = vmatprep.subr.mxu0 0.0
    %1210 = vmatpush1.msra.mxu0 0.0
    %1211 = vmatprep.subr.mxu0 0.0
    %1212 = vmatpush1.msra.mxu0 0.0
    %1213 = vmatprep.subr.mxu0 0.0
    %1214 = vmatpush1.msra.mxu0 0.0
    %1215 = vmatprep.subr.mxu0 0.0
    %1216 = vmatpush1.msra.mxu0 0.0
    %1217 = vmatprep.subr.mxu0 0.0
    %1218 = vmatpush1.msra.mxu0 0.0
    %1219 = vmatprep.mubr.f32.mxu0 0.0
    %1220 = vmatmul.mubr.f32.gmra.mrb[0].mxu0 %v943
    %v1221 = vpop.f32.mrb[0].mxu0
    %v1222 = vadd.f32 0.0, %v1221
    %v1223 = vpop.f32.mrb[0].mxu0
    %1224 = vdwg.mxu0
    %v1226 = vsel %vm92, %v38, 0
    %1228 = vmatprep.subr.mxu0 0.0
    %1229 = vmatpush1.msra.mxu0 %v72
    %1230 = vmatprep.subr.mxu0 0.0
    %1231 = vmatpush1.msra.mxu0 %v73
    %1232 = vmatprep.subr.mxu0 0.0
    %1233 = vmatpush1.msra.mxu0 %v74
    %1234 = vmatprep.subr.mxu0 0.0
    %1235 = vmatpush1.msra.mxu0 %v75
    %1236 = vmatprep.subr.mxu0 0.0
    %1237 = vmatpush1.msra.mxu0 0.0
    %1238 = vmatprep.subr.mxu0 0.0
    %1239 = vmatpush1.msra.mxu0 0.0
    %1240 = vmatprep.subr.mxu0 0.0
    %1241 = vmatpush1.msra.mxu0 0.0
    %1242 = vmatprep.subr.mxu0 0.0
    %1243 = vmatpush1.msra.mxu0 0.0
    %1244 = vmatprep.subr.mxu0 0.0
    %1245 = vmatpush1.msra.mxu0 0.0
    %1246 = vmatprep.subr.mxu0 0.0
    %1247 = vmatpush1.msra.mxu0 0.0
    %1248 = vmatprep.subr.mxu0 0.0
    %1249 = vmatpush1.msra.mxu0 0.0
    %1250 = vmatprep.subr.mxu0 0.0
    %1251 = vmatpush1.msra.mxu0 0.0
    %1252 = vmatprep.subr.mxu0 0.0
    %1253 = vmatpush1.msra.mxu0 0.0
    %1254 = vmatprep.subr.mxu0 0.0
    %1255 = vmatpush1.msra.mxu0 0.0
    %1256 = vmatprep.subr.mxu0 0.0
    %1257 = vmatpush1.msra.mxu0 0.0
    %1258 = vmatprep.subr.mxu0 0.0
    %1259 = vmatpush1.msra.mxu0 0.0
    %1260 = vmatprep.subr.mxu0 0.0
    %1261 = vmatpush1.msra.mxu0 0.0
    %1262 = vmatprep.subr.mxu0 0.0
    %1263 = vmatpush1.msra.mxu0 0.0
    %1264 = vmatprep.subr.mxu0 0.0
    %1265 = vmatpush1.msra.mxu0 0.0
    %1266 = vmatprep.subr.mxu0 0.0
    %1267 = vmatpush1.msra.mxu0 0.0
    %1268 = vmatprep.subr.mxu0 0.0
    %1269 = vmatpush1.msra.mxu0 0.0
    %1270 = vmatprep.subr.mxu0 0.0
    %1271 = vmatpush1.msra.mxu0 0.0
    %1272 = vmatprep.subr.mxu0 0.0
    %1273 = vmatpush1.msra.mxu0 0.0
    %1274 = vmatprep.subr.mxu0 0.0
    %1275 = vmatpush1.msra.mxu0 0.0
    %1276 = vmatprep.subr.mxu0 0.0
    %1277 = vmatpush1.msra.mxu0 0.0
    %1278 = vmatprep.subr.mxu0 0.0
    %1279 = vmatpush1.msra.mxu0 0.0
    %1280 = vmatprep.subr.mxu0 0.0
    %1281 = vmatpush1.msra.mxu0 0.0
    %1282 = vmatprep.subr.mxu0 0.0
    %1283 = vmatpush1.msra.mxu0 0.0
    %1284 = vmatprep.subr.mxu0 0.0
    %1285 = vmatpush1.msra.mxu0 0.0
    %1286 = vmatprep.subr.mxu0 0.0
    %1287 = vmatpush1.msra.mxu0 0.0
    %1288 = vmatprep.subr.mxu0 0.0
    %1289 = vmatpush1.msra.mxu0 0.0
    %1290 = vmatprep.subr.mxu0 0.0
    %1291 = vmatpush1.msra.mxu0 0.0
    %1292 = vmatprep.mubr.f32.mxu0 0.0
    %1293 = vmatmul.mubr.f32.gmra.mrb[0].mxu0 %v1226
    %v1294 = vpop.f32.mrb[0].mxu0
    %v1295 = vadd.f32 0.0, %v1294
    %v1296 = vpop.f32.mrb[0].mxu0
    %1297 = vdwg.mxu0
    %1298 = vmatprep.subr.mxu0 0.0
    %1299 = vmatpush1.msra.mxu0 %v76
    %1300 = vmatprep.subr.mxu0 0.0
    %1301 = vmatpush1.msra.mxu0 %v77
    %1302 = vmatprep.subr.mxu0 0.0
    %1303 = vmatpush1.msra.mxu0 %v78
    %1304 = vmatprep.subr.mxu0 0.0
    %1305 = vmatpush1.msra.mxu0 %v79
    %1306 = vmatprep.subr.mxu0 0.0
    %1307 = vmatpush1.msra.mxu0 0.0
    %1308 = vmatprep.subr.mxu0 0.0
    %1309 = vmatpush1.msra.mxu0 0.0
    %1310 = vmatprep.subr.mxu0 0.0
    %1311 = vmatpush1.msra.mxu0 0.0
    %1312 = vmatprep.subr.mxu0 0.0
    %1313 = vmatpush1.msra.mxu0 0.0
    %1314 = vmatprep.subr.mxu0 0.0
    %1315 = vmatpush1.msra.mxu0 0.0
    %1316 = vmatprep.subr.mxu0 0.0
    %1317 = vmatpush1.msra.mxu0 0.0
    %1318 = vmatprep.subr.mxu0 0.0
    %1319 = vmatpush1.msra.mxu0 0.0
    %1320 = vmatprep.subr.mxu0 0.0
    %1321 = vmatpush1.msra.mxu0 0.0
    %1322 = vmatprep.subr.mxu0 0.0
    %1323 = vmatpush1.msra.mxu0 0.0
    %1324 = vmatprep.subr.mxu0 0.0
    %1325 = vmatpush1.msra.mxu0 0.0
    %1326 = vmatprep.subr.mxu0 0.0
    %1327 = vmatpush1.msra.mxu0 0.0
    %1328 = vmatprep.subr.mxu0 0.0
    %1329 = vmatpush1.msra.mxu0 0.0
    %1330 = vmatprep.subr.mxu0 0.0
    %1331 = vmatpush1.msra.mxu0 0.0
    %1332 = vmatprep.subr.mxu0 0.0
    %1333 = vmatpush1.msra.mxu0 0.0
    %1334 = vmatprep.subr.mxu0 0.0
    %1335 = vmatpush1.msra.mxu0 0.0
    %1336 = vmatprep.subr.mxu0 0.0
    %1337 = vmatpush1.msra.mxu0 0.0
    %1338 = vmatprep.subr.mxu0 0.0
    %1339 = vmatpush1.msra.mxu0 0.0
    %1340 = vmatprep.subr.mxu0 0.0
    %1341 = vmatpush1.msra.mxu0 0.0
    %1342 = vmatprep.subr.mxu0 0.0
    %1343 = vmatpush1.msra.mxu0 0.0
    %1344 = vmatprep.subr.mxu0 0.0
    %1345 = vmatpush1.msra.mxu0 0.0
    %1346 = vmatprep.subr.mxu0 0.0
    %1347 = vmatpush1.msra.mxu0 0.0
    %1348 = vmatprep.subr.mxu0 0.0
    %1349 = vmatpush1.msra.mxu0 0.0
    %1350 = vmatprep.subr.mxu0 0.0
    %1351 = vmatpush1.msra.mxu0 0.0
    %1352 = vmatprep.subr.mxu0 0.0
    %1353 = vmatpush1.msra.mxu0 0.0
    %1354 = vmatprep.subr.mxu0 0.0
    %1355 = vmatpush1.msra.mxu0 0.0
    %1356 = vmatprep.subr.mxu0 0.0
    %1357 = vmatpush1.msra.mxu0 0.0
    %1358 = vmatprep.subr.mxu0 0.0
    %1359 = vmatpush1.msra.mxu0 0.0
    %1360 = vmatprep.subr.mxu0 0.0
    %1361 = vmatpush1.msra.mxu0 0.0
    %1362 = vmatprep.mubr.f32.mxu0 0.0
    %1363 = vmatmul.mubr.f32.gmra.mrb[0].mxu0 %v1226
    %v1364 = vpop.f32.mrb[0].mxu0
    %v1365 = vadd.f32 0.0, %v1364
    %v1366 = vpop.f32.mrb[0].mxu0
    %1367 = vdwg.mxu0
    %1368 = vmatprep.subr.mxu0 0.0
    %1369 = vmatpush1.msra.mxu0 %v80
    %1370 = vmatprep.subr.mxu0 0.0
    %1371 = vmatpush1.msra.mxu0 %v81
    %1372 = vmatprep.subr.mxu0 0.0
    %1373 = vmatpush1.msra.mxu0 %v82
    %1374 = vmatprep.subr.mxu0 0.0
    %1375 = vmatpush1.msra.mxu0 %v83
    %1376 = vmatprep.subr.mxu0 0.0
    %1377 = vmatpush1.msra.mxu0 0.0
    %1378 = vmatprep.subr.mxu0 0.0
    %1379 = vmatpush1.msra.mxu0 0.0
    %1380 = vmatprep.subr.mxu0 0.0
    %1381 = vmatpush1.msra.mxu0 0.0
    %1382 = vmatprep.subr.mxu0 0.0
    %1383 = vmatpush1.msra.mxu0 0.0
    %1384 = vmatprep.subr.mxu0 0.0
    %1385 = vmatpush1.msra.mxu0 0.0
    %1386 = vmatprep.subr.mxu0 0.0
    %1387 = vmatpush1.msra.mxu0 0.0
    %1388 = vmatprep.subr.mxu0 0.0
    %1389 = vmatpush1.msra.mxu0 0.0
    %1390 = vmatprep.subr.mxu0 0.0
    %1391 = vmatpush1.msra.mxu0 0.0
    %1392 = vmatprep.subr.mxu0 0.0
    %1393 = vmatpush1.msra.mxu0 0.0
    %1394 = vmatprep.subr.mxu0 0.0
    %1395 = vmatpush1.msra.mxu0 0.0
    %1396 = vmatprep.subr.mxu0 0.0
    %1397 = vmatpush1.msra.mxu0 0.0
    %1398 = vmatprep.subr.mxu0 0.0
    %1399 = vmatpush1.msra.mxu0 0.0
    %1400 = vmatprep.subr.mxu0 0.0
    %1401 = vmatpush1.msra.mxu0 0.0
    %1402 = vmatprep.subr.mxu0 0.0
    %1403 = vmatpush1.msra.mxu0 0.0
    %1404 = vmatprep.subr.mxu0 0.0
    %1405 = vmatpush1.msra.mxu0 0.0
    %1406 = vmatprep.subr.mxu0 0.0
    %1407 = vmatpush1.msra.mxu0 0.0
    %1408 = vmatprep.subr.mxu0 0.0
    %1409 = vmatpush1.msra.mxu0 0.0
    %1410 = vmatprep.subr.mxu0 0.0
    %1411 = vmatpush1.msra.mxu0 0.0
    %1412 = vmatprep.subr.mxu0 0.0
    %1413 = vmatpush1.msra.mxu0 0.0
    %1414 = vmatprep.subr.mxu0 0.0
    %1415 = vmatpush1.msra.mxu0 0.0
    %1416 = vmatprep.subr.mxu0 0.0
    %1417 = vmatpush1.msra.mxu0 0.0
    %1418 = vmatprep.subr.mxu0 0.0
    %1419 = vmatpush1.msra.mxu0 0.0
    %1420 = vmatprep.subr.mxu0 0.0
    %1421 = vmatpush1.msra.mxu0 0.0
    %1422 = vmatprep.subr.mxu0 0.0
    %1423 = vmatpush1.msra.mxu0 0.0
    %1424 = vmatprep.subr.mxu0 0.0
    %1425 = vmatpush1.msra.mxu0 0.0
    %1426 = vmatprep.subr.mxu0 0.0
    %1427 = vmatpush1.msra.mxu0 0.0
    %1428 = vmatprep.subr.mxu0 0.0
    %1429 = vmatpush1.msra.mxu0 0.0
    %1430 = vmatprep.subr.mxu0 0.0
    %1431 = vmatpush1.msra.mxu0 0.0
    %1432 = vmatprep.mubr.f32.mxu0 0.0
    %1433 = vmatmul.mubr.f32.gmra.mrb[0].mxu0 %v1226
    %v1434 = vpop.f32.mrb[0].mxu0
    %v1435 = vadd.f32 0.0, %v1434
    %v1436 = vpop.f32.mrb[0].mxu0
    %1437 = vdwg.mxu0
    %1438 = vmatprep.subr.mxu0 0.0
    %1439 = vmatpush1.msra.mxu0 %v84
    %1440 = vmatprep.subr.mxu0 0.0
    %1441 = vmatpush1.msra.mxu0 %v85
    %1442 = vmatprep.subr.mxu0 0.0
    %1443 = vmatpush1.msra.mxu0 %v86
    %1444 = vmatprep.subr.mxu0 0.0
    %1445 = vmatpush1.msra.mxu0 %v87
    %1446 = vmatprep.subr.mxu0 0.0
    %1447 = vmatpush1.msra.mxu0 0.0
    %1448 = vmatprep.subr.mxu0 0.0
    %1449 = vmatpush1.msra.mxu0 0.0
    %1450 = vmatprep.subr.mxu0 0.0
    %1451 = vmatpush1.msra.mxu0 0.0
    %1452 = vmatprep.subr.mxu0 0.0
    %1453 = vmatpush1.msra.mxu0 0.0
    %1454 = vmatprep.subr.mxu0 0.0
    %1455 = vmatpush1.msra.mxu0 0.0
    %1456 = vmatprep.subr.mxu0 0.0
    %1457 = vmatpush1.msra.mxu0 0.0
    %1458 = vmatprep.subr.mxu0 0.0
    %1459 = vmatpush1.msra.mxu0 0.0
    %1460 = vmatprep.subr.mxu0 0.0
    %1461 = vmatpush1.msra.mxu0 0.0
    %1462 = vmatprep.subr.mxu0 0.0
    %1463 = vmatpush1.msra.mxu0 0.0
    %1464 = vmatprep.subr.mxu0 0.0
    %1465 = vmatpush1.msra.mxu0 0.0
    %1466 = vmatprep.subr.mxu0 0.0
    %1467 = vmatpush1.msra.mxu0 0.0
    %1468 = vmatprep.subr.mxu0 0.0
    %1469 = vmatpush1.msra.mxu0 0.0
    %1470 = vmatprep.subr.mxu0 0.0
    %1471 = vmatpush1.msra.mxu0 0.0
    %1472 = vmatprep.subr.mxu0 0.0
    %1473 = vmatpush1.msra.mxu0 0.0
    %1474 = vmatprep.subr.mxu0 0.0
    %1475 = vmatpush1.msra.mxu0 0.0
    %1476 = vmatprep.subr.mxu0 0.0
    %1477 = vmatpush1.msra.mxu0 0.0
    %1478 = vmatprep.subr.mxu0 0.0
    %1479 = vmatpush1.msra.mxu0 0.0
    %1480 = vmatprep.subr.mxu0 0.0
    %1481 = vmatpush1.msra.mxu0 0.0
    %1482 = vmatprep.subr.mxu0 0.0
    %1483 = vmatpush1.msra.mxu0 0.0
    %1484 = vmatprep.subr.mxu0 0.0
    %1485 = vmatpush1.msra.mxu0 0.0
    %1486 = vmatprep.subr.mxu0 0.0
    %1487 = vmatpush1.msra.mxu0 0.0
    %1488 = vmatprep.subr.mxu0 0.0
    %1489 = vmatpush1.msra.mxu0 0.0
    %1490 = vmatprep.subr.mxu0 0.0
    %1491 = vmatpush1.msra.mxu0 0.0
    %1492 = vmatprep.subr.mxu0 0.0
    %1493 = vmatpush1.msra.mxu0 0.0
    %1494 = vmatprep.subr.mxu0 0.0
    %1495 = vmatpush1.msra.mxu0 0.0
    %1496 = vmatprep.subr.mxu0 0.0
    %1497 = vmatpush1.msra.mxu0 0.0
    %1498 = vmatprep.subr.mxu0 0.0
    %1499 = vmatpush1.msra.mxu0 0.0
    %1500 = vmatprep.subr.mxu0 0.0
    %1501 = vmatpush1.msra.mxu0 0.0
    %1502 = vmatprep.mubr.f32.mxu0 0.0
    %1503 = vmatmul.mubr.f32.gmra.mrb[0].mxu0 %v1226
    %v1504 = vpop.f32.mrb[0].mxu0
    %v1505 = vadd.f32 0.0, %v1504
    %v1506 = vpop.f32.mrb[0].mxu0
    %1507 = vdwg.mxu0
    %v1509 = vsel %vm92, %v39, 0
    %1511 = vmatprep.subr.mxu0 0.0
    %1512 = vmatpush1.msra.mxu0 %v72
    %1513 = vmatprep.subr.mxu0 0.0
    %1514 = vmatpush1.msra.mxu0 %v73
    %1515 = vmatprep.subr.mxu0 0.0
    %1516 = vmatpush1.msra.mxu0 %v74
    %1517 = vmatprep.subr.mxu0 0.0
    %1518 = vmatpush1.msra.mxu0 %v75
    %1519 = vmatprep.subr.mxu0 0.0
    %1520 = vmatpush1.msra.mxu0 0.0
    %1521 = vmatprep.subr.mxu0 0.0
    %1522 = vmatpush1.msra.mxu0 0.0
    %1523 = vmatprep.subr.mxu0 0.0
    %1524 = vmatpush1.msra.mxu0 0.0
    %1525 = vmatprep.subr.mxu0 0.0
    %1526 = vmatpush1.msra.mxu0 0.0
    %1527 = vmatprep.subr.mxu0 0.0
    %1528 = vmatpush1.msra.mxu0 0.0
    %1529 = vmatprep.subr.mxu0 0.0
    %1530 = vmatpush1.msra.mxu0 0.0
    %1531 = vmatprep.subr.mxu0 0.0
    %1532 = vmatpush1.msra.mxu0 0.0
    %1533 = vmatprep.subr.mxu0 0.0
    %1534 = vmatpush1.msra.mxu0 0.0
    %1535 = vmatprep.subr.mxu0 0.0
    %1536 = vmatpush1.msra.mxu0 0.0
    %1537 = vmatprep.subr.mxu0 0.0
    %1538 = vmatpush1.msra.mxu0 0.0
    %1539 = vmatprep.subr.mxu0 0.0
    %1540 = vmatpush1.msra.mxu0 0.0
    %1541 = vmatprep.subr.mxu0 0.0
    %1542 = vmatpush1.msra.mxu0 0.0
    %1543 = vmatprep.subr.mxu0 0.0
    %1544 = vmatpush1.msra.mxu0 0.0
    %1545 = vmatprep.subr.mxu0 0.0
    %1546 = vmatpush1.msra.mxu0 0.0
    %1547 = vmatprep.subr.mxu0 0.0
    %1548 = vmatpush1.msra.mxu0 0.0
    %1549 = vmatprep.subr.mxu0 0.0
    %1550 = vmatpush1.msra.mxu0 0.0
    %1551 = vmatprep.subr.mxu0 0.0
    %1552 = vmatpush1.msra.mxu0 0.0
    %1553 = vmatprep.subr.mxu0 0.0
    %1554 = vmatpush1.msra.mxu0 0.0
    %1555 = vmatprep.subr.mxu0 0.0
    %1556 = vmatpush1.msra.mxu0 0.0
    %1557 = vmatprep.subr.mxu0 0.0
    %1558 = vmatpush1.msra.mxu0 0.0
    %1559 = vmatprep.subr.mxu0 0.0
    %1560 = vmatpush1.msra.mxu0 0.0
    %1561 = vmatprep.subr.mxu0 0.0
    %1562 = vmatpush1.msra.mxu0 0.0
    %1563 = vmatprep.subr.mxu0 0.0
    %1564 = vmatpush1.msra.mxu0 0.0
    %1565 = vmatprep.subr.mxu0 0.0
    %1566 = vmatpush1.msra.mxu0 0.0
    %1567 = vmatprep.subr.mxu0 0.0
    %1568 = vmatpush1.msra.mxu0 0.0
    %1569 = vmatprep.subr.mxu0 0.0
    %1570 = vmatpush1.msra.mxu0 0.0
    %1571 = vmatprep.subr.mxu0 0.0
    %1572 = vmatpush1.msra.mxu0 0.0
    %1573 = vmatprep.subr.mxu0 0.0
    %1574 = vmatpush1.msra.mxu0 0.0
    %1575 = vmatprep.mubr.f32.mxu0 0.0
    %1576 = vmatmul.mubr.f32.gmra.mrb[0].mxu0 %v1509
    %v1577 = vpop.f32.mrb[0].mxu0
    %v1578 = vadd.f32 0.0, %v1577
    %v1579 = vpop.f32.mrb[0].mxu0
    %1580 = vdwg.mxu0
    %1581 = vmatprep.subr.mxu0 0.0
    %1582 = vmatpush1.msra.mxu0 %v76
    %1583 = vmatprep.subr.mxu0 0.0
    %1584 = vmatpush1.msra.mxu0 %v77
    %1585 = vmatprep.subr.mxu0 0.0
    %1586 = vmatpush1.msra.mxu0 %v78
    %1587 = vmatprep.subr.mxu0 0.0
    %1588 = vmatpush1.msra.mxu0 %v79
    %1589 = vmatprep.subr.mxu0 0.0
    %1590 = vmatpush1.msra.mxu0 0.0
    %1591 = vmatprep.subr.mxu0 0.0
    %1592 = vmatpush1.msra.mxu0 0.0
    %1593 = vmatprep.subr.mxu0 0.0
    %1594 = vmatpush1.msra.mxu0 0.0
    %1595 = vmatprep.subr.mxu0 0.0
    %1596 = vmatpush1.msra.mxu0 0.0
    %1597 = vmatprep.subr.mxu0 0.0
    %1598 = vmatpush1.msra.mxu0 0.0
    %1599 = vmatprep.subr.mxu0 0.0
    %1600 = vmatpush1.msra.mxu0 0.0
    %1601 = vmatprep.subr.mxu0 0.0
    %1602 = vmatpush1.msra.mxu0 0.0
    %1603 = vmatprep.subr.mxu0 0.0
    %1604 = vmatpush1.msra.mxu0 0.0
    %1605 = vmatprep.subr.mxu0 0.0
    %1606 = vmatpush1.msra.mxu0 0.0
    %1607 = vmatprep.subr.mxu0 0.0
    %1608 = vmatpush1.msra.mxu0 0.0
    %1609 = vmatprep.subr.mxu0 0.0
    %1610 = vmatpush1.msra.mxu0 0.0
    %1611 = vmatprep.subr.mxu0 0.0
    %1612 = vmatpush1.msra.mxu0 0.0
    %1613 = vmatprep.subr.mxu0 0.0
    %1614 = vmatpush1.msra.mxu0 0.0
    %1615 = vmatprep.subr.mxu0 0.0
    %1616 = vmatpush1.msra.mxu0 0.0
    %1617 = vmatprep.subr.mxu0 0.0
    %1618 = vmatpush1.msra.mxu0 0.0
    %1619 = vmatprep.subr.mxu0 0.0
    %1620 = vmatpush1.msra.mxu0 0.0
    %1621 = vmatprep.subr.mxu0 0.0
    %1622 = vmatpush1.msra.mxu0 0.0
    %1623 = vmatprep.subr.mxu0 0.0
    %1624 = vmatpush1.msra.mxu0 0.0
    %1625 = vmatprep.subr.mxu0 0.0
    %1626 = vmatpush1.msra.mxu0 0.0
    %1627 = vmatprep.subr.mxu0 0.0
    %1628 = vmatpush1.msra.mxu0 0.0
    %1629 = vmatprep.subr.mxu0 0.0
    %1630 = vmatpush1.msra.mxu0 0.0
    %1631 = vmatprep.subr.mxu0 0.0
    %1632 = vmatpush1.msra.mxu0 0.0
    %1633 = vmatprep.subr.mxu0 0.0
    %1634 = vmatpush1.msra.mxu0 0.0
    %1635 = vmatprep.subr.mxu0 0.0
    %1636 = vmatpush1.msra.mxu0 0.0
    %1637 = vmatprep.subr.mxu0 0.0
    %1638 = vmatpush1.msra.mxu0 0.0
    %1639 = vmatprep.subr.mxu0 0.0
    %1640 = vmatpush1.msra.mxu0 0.0
    %1641 = vmatprep.subr.mxu0 0.0
    %1642 = vmatpush1.msra.mxu0 0.0
    %1643 = vmatprep.subr.mxu0 0.0
    %1644 = vmatpush1.msra.mxu0 0.0
    %1645 = vmatprep.mubr.f32.mxu0 0.0
    %1646 = vmatmul.mubr.f32.gmra.mrb[0].mxu0 %v1509
    %v1647 = vpop.f32.mrb[0].mxu0
    %v1648 = vadd.f32 0.0, %v1647
    %v1649 = vpop.f32.mrb[0].mxu0
    %1650 = vdwg.mxu0
    %1651 = vmatprep.subr.mxu0 0.0
    %1652 = vmatpush1.msra.mxu0 %v80
    %1653 = vmatprep.subr.mxu0 0.0
    %1654 = vmatpush1.msra.mxu0 %v81
    %1655 = vmatprep.subr.mxu0 0.0
    %1656 = vmatpush1.msra.mxu0 %v82
    %1657 = vmatprep.subr.mxu0 0.0
    %1658 = vmatpush1.msra.mxu0 %v83
    %1659 = vmatprep.subr.mxu0 0.0
    %1660 = vmatpush1.msra.mxu0 0.0
    %1661 = vmatprep.subr.mxu0 0.0
    %1662 = vmatpush1.msra.mxu0 0.0
    %1663 = vmatprep.subr.mxu0 0.0
    %1664 = vmatpush1.msra.mxu0 0.0
    %1665 = vmatprep.subr.mxu0 0.0
    %1666 = vmatpush1.msra.mxu0 0.0
    %1667 = vmatprep.subr.mxu0 0.0
    %1668 = vmatpush1.msra.mxu0 0.0
    %1669 = vmatprep.subr.mxu0 0.0
    %1670 = vmatpush1.msra.mxu0 0.0
    %1671 = vmatprep.subr.mxu0 0.0
    %1672 = vmatpush1.msra.mxu0 0.0
    %1673 = vmatprep.subr.mxu0 0.0
    %1674 = vmatpush1.msra.mxu0 0.0
    %1675 = vmatprep.subr.mxu0 0.0
    %1676 = vmatpush1.msra.mxu0 0.0
    %1677 = vmatprep.subr.mxu0 0.0
    %1678 = vmatpush1.msra.mxu0 0.0
    %1679 = vmatprep.subr.mxu0 0.0
    %1680 = vmatpush1.msra.mxu0 0.0
    %1681 = vmatprep.subr.mxu0 0.0
    %1682 = vmatpush1.msra.mxu0 0.0
    %1683 = vmatprep.subr.mxu0 0.0
    %1684 = vmatpush1.msra.mxu0 0.0
    %1685 = vmatprep.subr.mxu0 0.0
    %1686 = vmatpush1.msra.mxu0 0.0
    %1687 = vmatprep.subr.mxu0 0.0
    %1688 = vmatpush1.msra.mxu0 0.0
    %1689 = vmatprep.subr.mxu0 0.0
    %1690 = vmatpush1.msra.mxu0 0.0
    %1691 = vmatprep.subr.mxu0 0.0
    %1692 = vmatpush1.msra.mxu0 0.0
    %1693 = vmatprep.subr.mxu0 0.0
    %1694 = vmatpush1.msra.mxu0 0.0
    %1695 = vmatprep.subr.mxu0 0.0
    %1696 = vmatpush1.msra.mxu0 0.0
    %1697 = vmatprep.subr.mxu0 0.0
    %1698 = vmatpush1.msra.mxu0 0.0
    %1699 = vmatprep.subr.mxu0 0.0
    %1700 = vmatpush1.msra.mxu0 0.0
    %1701 = vmatprep.subr.mxu0 0.0
    %1702 = vmatpush1.msra.mxu0 0.0
    %1703 = vmatprep.subr.mxu0 0.0
    %1704 = vmatpush1.msra.mxu0 0.0
    %1705 = vmatprep.subr.mxu0 0.0
    %1706 = vmatpush1.msra.mxu0 0.0
    %1707 = vmatprep.subr.mxu0 0.0
    %1708 = vmatpush1.msra.mxu0 0.0
    %1709 = vmatprep.subr.mxu0 0.0
    %1710 = vmatpush1.msra.mxu0 0.0
    %1711 = vmatprep.subr.mxu0 0.0
    %1712 = vmatpush1.msra.mxu0 0.0
    %1713 = vmatprep.subr.mxu0 0.0
    %1714 = vmatpush1.msra.mxu0 0.0
    %1715 = vmatprep.mubr.f32.mxu0 0.0
    %1716 = vmatmul.mubr.f32.gmra.mrb[0].mxu0 %v1509
    %v1717 = vpop.f32.mrb[0].mxu0
    %v1718 = vadd.f32 0.0, %v1717
    %v1719 = vpop.f32.mrb[0].mxu0
    %1720 = vdwg.mxu0
    %1721 = vmatprep.subr.mxu0 0.0
    %1722 = vmatpush1.msra.mxu0 %v84
    %1723 = vmatprep.subr.mxu0 0.0
    %1724 = vmatpush1.msra.mxu0 %v85
    %1725 = vmatprep.subr.mxu0 0.0
    %1726 = vmatpush1.msra.mxu0 %v86
    %1727 = vmatprep.subr.mxu0 0.0
    %1728 = vmatpush1.msra.mxu0 %v87
    %1729 = vmatprep.subr.mxu0 0.0
    %1730 = vmatpush1.msra.mxu0 0.0
    %1731 = vmatprep.subr.mxu0 0.0
    %1732 = vmatpush1.msra.mxu0 0.0
    %1733 = vmatprep.subr.mxu0 0.0
    %1734 = vmatpush1.msra.mxu0 0.0
    %1735 = vmatprep.subr.mxu0 0.0
    %1736 = vmatpush1.msra.mxu0 0.0
    %1737 = vmatprep.subr.mxu0 0.0
    %1738 = vmatpush1.msra.mxu0 0.0
    %1739 = vmatprep.subr.mxu0 0.0
    %1740 = vmatpush1.msra.mxu0 0.0
    %1741 = vmatprep.subr.mxu0 0.0
    %1742 = vmatpush1.msra.mxu0 0.0
    %1743 = vmatprep.subr.mxu0 0.0
    %1744 = vmatpush1.msra.mxu0 0.0
    %1745 = vmatprep.subr.mxu0 0.0
    %1746 = vmatpush1.msra.mxu0 0.0
    %1747 = vmatprep.subr.mxu0 0.0
    %1748 = vmatpush1.msra.mxu0 0.0
    %1749 = vmatprep.subr.mxu0 0.0
    %1750 = vmatpush1.msra.mxu0 0.0
    %1751 = vmatprep.subr.mxu0 0.0
    %1752 = vmatpush1.msra.mxu0 0.0
    %1753 = vmatprep.subr.mxu0 0.0
    %1754 = vmatpush1.msra.mxu0 0.0
    %1755 = vmatprep.subr.mxu0 0.0
    %1756 = vmatpush1.msra.mxu0 0.0
    %1757 = vmatprep.subr.mxu0 0.0
    %1758 = vmatpush1.msra.mxu0 0.0
    %1759 = vmatprep.subr.mxu0 0.0
    %1760 = vmatpush1.msra.mxu0 0.0
    %1761 = vmatprep.subr.mxu0 0.0
    %1762 = vmatpush1.msra.mxu0 0.0
    %1763 = vmatprep.subr.mxu0 0.0
    %1764 = vmatpush1.msra.mxu0 0.0
    %1765 = vmatprep.subr.mxu0 0.0
    %1766 = vmatpush1.msra.mxu0 0.0
    %1767 = vmatprep.subr.mxu0 0.0
    %1768 = vmatpush1.msra.mxu0 0.0
    %1769 = vmatprep.subr.mxu0 0.0
    %1770 = vmatpush1.msra.mxu0 0.0
    %1771 = vmatprep.subr.mxu0 0.0
    %1772 = vmatpush1.msra.mxu0 0.0
    %1773 = vmatprep.subr.mxu0 0.0
    %1774 = vmatpush1.msra.mxu0 0.0
    %1775 = vmatprep.subr.mxu0 0.0
    %1776 = vmatpush1.msra.mxu0 0.0
    %1777 = vmatprep.subr.mxu0 0.0
    %1778 = vmatpush1.msra.mxu0 0.0
    %1779 = vmatprep.subr.mxu0 0.0
    %1780 = vmatpush1.msra.mxu0 0.0
    %1781 = vmatprep.subr.mxu0 0.0
    %1782 = vmatpush1.msra.mxu0 0.0
    %1783 = vmatprep.subr.mxu0 0.0
    %1784 = vmatpush1.msra.mxu0 0.0
    %1785 = vmatprep.mubr.f32.mxu0 0.0
    %1786 = vmatmul.mubr.f32.gmra.mrb[0].mxu0 %v1509
    %v1787 = vpop.f32.mrb[0].mxu0
    %v1788 = vadd.f32 0.0, %v1787
    %v1789 = vpop.f32.mrb[0].mxu0
    %1790 = vdwg.mxu0
    %vm1791 = vcmask 64512
    %v1793 = vsel %vm1791, %v163, 0
    %v1796 = vsel %vm1791, %v729, 0
    %1798 = vmatprep.subr.mxu0 0.0
    %1799 = vmatpush1.xpose.msra.mxu0 %v1796
    %1800 = vmatprep.subr.mxu0 0.0
    %1801 = vmatpush1.xpose.msra.mxu0 0.0
    %1802 = vmatprep.subr.mxu0 0.0
    %1803 = vmatpush1.xpose.msra.mxu0 0.0
    %1804 = vmatprep.subr.mxu0 0.0
    %1805 = vmatpush1.xpose.msra.mxu0 0.0
    %1806 = vmatprep.subr.mxu0 0.0
    %1807 = vmatpush1.xpose.msra.mxu0 0.0
    %1808 = vmatprep.subr.mxu0 0.0
    %1809 = vmatpush1.xpose.msra.mxu0 0.0
    %1810 = vmatprep.subr.mxu0 0.0
    %1811 = vmatpush1.xpose.msra.mxu0 0.0
    %1812 = vmatprep.subr.mxu0 0.0
    %1813 = vmatpush1.xpose.msra.mxu0 0.0
    %1814 = vmatprep.subr.mxu0 0.0
    %1815 = vmatpush1.xpose.msra.mxu0 0.0
    %1816 = vmatprep.subr.mxu0 0.0
    %1817 = vmatpush1.xpose.msra.mxu0 0.0
    %1818 = vmatprep.subr.mxu0 0.0
    %1819 = vmatpush1.xpose.msra.mxu0 0.0
    %1820 = vmatprep.subr.mxu0 0.0
    %1821 = vmatpush1.xpose.msra.mxu0 0.0
    %1822 = vmatprep.subr.mxu0 0.0
    %1823 = vmatpush1.xpose.msra.mxu0 0.0
    %1824 = vmatprep.subr.mxu0 0.0
    %1825 = vmatpush1.xpose.msra.mxu0 0.0
    %1826 = vmatprep.subr.mxu0 0.0
    %1827 = vmatpush1.xpose.msra.mxu0 0.0
    %1828 = vmatprep.subr.mxu0 0.0
    %1829 = vmatpush1.xpose.msra.mxu0 0.0
    %1830 = vmatprep.subr.mxu0 0.0
    %1831 = vmatpush1.xpose.msra.mxu0 0.0
    %1832 = vmatprep.subr.mxu0 0.0
    %1833 = vmatpush1.xpose.msra.mxu0 0.0
    %1834 = vmatprep.subr.mxu0 0.0
    %1835 = vmatpush1.xpose.msra.mxu0 0.0
    %1836 = vmatprep.subr.mxu0 0.0
    %1837 = vmatpush1.xpose.msra.mxu0 0.0
    %1838 = vmatprep.subr.mxu0 0.0
    %1839 = vmatpush1.xpose.msra.mxu0 0.0
    %1840 = vmatprep.subr.mxu0 0.0
    %1841 = vmatpush1.xpose.msra.mxu0 0.0
    %1842 = vmatprep.subr.mxu0 0.0
    %1843 = vmatpush1.xpose.msra.mxu0 0.0
    %1844 = vmatprep.subr.mxu0 0.0
    %1845 = vmatpush1.xpose.msra.mxu0 0.0
    %1846 = vmatprep.subr.mxu0 0.0
    %1847 = vmatpush1.xpose.msra.mxu0 0.0
    %1848 = vmatprep.subr.mxu0 0.0
    %1849 = vmatpush1.xpose.msra.mxu0 0.0
    %1850 = vmatprep.subr.mxu0 0.0
    %1851 = vmatpush1.xpose.msra.mxu0 0.0
    %1852 = vmatprep.subr.mxu0 0.0
    %1853 = vmatpush1.xpose.msra.mxu0 0.0
    %1854 = vmatprep.subr.mxu0 0.0
    %1855 = vmatpush1.xpose.msra.mxu0 0.0
    %1856 = vmatprep.subr.mxu0 0.0
    %1857 = vmatpush1.xpose.msra.mxu0 0.0
    %1858 = vmatprep.subr.mxu0 0.0
    %1859 = vmatpush1.xpose.msra.mxu0 0.0
    %1860 = vmatprep.subr.mxu0 0.0
    %1861 = vmatpush1.xpose.msra.mxu0 0.0
    %1862 = vmatprep.mubr.f32.mxu0 0.0
    %1863 = vmatmul.mubr.f32.gmra.mrb[0].mxu0 %v1793
    %v1864 = vpop.f32.mrb[0].mxu0
    %v1865 = vadd.f32 0.0, %v1864
    %v1866 = vpop.f32.mrb[0].mxu0
    %1867 = vdwg.mxu0
    %v1869 = vsel %vm1791, %v233, 0
    %v1872 = vsel %vm1791, %v799, 0
    %1874 = vmatprep.subr.mxu0 0.0
    %1875 = vmatpush1.xpose.msra.mxu0 %v1872
    %1876 = vmatprep.subr.mxu0 0.0
    %1877 = vmatpush1.xpose.msra.mxu0 0.0
    %1878 = vmatprep.subr.mxu0 0.0
    %1879 = vmatpush1.xpose.msra.mxu0 0.0
    %1880 = vmatprep.subr.mxu0 0.0
    %1881 = vmatpush1.xpose.msra.mxu0 0.0
    %1882 = vmatprep.subr.mxu0 0.0
    %1883 = vmatpush1.xpose.msra.mxu0 0.0
    %1884 = vmatprep.subr.mxu0 0.0
    %1885 = vmatpush1.xpose.msra.mxu0 0.0
    %1886 = vmatprep.subr.mxu0 0.0
    %1887 = vmatpush1.xpose.msra.mxu0 0.0
    %1888 = vmatprep.subr.mxu0 0.0
    %1889 = vmatpush1.xpose.msra.mxu0 0.0
    %1890 = vmatprep.subr.mxu0 0.0
    %1891 = vmatpush1.xpose.msra.mxu0 0.0
    %1892 = vmatprep.subr.mxu0 0.0
    %1893 = vmatpush1.xpose.msra.mxu0 0.0
    %1894 = vmatprep.subr.mxu0 0.0
    %1895 = vmatpush1.xpose.msra.mxu0 0.0
    %1896 = vmatprep.subr.mxu0 0.0
    %1897 = vmatpush1.xpose.msra.mxu0 0.0
    %1898 = vmatprep.subr.mxu0 0.0
    %1899 = vmatpush1.xpose.msra.mxu0 0.0
    %1900 = vmatprep.subr.mxu0 0.0
    %1901 = vmatpush1.xpose.msra.mxu0 0.0
    %1902 = vmatprep.subr.mxu0 0.0
    %1903 = vmatpush1.xpose.msra.mxu0 0.0
    %1904 = vmatprep.subr.mxu0 0.0
    %1905 = vmatpush1.xpose.msra.mxu0 0.0
    %1906 = vmatprep.subr.mxu0 0.0
    %1907 = vmatpush1.xpose.msra.mxu0 0.0
    %1908 = vmatprep.subr.mxu0 0.0
    %1909 = vmatpush1.xpose.msra.mxu0 0.0
    %1910 = vmatprep.subr.mxu0 0.0
    %1911 = vmatpush1.xpose.msra.mxu0 0.0
    %1912 = vmatprep.subr.mxu0 0.0
    %1913 = vmatpush1.xpose.msra.mxu0 0.0
    %1914 = vmatprep.subr.mxu0 0.0
    %1915 = vmatpush1.xpose.msra.mxu0 0.0
    %1916 = vmatprep.subr.mxu0 0.0
    %1917 = vmatpush1.xpose.msra.mxu0 0.0
    %1918 = vmatprep.subr.mxu0 0.0
    %1919 = vmatpush1.xpose.msra.mxu0 0.0
    %1920 = vmatprep.subr.mxu0 0.0
    %1921 = vmatpush1.xpose.msra.mxu0 0.0
    %1922 = vmatprep.subr.mxu0 0.0
    %1923 = vmatpush1.xpose.msra.mxu0 0.0
    %1924 = vmatprep.subr.mxu0 0.0
    %1925 = vmatpush1.xpose.msra.mxu0 0.0
    %1926 = vmatprep.subr.mxu0 0.0
    %1927 = vmatpush1.xpose.msra.mxu0 0.0
    %1928 = vmatprep.subr.mxu0 0.0
    %1929 = vmatpush1.xpose.msra.mxu0 0.0
    %1930 = vmatprep.subr.mxu0 0.0
    %1931 = vmatpush1.xpose.msra.mxu0 0.0
    %1932 = vmatprep.subr.mxu0 0.0
    %1933 = vmatpush1.xpose.msra.mxu0 0.0
    %1934 = vmatprep.subr.mxu0 0.0
    %1935 = vmatpush1.xpose.msra.mxu0 0.0
    %1936 = vmatprep.subr.mxu0 0.0
    %1937 = vmatpush1.xpose.msra.mxu0 0.0
    %1938 = vmatprep.mubr.f32.mxu0 0.0
    %1939 = vmatmul.mubr.f32.gmra.mrb[0].mxu0 %v1869
    %v1940 = vpop.f32.mrb[0].mxu0
    %v1941 = vadd.f32 0.0, %v1940
    %v1942 = vpop.f32.mrb[0].mxu0
    %1943 = vdwg.mxu0
    %v1945 = vsel %vm1791, %v303, 0
    %v1948 = vsel %vm1791, %v869, 0
    %1950 = vmatprep.subr.mxu0 0.0
    %1951 = vmatpush1.xpose.msra.mxu0 %v1948
    %1952 = vmatprep.subr.mxu0 0.0
    %1953 = vmatpush1.xpose.msra.mxu0 0.0
    %1954 = vmatprep.subr.mxu0 0.0
    %1955 = vmatpush1.xpose.msra.mxu0 0.0
    %1956 = vmatprep.subr.mxu0 0.0
    %1957 = vmatpush1.xpose.msra.mxu0 0.0
    %1958 = vmatprep.subr.mxu0 0.0
    %1959 = vmatpush1.xpose.msra.mxu0 0.0
    %1960 = vmatprep.subr.mxu0 0.0
    %1961 = vmatpush1.xpose.msra.mxu0 0.0
    %1962 = vmatprep.subr.mxu0 0.0
    %1963 = vmatpush1.xpose.msra.mxu0 0.0
    %1964 = vmatprep.subr.mxu0 0.0
    %1965 = vmatpush1.xpose.msra.mxu0 0.0
    %1966 = vmatprep.subr.mxu0 0.0
    %1967 = vmatpush1.xpose.msra.mxu0 0.0
    %1968 = vmatprep.subr.mxu0 0.0
    %1969 = vmatpush1.xpose.msra.mxu0 0.0
    %1970 = vmatprep.subr.mxu0 0.0
    %1971 = vmatpush1.xpose.msra.mxu0 0.0
    %1972 = vmatprep.subr.mxu0 0.0
    %1973 = vmatpush1.xpose.msra.mxu0 0.0
    %1974 = vmatprep.subr.mxu0 0.0
    %1975 = vmatpush1.xpose.msra.mxu0 0.0
    %1976 = vmatprep.subr.mxu0 0.0
    %1977 = vmatpush1.xpose.msra.mxu0 0.0
    %1978 = vmatprep.subr.mxu0 0.0
    %1979 = vmatpush1.xpose.msra.mxu0 0.0
    %1980 = vmatprep.subr.mxu0 0.0
    %1981 = vmatpush1.xpose.msra.mxu0 0.0
    %1982 = vmatprep.subr.mxu0 0.0
    %1983 = vmatpush1.xpose.msra.mxu0 0.0
    %1984 = vmatprep.subr.mxu0 0.0
    %1985 = vmatpush1.xpose.msra.mxu0 0.0
    %1986 = vmatprep.subr.mxu0 0.0
    %1987 = vmatpush1.xpose.msra.mxu0 0.0
    %1988 = vmatprep.subr.mxu0 0.0
    %1989 = vmatpush1.xpose.msra.mxu0 0.0
    %1990 = vmatprep.subr.mxu0 0.0
    %1991 = vmatpush1.xpose.msra.mxu0 0.0
    %1992 = vmatprep.subr.mxu0 0.0
    %1993 = vmatpush1.xpose.msra.mxu0 0.0
    %1994 = vmatprep.subr.mxu0 0.0
    %1995 = vmatpush1.xpose.msra.mxu0 0.0
    %1996 = vmatprep.subr.mxu0 0.0
    %1997 = vmatpush1.xpose.msra.mxu0 0.0
    %1998 = vmatprep.subr.mxu0 0.0
    %1999 = vmatpush1.xpose.msra.mxu0 0.0
    %2000 = vmatprep.subr.mxu0 0.0
    %2001 = vmatpush1.xpose.msra.mxu0 0.0
    %2002 = vmatprep.subr.mxu0 0.0
    %2003 = vmatpush1.xpose.msra.mxu0 0.0
    %2004 = vmatprep.subr.mxu0 0.0
    %2005 = vmatpush1.xpose.msra.mxu0 0.0
    %2006 = vmatprep.subr.mxu0 0.0
    %2007 = vmatpush1.xpose.msra.mxu0 0.0
    %2008 = vmatprep.subr.mxu0 0.0
    %2009 = vmatpush1.xpose.msra.mxu0 0.0
    %2010 = vmatprep.subr.mxu0 0.0
    %2011 = vmatpush1.xpose.msra.mxu0 0.0
    %2012 = vmatprep.subr.mxu0 0.0
    %2013 = vmatpush1.xpose.msra.mxu0 0.0
    %2014 = vmatprep.mubr.f32.mxu0 0.0
    %2015 = vmatmul.mubr.f32.gmra.mrb[0].mxu0 %v1945
    %v2016 = vpop.f32.mrb[0].mxu0
    %v2017 = vadd.f32 0.0, %v2016
    %v2018 = vpop.f32.mrb[0].mxu0
    %2019 = vdwg.mxu0
    %v2021 = vsel %vm1791, %v373, 0
    %v2024 = vsel %vm1791, %v939, 0
    %2026 = vmatprep.subr.mxu0 0.0
    %2027 = vmatpush1.xpose.msra.mxu0 %v2024
    %2028 = vmatprep.subr.mxu0 0.0
    %2029 = vmatpush1.xpose.msra.mxu0 0.0
    %2030 = vmatprep.subr.mxu0 0.0
    %2031 = vmatpush1.xpose.msra.mxu0 0.0
    %2032 = vmatprep.subr.mxu0 0.0
    %2033 = vmatpush1.xpose.msra.mxu0 0.0
    %2034 = vmatprep.subr.mxu0 0.0
    %2035 = vmatpush1.xpose.msra.mxu0 0.0
    %2036 = vmatprep.subr.mxu0 0.0
    %2037 = vmatpush1.xpose.msra.mxu0 0.0
    %2038 = vmatprep.subr.mxu0 0.0
    %2039 = vmatpush1.xpose.msra.mxu0 0.0
    %2040 = vmatprep.subr.mxu0 0.0
    %2041 = vmatpush1.xpose.msra.mxu0 0.0
    %2042 = vmatprep.subr.mxu0 0.0
    %2043 = vmatpush1.xpose.msra.mxu0 0.0
    %2044 = vmatprep.subr.mxu0 0.0
    %2045 = vmatpush1.xpose.msra.mxu0 0.0
    %2046 = vmatprep.subr.mxu0 0.0
    %2047 = vmatpush1.xpose.msra.mxu0 0.0
    %2048 = vmatprep.subr.mxu0 0.0
    %2049 = vmatpush1.xpose.msra.mxu0 0.0
    %2050 = vmatprep.subr.mxu0 0.0
    %2051 = vmatpush1.xpose.msra.mxu0 0.0
    %2052 = vmatprep.subr.mxu0 0.0
    %2053 = vmatpush1.xpose.msra.mxu0 0.0
    %2054 = vmatprep.subr.mxu0 0.0
    %2055 = vmatpush1.xpose.msra.mxu0 0.0
    %2056 = vmatprep.subr.mxu0 0.0
    %2057 = vmatpush1.xpose.msra.mxu0 0.0
    %2058 = vmatprep.subr.mxu0 0.0
    %2059 = vmatpush1.xpose.msra.mxu0 0.0
    %2060 = vmatprep.subr.mxu0 0.0
    %2061 = vmatpush1.xpose.msra.mxu0 0.0
    %2062 = vmatprep.subr.mxu0 0.0
    %2063 = vmatpush1.xpose.msra.mxu0 0.0
    %2064 = vmatprep.subr.mxu0 0.0
    %2065 = vmatpush1.xpose.msra.mxu0 0.0
    %2066 = vmatprep.subr.mxu0 0.0
    %2067 = vmatpush1.xpose.msra.mxu0 0.0
    %2068 = vmatprep.subr.mxu0 0.0
    %2069 = vmatpush1.xpose.msra.mxu0 0.0
    %2070 = vmatprep.subr.mxu0 0.0
    %2071 = vmatpush1.xpose.msra.mxu0 0.0
    %2072 = vmatprep.subr.mxu0 0.0
    %2073 = vmatpush1.xpose.msra.mxu0 0.0
    %2074 = vmatprep.subr.mxu0 0.0
    %2075 = vmatpush1.xpose.msra.mxu0 0.0
    %2076 = vmatprep.subr.mxu0 0.0
    %2077 = vmatpush1.xpose.msra.mxu0 0.0
    %2078 = vmatprep.subr.mxu0 0.0
    %2079 = vmatpush1.xpose.msra.mxu0 0.0
    %2080 = vmatprep.subr.mxu0 0.0
    %2081 = vmatpush1.xpose.msra.mxu0 0.0
    %2082 = vmatprep.subr.mxu0 0.0
    %2083 = vmatpush1.xpose.msra.mxu0 0.0
    %2084 = vmatprep.subr.mxu0 0.0
    %2085 = vmatpush1.xpose.msra.mxu0 0.0
    %2086 = vmatprep.subr.mxu0 0.0
    %2087 = vmatpush1.xpose.msra.mxu0 0.0
    %2088 = vmatprep.subr.mxu0 0.0
    %2089 = vmatpush1.xpose.msra.mxu0 0.0
    %2090 = vmatprep.mubr.f32.mxu0 0.0
    %2091 = vmatmul.mubr.f32.gmra.mrb[0].mxu0 %v2021
    %v2092 = vpop.f32.mrb[0].mxu0
    %v2093 = vadd.f32 0.0, %v2092
    %v2094 = vpop.f32.mrb[0].mxu0
    %2095 = vdwg.mxu0
    %v2097 = vsel %vm1791, %v446, 0
    %v2100 = vsel %vm1791, %v1012, 0
    %2102 = vmatprep.subr.mxu0 0.0
    %2103 = vmatpush1.xpose.msra.mxu0 %v2100
    %2104 = vmatprep.subr.mxu0 0.0
    %2105 = vmatpush1.xpose.msra.mxu0 0.0
    %2106 = vmatprep.subr.mxu0 0.0
    %2107 = vmatpush1.xpose.msra.mxu0 0.0
    %2108 = vmatprep.subr.mxu0 0.0
    %2109 = vmatpush1.xpose.msra.mxu0 0.0
    %2110 = vmatprep.subr.mxu0 0.0
    %2111 = vmatpush1.xpose.msra.mxu0 0.0
    %2112 = vmatprep.subr.mxu0 0.0
    %2113 = vmatpush1.xpose.msra.mxu0 0.0
    %2114 = vmatprep.subr.mxu0 0.0
    %2115 = vmatpush1.xpose.msra.mxu0 0.0
    %2116 = vmatprep.subr.mxu0 0.0
    %2117 = vmatpush1.xpose.msra.mxu0 0.0
    %2118 = vmatprep.subr.mxu0 0.0
    %2119 = vmatpush1.xpose.msra.mxu0 0.0
    %2120 = vmatprep.subr.mxu0 0.0
    %2121 = vmatpush1.xpose.msra.mxu0 0.0
    %2122 = vmatprep.subr.mxu0 0.0
    %2123 = vmatpush1.xpose.msra.mxu0 0.0
    %2124 = vmatprep.subr.mxu0 0.0
    %2125 = vmatpush1.xpose.msra.mxu0 0.0
    %2126 = vmatprep.subr.mxu0 0.0
    %2127 = vmatpush1.xpose.msra.mxu0 0.0
    %2128 = vmatprep.subr.mxu0 0.0
    %2129 = vmatpush1.xpose.msra.mxu0 0.0
    %2130 = vmatprep.subr.mxu0 0.0
    %2131 = vmatpush1.xpose.msra.mxu0 0.0
    %2132 = vmatprep.subr.mxu0 0.0
    %2133 = vmatpush1.xpose.msra.mxu0 0.0
    %2134 = vmatprep.subr.mxu0 0.0
    %2135 = vmatpush1.xpose.msra.mxu0 0.0
    %2136 = vmatprep.subr.mxu0 0.0
    %2137 = vmatpush1.xpose.msra.mxu0 0.0
    %2138 = vmatprep.subr.mxu0 0.0
    %2139 = vmatpush1.xpose.msra.mxu0 0.0
    %2140 = vmatprep.subr.mxu0 0.0
    %2141 = vmatpush1.xpose.msra.mxu0 0.0
    %2142 = vmatprep.subr.mxu0 0.0
    %2143 = vmatpush1.xpose.msra.mxu0 0.0
    %2144 = vmatprep.subr.mxu0 0.0
    %2145 = vmatpush1.xpose.msra.mxu0 0.0
    %2146 = vmatprep.subr.mxu0 0.0
    %2147 = vmatpush1.xpose.msra.mxu0 0.0
    %2148 = vmatprep.subr.mxu0 0.0
    %2149 = vmatpush1.xpose.msra.mxu0 0.0
    %2150 = vmatprep.subr.mxu0 0.0
    %2151 = vmatpush1.xpose.msra.mxu0 0.0
    %2152 = vmatprep.subr.mxu0 0.0
    %2153 = vmatpush1.xpose.msra.mxu0 0.0
    %2154 = vmatprep.subr.mxu0 0.0
    %2155 = vmatpush1.xpose.msra.mxu0 0.0
    %2156 = vmatprep.subr.mxu0 0.0
    %2157 = vmatpush1.xpose.msra.mxu0 0.0
    %2158 = vmatprep.subr.mxu0 0.0
    %2159 = vmatpush1.xpose.msra.mxu0 0.0
    %2160 = vmatprep.subr.mxu0 0.0
    %2161 = vmatpush1.xpose.msra.mxu0 0.0
    %2162 = vmatprep.subr.mxu0 0.0
    %2163 = vmatpush1.xpose.msra.mxu0 0.0
    %2164 = vmatprep.subr.mxu0 0.0
    %2165 = vmatpush1.xpose.msra.mxu0 0.0
    %2166 = vmatprep.mubr.f32.mxu0 0.0
    %2167 = vmatmul.mubr.f32.gmra.mrb[0].mxu0 %v2097
    %v2168 = vpop.f32.mrb[0].mxu0
    %v2169 = vadd.f32 0.0, %v2168
    %v2170 = vpop.f32.mrb[0].mxu0
    %2171 = vdwg.mxu0
    %v2173 = vsel %vm1791, %v516, 0
    %v2176 = vsel %vm1791, %v1082, 0
    %2178 = vmatprep.subr.mxu0 0.0
    %2179 = vmatpush1.xpose.msra.mxu0 %v2176
    %2180 = vmatprep.subr.mxu0 0.0
    %2181 = vmatpush1.xpose.msra.mxu0 0.0
    %2182 = vmatprep.subr.mxu0 0.0
    %2183 = vmatpush1.xpose.msra.mxu0 0.0
    %2184 = vmatprep.subr.mxu0 0.0
    %2185 = vmatpush1.xpose.msra.mxu0 0.0
    %2186 = vmatprep.subr.mxu0 0.0
    %2187 = vmatpush1.xpose.msra.mxu0 0.0
    %2188 = vmatprep.subr.mxu0 0.0
    %2189 = vmatpush1.xpose.msra.mxu0 0.0
    %2190 = vmatprep.subr.mxu0 0.0
    %2191 = vmatpush1.xpose.msra.mxu0 0.0
    %2192 = vmatprep.subr.mxu0 0.0
    %2193 = vmatpush1.xpose.msra.mxu0 0.0
    %2194 = vmatprep.subr.mxu0 0.0
    %2195 = vmatpush1.xpose.msra.mxu0 0.0
    %2196 = vmatprep.subr.mxu0 0.0
    %2197 = vmatpush1.xpose.msra.mxu0 0.0
    %2198 = vmatprep.subr.mxu0 0.0
    %2199 = vmatpush1.xpose.msra.mxu0 0.0
    %2200 = vmatprep.subr.mxu0 0.0
    %2201 = vmatpush1.xpose.msra.mxu0 0.0
    %2202 = vmatprep.subr.mxu0 0.0
    %2203 = vmatpush1.xpose.msra.mxu0 0.0
    %2204 = vmatprep.subr.mxu0 0.0
    %2205 = vmatpush1.xpose.msra.mxu0 0.0
    %2206 = vmatprep.subr.mxu0 0.0
    %2207 = vmatpush1.xpose.msra.mxu0 0.0
    %2208 = vmatprep.subr.mxu0 0.0
    %2209 = vmatpush1.xpose.msra.mxu0 0.0
    %2210 = vmatprep.subr.mxu0 0.0
    %2211 = vmatpush1.xpose.msra.mxu0 0.0
    %2212 = vmatprep.subr.mxu0 0.0
    %2213 = vmatpush1.xpose.msra.mxu0 0.0
    %2214 = vmatprep.subr.mxu0 0.0
    %2215 = vmatpush1.xpose.msra.mxu0 0.0
    %2216 = vmatprep.subr.mxu0 0.0
    %2217 = vmatpush1.xpose.msra.mxu0 0.0
    %2218 = vmatprep.subr.mxu0 0.0
    %2219 = vmatpush1.xpose.msra.mxu0 0.0
    %2220 = vmatprep.subr.mxu0 0.0
    %2221 = vmatpush1.xpose.msra.mxu0 0.0
    %2222 = vmatprep.subr.mxu0 0.0
    %2223 = vmatpush1.xpose.msra.mxu0 0.0
    %2224 = vmatprep.subr.mxu0 0.0
    %2225 = vmatpush1.xpose.msra.mxu0 0.0
    %2226 = vmatprep.subr.mxu0 0.0
    %2227 = vmatpush1.xpose.msra.mxu0 0.0
    %2228 = vmatprep.subr.mxu0 0.0
    %2229 = vmatpush1.xpose.msra.mxu0 0.0
    %2230 = vmatprep.subr.mxu0 0.0
    %2231 = vmatpush1.xpose.msra.mxu0 0.0
    %2232 = vmatprep.subr.mxu0 0.0
    %2233 = vmatpush1.xpose.msra.mxu0 0.0
    %2234 = vmatprep.subr.mxu0 0.0
    %2235 = vmatpush1.xpose.msra.mxu0 0.0
    %2236 = vmatprep.subr.mxu0 0.0
    %2237 = vmatpush1.xpose.msra.mxu0 0.0
    %2238 = vmatprep.subr.mxu0 0.0
    %2239 = vmatpush1.xpose.msra.mxu0 0.0
    %2240 = vmatprep.subr.mxu0 0.0
    %2241 = vmatpush1.xpose.msra.mxu0 0.0
    %2242 = vmatprep.mubr.f32.mxu0 0.0
    %2243 = vmatmul.mubr.f32.gmra.mrb[0].mxu0 %v2173
    %v2244 = vpop.f32.mrb[0].mxu0
    %v2245 = vadd.f32 0.0, %v2244
    %v2246 = vpop.f32.mrb[0].mxu0
    %2247 = vdwg.mxu0
    %v2249 = vsel %vm1791, %v586, 0
    %v2252 = vsel %vm1791, %v1152, 0
    %2254 = vmatprep.subr.mxu0 0.0
    %2255 = vmatpush1.xpose.msra.mxu0 %v2252
    %2256 = vmatprep.subr.mxu0 0.0
    %2257 = vmatpush1.xpose.msra.mxu0 0.0
    %2258 = vmatprep.subr.mxu0 0.0
    %2259 = vmatpush1.xpose.msra.mxu0 0.0
    %2260 = vmatprep.subr.mxu0 0.0
    %2261 = vmatpush1.xpose.msra.mxu0 0.0
    %2262 = vmatprep.subr.mxu0 0.0
    %2263 = vmatpush1.xpose.msra.mxu0 0.0
    %2264 = vmatprep.subr.mxu0 0.0
    %2265 = vmatpush1.xpose.msra.mxu0 0.0
    %2266 = vmatprep.subr.mxu0 0.0
    %2267 = vmatpush1.xpose.msra.mxu0 0.0
    %2268 = vmatprep.subr.mxu0 0.0
    %2269 = vmatpush1.xpose.msra.mxu0 0.0
    %2270 = vmatprep.subr.mxu0 0.0
    %2271 = vmatpush1.xpose.msra.mxu0 0.0
    %2272 = vmatprep.subr.mxu0 0.0
    %2273 = vmatpush1.xpose.msra.mxu0 0.0
    %2274 = vmatprep.subr.mxu0 0.0
    %2275 = vmatpush1.xpose.msra.mxu0 0.0
    %2276 = vmatprep.subr.mxu0 0.0
    %2277 = vmatpush1.xpose.msra.mxu0 0.0
    %2278 = vmatprep.subr.mxu0 0.0
    %2279 = vmatpush1.xpose.msra.mxu0 0.0
    %2280 = vmatprep.subr.mxu0 0.0
    %2281 = vmatpush1.xpose.msra.mxu0 0.0
    %2282 = vmatprep.subr.mxu0 0.0
    %2283 = vmatpush1.xpose.msra.mxu0 0.0
    %2284 = vmatprep.subr.mxu0 0.0
    %2285 = vmatpush1.xpose.msra.mxu0 0.0
    %2286 = vmatprep.subr.mxu0 0.0
    %2287 = vmatpush1.xpose.msra.mxu0 0.0
    %2288 = vmatprep.subr.mxu0 0.0
    %2289 = vmatpush1.xpose.msra.mxu0 0.0
    %2290 = vmatprep.subr.mxu0 0.0
    %2291 = vmatpush1.xpose.msra.mxu0 0.0
    %2292 = vmatprep.subr.mxu0 0.0
    %2293 = vmatpush1.xpose.msra.mxu0 0.0
    %2294 = vmatprep.subr.mxu0 0.0
    %2295 = vmatpush1.xpose.msra.mxu0 0.0
    %2296 = vmatprep.subr.mxu0 0.0
    %2297 = vmatpush1.xpose.msra.mxu0 0.0
    %2298 = vmatprep.subr.mxu0 0.0
    %2299 = vmatpush1.xpose.msra.mxu0 0.0
    %2300 = vmatprep.subr.mxu0 0.0
    %2301 = vmatpush1.xpose.msra.mxu0 0.0
    %2302 = vmatprep.subr.mxu0 0.0
    %2303 = vmatpush1.xpose.msra.mxu0 0.0
    %2304 = vmatprep.subr.mxu0 0.0
    %2305 = vmatpush1.xpose.msra.mxu0 0.0
    %2306 = vmatprep.subr.mxu0 0.0
    %2307 = vmatpush1.xpose.msra.mxu0 0.0
    %2308 = vmatprep.subr.mxu0 0.0
    %2309 = vmatpush1.xpose.msra.mxu0 0.0
    %2310 = vmatprep.subr.mxu0 0.0
    %2311 = vmatpush1.xpose.msra.mxu0 0.0
    %2312 = vmatprep.subr.mxu0 0.0
    %2313 = vmatpush1.xpose.msra.mxu0 0.0
    %2314 = vmatprep.subr.mxu0 0.0
    %2315 = vmatpush1.xpose.msra.mxu0 0.0
    %2316 = vmatprep.subr.mxu0 0.0
    %2317 = vmatpush1.xpose.msra.mxu0 0.0
    %2318 = vmatprep.mubr.f32.mxu0 0.0
    %2319 = vmatmul.mubr.f32.gmra.mrb[0].mxu0 %v2249
    %v2320 = vpop.f32.mrb[0].mxu0
    %v2321 = vadd.f32 0.0, %v2320
    %v2322 = vpop.f32.mrb[0].mxu0
    %2323 = vdwg.mxu0
    %v2325 = vsel %vm1791, %v656, 0
    %v2328 = vsel %vm1791, %v1222, 0
    %2330 = vmatprep.subr.mxu0 0.0
    %2331 = vmatpush1.xpose.msra.mxu0 %v2328
    %2332 = vmatprep.subr.mxu0 0.0
    %2333 = vmatpush1.xpose.msra.mxu0 0.0
    %2334 = vmatprep.subr.mxu0 0.0
    %2335 = vmatpush1.xpose.msra.mxu0 0.0
    %2336 = vmatprep.subr.mxu0 0.0
    %2337 = vmatpush1.xpose.msra.mxu0 0.0
    %2338 = vmatprep.subr.mxu0 0.0
    %2339 = vmatpush1.xpose.msra.mxu0 0.0
    %2340 = vmatprep.subr.mxu0 0.0
    %2341 = vmatpush1.xpose.msra.mxu0 0.0
    %2342 = vmatprep.subr.mxu0 0.0
    %2343 = vmatpush1.xpose.msra.mxu0 0.0
    %2344 = vmatprep.subr.mxu0 0.0
    %2345 = vmatpush1.xpose.msra.mxu0 0.0
    %2346 = vmatprep.subr.mxu0 0.0
    %2347 = vmatpush1.xpose.msra.mxu0 0.0
    %2348 = vmatprep.subr.mxu0 0.0
    %2349 = vmatpush1.xpose.msra.mxu0 0.0
    %2350 = vmatprep.subr.mxu0 0.0
    %2351 = vmatpush1.xpose.msra.mxu0 0.0
    %2352 = vmatprep.subr.mxu0 0.0
    %2353 = vmatpush1.xpose.msra.mxu0 0.0
    %2354 = vmatprep.subr.mxu0 0.0
    %2355 = vmatpush1.xpose.msra.mxu0 0.0
    %2356 = vmatprep.subr.mxu0 0.0
    %2357 = vmatpush1.xpose.msra.mxu0 0.0
    %2358 = vmatprep.subr.mxu0 0.0
    %2359 = vmatpush1.xpose.msra.mxu0 0.0
    %2360 = vmatprep.subr.mxu0 0.0
    %2361 = vmatpush1.xpose.msra.mxu0 0.0
    %2362 = vmatprep.subr.mxu0 0.0
    %2363 = vmatpush1.xpose.msra.mxu0 0.0
    %2364 = vmatprep.subr.mxu0 0.0
    %2365 = vmatpush1.xpose.msra.mxu0 0.0
    %2366 = vmatprep.subr.mxu0 0.0
    %2367 = vmatpush1.xpose.msra.mxu0 0.0
    %2368 = vmatprep.subr.mxu0 0.0
    %2369 = vmatpush1.xpose.msra.mxu0 0.0
    %2370 = vmatprep.subr.mxu0 0.0
    %2371 = vmatpush1.xpose.msra.mxu0 0.0
    %2372 = vmatprep.subr.mxu0 0.0
    %2373 = vmatpush1.xpose.msra.mxu0 0.0
    %2374 = vmatprep.subr.mxu0 0.0
    %2375 = vmatpush1.xpose.msra.mxu0 0.0
    %2376 = vmatprep.subr.mxu0 0.0
    %2377 = vmatpush1.xpose.msra.mxu0 0.0
    %2378 = vmatprep.subr.mxu0 0.0
    %2379 = vmatpush1.xpose.msra.mxu0 0.0
    %2380 = vmatprep.subr.mxu0 0.0
    %2381 = vmatpush1.xpose.msra.mxu0 0.0
    %2382 = vmatprep.subr.mxu0 0.0
    %2383 = vmatpush1.xpose.msra.mxu0 0.0
    %2384 = vmatprep.subr.mxu0 0.0
    %2385 = vmatpush1.xpose.msra.mxu0 0.0
    %2386 = vmatprep.subr.mxu0 0.0
    %2387 = vmatpush1.xpose.msra.mxu0 0.0
    %2388 = vmatprep.subr.mxu0 0.0
    %2389 = vmatpush1.xpose.msra.mxu0 0.0
    %2390 = vmatprep.subr.mxu0 0.0
    %2391 = vmatpush1.xpose.msra.mxu0 0.0
    %2392 = vmatprep.subr.mxu0 0.0
    %2393 = vmatpush1.xpose.msra.mxu0 0.0
    %2394 = vmatprep.mubr.f32.mxu0 0.0
    %2395 = vmatmul.mubr.f32.gmra.mrb[0].mxu0 %v2325
    %v2396 = vpop.f32.mrb[0].mxu0
    %v2397 = vadd.f32 0.0, %v2396
    %v2398 = vpop.f32.mrb[0].mxu0
    %2399 = vdwg.mxu0
    %v2400 = vlaneseq
    %v2401 = vand.u32 %v2400, 127
    %s2402 = sld [smem:[#allocation3]]
    %v2403 = vstv %s2402
    %s2404 = sld [smem:[#allocation3 + $0x1]]
    %v2405 = vstv %s2404
    %vm2406 = vcmp.lt.s32.totalorder %v2401, %v2403
    %vm2407 = vcmp.lt.s32.totalorder %v2401, %v2405
    %v2408 = vsel %vm2406, %v1865, -1000000.0
    %v2409 = vsel %vm2406, %v1941, -1000000.0
    %v2410 = vsel %vm2406, %v2017, -1000000.0
    %v2411 = vsel %vm2406, %v2093, -1000000.0
    %v2412 = vsel %vm2407, %v2169, -1000000.0
    %v2413 = vsel %vm2407, %v2245, -1000000.0
    %v2414 = vsel %vm2407, %v2321, -1000000.0
    %v2415 = vsel %vm2407, %v2397, -1000000.0
    %vm2416 = vcmask 44032
    %v2417 = vsel %vm2416, %v2408, -inf
    %2418 = vmax.xlane.f32.xlu0 %v2417
    %v2419 = vpop.xlane.xlu0 %2418
    %v2420 = vsel %vm2416, %v2409, -inf
    %2421 = vmax.xlane.f32.xlu0 %v2420
    %v2422 = vpop.xlane.xlu0 %2421
    %v2423 = vsel %vm2416, %v2410, -inf
    %2424 = vmax.xlane.f32.xlu0 %v2423
    %v2425 = vpop.xlane.xlu0 %2424
    %v2426 = vsel %vm2416, %v2411, -inf
    %2427 = vmax.xlane.f32.xlu0 %v2426
    %v2428 = vpop.xlane.xlu0 %2427
    %v2429 = vsel %vm2416, %v2412, -inf
    %2430 = vmax.xlane.f32.xlu0 %v2429
    %v2431 = vpop.xlane.xlu0 %2430
    %v2432 = vsel %vm2416, %v2413, -inf
    %2433 = vmax.xlane.f32.xlu0 %v2432
    %v2434 = vpop.xlane.xlu0 %2433
    %v2435 = vsel %vm2416, %v2414, -inf
    %2436 = vmax.xlane.f32.xlu0 %v2435
    %v2437 = vpop.xlane.xlu0 %2436
    %v2438 = vsel %vm2416, %v2415, -inf
    %2439 = vmax.xlane.f32.xlu0 %v2438
    %v2440 = vpop.xlane.xlu0 %2439
    %v2441 = vsub.f32 %v2408, %v2419
    %v2442 = vsub.f32 %v2409, %v2422
    %v2443 = vsub.f32 %v2410, %v2425
    %v2444 = vsub.f32 %v2411, %v2428
    %v2445 = vsub.f32 %v2412, %v2431
    %v2446 = vsub.f32 %v2413, %v2434
    %v2447 = vsub.f32 %v2414, %v2437
    %v2448 = vsub.f32 %v2415, %v2440
    %v2449 = vmul.f32 %v2441, 1.442695
    %v2450 = vpow.pop %v2449
    %v2451 = vmul.f32 %v2442, 1.442695
    %v2452 = vpow.pop %v2451
    %v2453 = vmul.f32 %v2443, 1.442695
    %v2454 = vpow.pop %v2453
    %v2455 = vmul.f32 %v2444, 1.442695
    %v2456 = vpow.pop %v2455
    %v2457 = vmul.f32 %v2445, 1.442695
    %v2458 = vpow.pop %v2457
    %v2459 = vmul.f32 %v2446, 1.442695
    %v2460 = vpow.pop %v2459
    %v2461 = vmul.f32 %v2447, 1.442695
    %v2462 = vpow.pop %v2461
    %v2463 = vmul.f32 %v2448, 1.442695
    %v2464 = vpow.pop %v2463
    %v2465 = vsel %vm2416, %v2450, 0.0
    %2466 = vadd.xlane.f32.xlu0 %v2465
    %v2467 = vpop.xlane.xlu0 %2466
    %v2468 = vsel %vm2416, %v2452, 0.0
    %2469 = vadd.xlane.f32.xlu0 %v2468
    %v2470 = vpop.xlane.xlu0 %2469
    %v2471 = vsel %vm2416, %v2454, 0.0
    %2472 = vadd.xlane.f32.xlu0 %v2471
    %v2473 = vpop.xlane.xlu0 %2472
    %v2474 = vsel %vm2416, %v2456, 0.0
    %2475 = vadd.xlane.f32.xlu0 %v2474
    %v2476 = vpop.xlane.xlu0 %2475
    %v2477 = vsel %vm2416, %v2458, 0.0
    %2478 = vadd.xlane.f32.xlu0 %v2477
    %v2479 = vpop.xlane.xlu0 %2478
    %v2480 = vsel %vm2416, %v2460, 0.0
    %2481 = vadd.xlane.f32.xlu0 %v2480
    %v2482 = vpop.xlane.xlu0 %2481
    %v2483 = vsel %vm2416, %v2462, 0.0
    %2484 = vadd.xlane.f32.xlu0 %v2483
    %v2485 = vpop.xlane.xlu0 %2484
    %v2486 = vsel %vm2416, %v2464, 0.0
    %2487 = vadd.xlane.f32.xlu0 %v2486
    %v2488 = vpop.xlane.xlu0 %2487
    %v2489 = vrcp.pop %v2467
    %v2490 = vrcp.pop %v2470
    %v2491 = vrcp.pop %v2473
    %v2492 = vrcp.pop %v2476
    %v2493 = vrcp.pop %v2479
    %v2494 = vrcp.pop %v2482
    %v2495 = vrcp.pop %v2485
    %v2496 = vrcp.pop %v2488
    %v2497 = vmul.f32 %v2450, %v2489
    %v2498 = vmul.f32 %v2452, %v2490
    %v2499 = vmul.f32 %v2454, %v2491
    %v2500 = vmul.f32 %v2456, %v2492
    %v2501 = vmul.f32 %v2458, %v2493
    %v2502 = vmul.f32 %v2460, %v2494
    %v2503 = vmul.f32 %v2462, %v2495
    %v2504 = vmul.f32 %v2464, %v2496
    %vm2505 = vcmask 48128
    %v2507 = vsel %vm2505, %v2497, 0
    %vm2509 = vcmask 1045504
    %v2511 = vsel %vm2509, %v1295, 0
    %2513 = vmatprep.subr.mxu0 0.0
    %2514 = vmatpush1.msra.mxu0 %v2511
    %2515 = vmatprep.subr.mxu0 0.0
    %2516 = vmatpush1.msra.mxu0 0.0
    %2517 = vmatprep.subr.mxu0 0.0
    %2518 = vmatpush1.msra.mxu0 0.0
    %2519 = vmatprep.subr.mxu0 0.0
    %2520 = vmatpush1.msra.mxu0 0.0
    %2521 = vmatprep.subr.mxu0 0.0
    %2522 = vmatpush1.msra.mxu0 0.0
    %2523 = vmatprep.subr.mxu0 0.0
    %2524 = vmatpush1.msra.mxu0 0.0
    %2525 = vmatprep.subr.mxu0 0.0
    %2526 = vmatpush1.msra.mxu0 0.0
    %2527 = vmatprep.subr.mxu0 0.0
    %2528 = vmatpush1.msra.mxu0 0.0
    %2529 = vmatprep.subr.mxu0 0.0
    %2530 = vmatpush1.msra.mxu0 0.0
    %2531 = vmatprep.subr.mxu0 0.0
    %2532 = vmatpush1.msra.mxu0 0.0
    %2533 = vmatprep.subr.mxu0 0.0
    %2534 = vmatpush1.msra.mxu0 0.0
    %2535 = vmatprep.subr.mxu0 0.0
    %2536 = vmatpush1.msra.mxu0 0.0
    %2537 = vmatprep.subr.mxu0 0.0
    %2538 = vmatpush1.msra.mxu0 0.0
    %2539 = vmatprep.subr.mxu0 0.0
    %2540 = vmatpush1.msra.mxu0 0.0
    %2541 = vmatprep.subr.mxu0 0.0
    %2542 = vmatpush1.msra.mxu0 0.0
    %2543 = vmatprep.subr.mxu0 0.0
    %2544 = vmatpush1.msra.mxu0 0.0
    %2545 = vmatprep.subr.mxu0 0.0
    %2546 = vmatpush1.msra.mxu0 0.0
    %2547 = vmatprep.subr.mxu0 0.0
    %2548 = vmatpush1.msra.mxu0 0.0
    %2549 = vmatprep.subr.mxu0 0.0
    %2550 = vmatpush1.msra.mxu0 0.0
    %2551 = vmatprep.subr.mxu0 0.0
    %2552 = vmatpush1.msra.mxu0 0.0
    %2553 = vmatprep.subr.mxu0 0.0
    %2554 = vmatpush1.msra.mxu0 0.0
    %2555 = vmatprep.subr.mxu0 0.0
    %2556 = vmatpush1.msra.mxu0 0.0
    %2557 = vmatprep.subr.mxu0 0.0
    %2558 = vmatpush1.msra.mxu0 0.0
    %2559 = vmatprep.subr.mxu0 0.0
    %2560 = vmatpush1.msra.mxu0 0.0
    %2561 = vmatprep.subr.mxu0 0.0
    %2562 = vmatpush1.msra.mxu0 0.0
    %2563 = vmatprep.subr.mxu0 0.0
    %2564 = vmatpush1.msra.mxu0 0.0
    %2565 = vmatprep.subr.mxu0 0.0
    %2566 = vmatpush1.msra.mxu0 0.0
    %2567 = vmatprep.subr.mxu0 0.0
    %2568 = vmatpush1.msra.mxu0 0.0
    %2569 = vmatprep.subr.mxu0 0.0
    %2570 = vmatpush1.msra.mxu0 0.0
    %2571 = vmatprep.subr.mxu0 0.0
    %2572 = vmatpush1.msra.mxu0 0.0
    %2573 = vmatprep.subr.mxu0 0.0
    %2574 = vmatpush1.msra.mxu0 0.0
    %2575 = vmatprep.subr.mxu0 0.0
    %2576 = vmatpush1.msra.mxu0 0.0
    %2577 = vmatprep.mubr.f32.mxu0 0.0
    %2578 = vmatmul.mubr.f32.gmra.mrb[0].mxu0 %v2507
    %v2579 = vpop.f32.mrb[0].mxu0
    %v2580 = vadd.f32 0.0, %v2579
    %v2581 = vpop.f32.mrb[0].mxu0
    %2582 = vdwg.mxu0
    %v2584 = vsel %vm2505, %v2498, 0
    %v2587 = vsel %vm2509, %v1365, 0
    %2589 = vmatprep.subr.mxu0 0.0
    %2590 = vmatpush1.msra.mxu0 %v2587
    %2591 = vmatprep.subr.mxu0 0.0
    %2592 = vmatpush1.msra.mxu0 0.0
    %2593 = vmatprep.subr.mxu0 0.0
    %2594 = vmatpush1.msra.mxu0 0.0
    %2595 = vmatprep.subr.mxu0 0.0
    %2596 = vmatpush1.msra.mxu0 0.0
    %2597 = vmatprep.subr.mxu0 0.0
    %2598 = vmatpush1.msra.mxu0 0.0
    %2599 = vmatprep.subr.mxu0 0.0
    %2600 = vmatpush1.msra.mxu0 0.0
    %2601 = vmatprep.subr.mxu0 0.0
    %2602 = vmatpush1.msra.mxu0 0.0
    %2603 = vmatprep.subr.mxu0 0.0
    %2604 = vmatpush1.msra.mxu0 0.0
    %2605 = vmatprep.subr.mxu0 0.0
    %2606 = vmatpush1.msra.mxu0 0.0
    %2607 = vmatprep.subr.mxu0 0.0
    %2608 = vmatpush1.msra.mxu0 0.0
    %2609 = vmatprep.subr.mxu0 0.0
    %2610 = vmatpush1.msra.mxu0 0.0
    %2611 = vmatprep.subr.mxu0 0.0
    %2612 = vmatpush1.msra.mxu0 0.0
    %2613 = vmatprep.subr.mxu0 0.0
    %2614 = vmatpush1.msra.mxu0 0.0
    %2615 = vmatprep.subr.mxu0 0.0
    %2616 = vmatpush1.msra.mxu0 0.0
    %2617 = vmatprep.subr.mxu0 0.0
    %2618 = vmatpush1.msra.mxu0 0.0
    %2619 = vmatprep.subr.mxu0 0.0
    %2620 = vmatpush1.msra.mxu0 0.0
    %2621 = vmatprep.subr.mxu0 0.0
    %2622 = vmatpush1.msra.mxu0 0.0
    %2623 = vmatprep.subr.mxu0 0.0
    %2624 = vmatpush1.msra.mxu0 0.0
    %2625 = vmatprep.subr.mxu0 0.0
    %2626 = vmatpush1.msra.mxu0 0.0
    %2627 = vmatprep.subr.mxu0 0.0
    %2628 = vmatpush1.msra.mxu0 0.0
    %2629 = vmatprep.subr.mxu0 0.0
    %2630 = vmatpush1.msra.mxu0 0.0
    %2631 = vmatprep.subr.mxu0 0.0
    %2632 = vmatpush1.msra.mxu0 0.0
    %2633 = vmatprep.subr.mxu0 0.0
    %2634 = vmatpush1.msra.mxu0 0.0
    %2635 = vmatprep.subr.mxu0 0.0
    %2636 = vmatpush1.msra.mxu0 0.0
    %2637 = vmatprep.subr.mxu0 0.0
    %2638 = vmatpush1.msra.mxu0 0.0
    %2639 = vmatprep.subr.mxu0 0.0
    %2640 = vmatpush1.msra.mxu0 0.0
    %2641 = vmatprep.subr.mxu0 0.0
    %2642 = vmatpush1.msra.mxu0 0.0
    %2643 = vmatprep.subr.mxu0 0.0
    %2644 = vmatpush1.msra.mxu0 0.0
    %2645 = vmatprep.subr.mxu0 0.0
    %2646 = vmatpush1.msra.mxu0 0.0
    %2647 = vmatprep.subr.mxu0 0.0
    %2648 = vmatpush1.msra.mxu0 0.0
    %2649 = vmatprep.subr.mxu0 0.0
    %2650 = vmatpush1.msra.mxu0 0.0
    %2651 = vmatprep.subr.mxu0 0.0
    %2652 = vmatpush1.msra.mxu0 0.0
    %2653 = vmatprep.mubr.f32.mxu0 0.0
    %2654 = vmatmul.mubr.f32.gmra.mrb[0].mxu0 %v2584
    %v2655 = vpop.f32.mrb[0].mxu0
    %v2656 = vadd.f32 0.0, %v2655
    %v2657 = vpop.f32.mrb[0].mxu0
    %2658 = vdwg.mxu0
    %v2660 = vsel %vm2505, %v2499, 0
    %v2663 = vsel %vm2509, %v1435, 0
    %2665 = vmatprep.subr.mxu0 0.0
    %2666 = vmatpush1.msra.mxu0 %v2663
    %2667 = vmatprep.subr.mxu0 0.0
    %2668 = vmatpush1.msra.mxu0 0.0
    %2669 = vmatprep.subr.mxu0 0.0
    %2670 = vmatpush1.msra.mxu0 0.0
    %2671 = vmatprep.subr.mxu0 0.0
    %2672 = vmatpush1.msra.mxu0 0.0
    %2673 = vmatprep.subr.mxu0 0.0
    %2674 = vmatpush1.msra.mxu0 0.0
    %2675 = vmatprep.subr.mxu0 0.0
    %2676 = vmatpush1.msra.mxu0 0.0
    %2677 = vmatprep.subr.mxu0 0.0
    %2678 = vmatpush1.msra.mxu0 0.0
    %2679 = vmatprep.subr.mxu0 0.0
    %2680 = vmatpush1.msra.mxu0 0.0
    %2681 = vmatprep.subr.mxu0 0.0
    %2682 = vmatpush1.msra.mxu0 0.0
    %2683 = vmatprep.subr.mxu0 0.0
    %2684 = vmatpush1.msra.mxu0 0.0
    %2685 = vmatprep.subr.mxu0 0.0
    %2686 = vmatpush1.msra.mxu0 0.0
    %2687 = vmatprep.subr.mxu0 0.0
    %2688 = vmatpush1.msra.mxu0 0.0
    %2689 = vmatprep.subr.mxu0 0.0
    %2690 = vmatpush1.msra.mxu0 0.0
    %2691 = vmatprep.subr.mxu0 0.0
    %2692 = vmatpush1.msra.mxu0 0.0
    %2693 = vmatprep.subr.mxu0 0.0
    %2694 = vmatpush1.msra.mxu0 0.0
    %2695 = vmatprep.subr.mxu0 0.0
    %2696 = vmatpush1.msra.mxu0 0.0
    %2697 = vmatprep.subr.mxu0 0.0
    %2698 = vmatpush1.msra.mxu0 0.0
    %2699 = vmatprep.subr.mxu0 0.0
    %2700 = vmatpush1.msra.mxu0 0.0
    %2701 = vmatprep.subr.mxu0 0.0
    %2702 = vmatpush1.msra.mxu0 0.0
    %2703 = vmatprep.subr.mxu0 0.0
    %2704 = vmatpush1.msra.mxu0 0.0
    %2705 = vmatprep.subr.mxu0 0.0
    %2706 = vmatpush1.msra.mxu0 0.0
    %2707 = vmatprep.subr.mxu0 0.0
    %2708 = vmatpush1.msra.mxu0 0.0
    %2709 = vmatprep.subr.mxu0 0.0
    %2710 = vmatpush1.msra.mxu0 0.0
    %2711 = vmatprep.subr.mxu0 0.0
    %2712 = vmatpush1.msra.mxu0 0.0
    %2713 = vmatprep.subr.mxu0 0.0
    %2714 = vmatpush1.msra.mxu0 0.0
    %2715 = vmatprep.subr.mxu0 0.0
    %2716 = vmatpush1.msra.mxu0 0.0
    %2717 = vmatprep.subr.mxu0 0.0
    %2718 = vmatpush1.msra.mxu0 0.0
    %2719 = vmatprep.subr.mxu0 0.0
    %2720 = vmatpush1.msra.mxu0 0.0
    %2721 = vmatprep.subr.mxu0 0.0
    %2722 = vmatpush1.msra.mxu0 0.0
    %2723 = vmatprep.subr.mxu0 0.0
    %2724 = vmatpush1.msra.mxu0 0.0
    %2725 = vmatprep.subr.mxu0 0.0
    %2726 = vmatpush1.msra.mxu0 0.0
    %2727 = vmatprep.subr.mxu0 0.0
    %2728 = vmatpush1.msra.mxu0 0.0
    %2729 = vmatprep.mubr.f32.mxu0 0.0
    %2730 = vmatmul.mubr.f32.gmra.mrb[0].mxu0 %v2660
    %v2731 = vpop.f32.mrb[0].mxu0
    %v2732 = vadd.f32 0.0, %v2731
    %v2733 = vpop.f32.mrb[0].mxu0
    %2734 = vdwg.mxu0
    %v2736 = vsel %vm2505, %v2500, 0
    %v2739 = vsel %vm2509, %v1505, 0
    %2741 = vmatprep.subr.mxu0 0.0
    %2742 = vmatpush1.msra.mxu0 %v2739
    %2743 = vmatprep.subr.mxu0 0.0
    %2744 = vmatpush1.msra.mxu0 0.0
    %2745 = vmatprep.subr.mxu0 0.0
    %2746 = vmatpush1.msra.mxu0 0.0
    %2747 = vmatprep.subr.mxu0 0.0
    %2748 = vmatpush1.msra.mxu0 0.0
    %2749 = vmatprep.subr.mxu0 0.0
    %2750 = vmatpush1.msra.mxu0 0.0
    %2751 = vmatprep.subr.mxu0 0.0
    %2752 = vmatpush1.msra.mxu0 0.0
    %2753 = vmatprep.subr.mxu0 0.0
    %2754 = vmatpush1.msra.mxu0 0.0
    %2755 = vmatprep.subr.mxu0 0.0
    %2756 = vmatpush1.msra.mxu0 0.0
    %2757 = vmatprep.subr.mxu0 0.0
    %2758 = vmatpush1.msra.mxu0 0.0
    %2759 = vmatprep.subr.mxu0 0.0
    %2760 = vmatpush1.msra.mxu0 0.0
    %2761 = vmatprep.subr.mxu0 0.0
    %2762 = vmatpush1.msra.mxu0 0.0
    %2763 = vmatprep.subr.mxu0 0.0
    %2764 = vmatpush1.msra.mxu0 0.0
    %2765 = vmatprep.subr.mxu0 0.0
    %2766 = vmatpush1.msra.mxu0 0.0
    %2767 = vmatprep.subr.mxu0 0.0
    %2768 = vmatpush1.msra.mxu0 0.0
    %2769 = vmatprep.subr.mxu0 0.0
    %2770 = vmatpush1.msra.mxu0 0.0
    %2771 = vmatprep.subr.mxu0 0.0
    %2772 = vmatpush1.msra.mxu0 0.0
    %2773 = vmatprep.subr.mxu0 0.0
    %2774 = vmatpush1.msra.mxu0 0.0
    %2775 = vmatprep.subr.mxu0 0.0
    %2776 = vmatpush1.msra.mxu0 0.0
    %2777 = vmatprep.subr.mxu0 0.0
    %2778 = vmatpush1.msra.mxu0 0.0
    %2779 = vmatprep.subr.mxu0 0.0
    %2780 = vmatpush1.msra.mxu0 0.0
    %2781 = vmatprep.subr.mxu0 0.0
    %2782 = vmatpush1.msra.mxu0 0.0
    %2783 = vmatprep.subr.mxu0 0.0
    %2784 = vmatpush1.msra.mxu0 0.0
    %2785 = vmatprep.subr.mxu0 0.0
    %2786 = vmatpush1.msra.mxu0 0.0
    %2787 = vmatprep.subr.mxu0 0.0
    %2788 = vmatpush1.msra.mxu0 0.0
    %2789 = vmatprep.subr.mxu0 0.0
    %2790 = vmatpush1.msra.mxu0 0.0
    %2791 = vmatprep.subr.mxu0 0.0
    %2792 = vmatpush1.msra.mxu0 0.0
    %2793 = vmatprep.subr.mxu0 0.0
    %2794 = vmatpush1.msra.mxu0 0.0
    %2795 = vmatprep.subr.mxu0 0.0
    %2796 = vmatpush1.msra.mxu0 0.0
    %2797 = vmatprep.subr.mxu0 0.0
    %2798 = vmatpush1.msra.mxu0 0.0
    %2799 = vmatprep.subr.mxu0 0.0
    %2800 = vmatpush1.msra.mxu0 0.0
    %2801 = vmatprep.subr.mxu0 0.0
    %2802 = vmatpush1.msra.mxu0 0.0
    %2803 = vmatprep.subr.mxu0 0.0
    %2804 = vmatpush1.msra.mxu0 0.0
    %2805 = vmatprep.mubr.f32.mxu0 0.0
    %2806 = vmatmul.mubr.f32.gmra.mrb[0].mxu0 %v2736
    %v2807 = vpop.f32.mrb[0].mxu0
    %v2808 = vadd.f32 0.0, %v2807
    %v2809 = vpop.f32.mrb[0].mxu0
    %2810 = vdwg.mxu0
    %v2812 = vsel %vm2505, %v2501, 0
    %v2815 = vsel %vm2509, %v1578, 0
    %2817 = vmatprep.subr.mxu0 0.0
    %2818 = vmatpush1.msra.mxu0 %v2815
    %2819 = vmatprep.subr.mxu0 0.0
    %2820 = vmatpush1.msra.mxu0 0.0
    %2821 = vmatprep.subr.mxu0 0.0
    %2822 = vmatpush1.msra.mxu0 0.0
    %2823 = vmatprep.subr.mxu0 0.0
    %2824 = vmatpush1.msra.mxu0 0.0
    %2825 = vmatprep.subr.mxu0 0.0
    %2826 = vmatpush1.msra.mxu0 0.0
    %2827 = vmatprep.subr.mxu0 0.0
    %2828 = vmatpush1.msra.mxu0 0.0
    %2829 = vmatprep.subr.mxu0 0.0
    %2830 = vmatpush1.msra.mxu0 0.0
    %2831 = vmatprep.subr.mxu0 0.0
    %2832 = vmatpush1.msra.mxu0 0.0
    %2833 = vmatprep.subr.mxu0 0.0
    %2834 = vmatpush1.msra.mxu0 0.0
    %2835 = vmatprep.subr.mxu0 0.0
    %2836 = vmatpush1.msra.mxu0 0.0
    %2837 = vmatprep.subr.mxu0 0.0
    %2838 = vmatpush1.msra.mxu0 0.0
    %2839 = vmatprep.subr.mxu0 0.0
    %2840 = vmatpush1.msra.mxu0 0.0
    %2841 = vmatprep.subr.mxu0 0.0
    %2842 = vmatpush1.msra.mxu0 0.0
    %2843 = vmatprep.subr.mxu0 0.0
    %2844 = vmatpush1.msra.mxu0 0.0
    %2845 = vmatprep.subr.mxu0 0.0
    %2846 = vmatpush1.msra.mxu0 0.0
    %2847 = vmatprep.subr.mxu0 0.0
    %2848 = vmatpush1.msra.mxu0 0.0
    %2849 = vmatprep.subr.mxu0 0.0
    %2850 = vmatpush1.msra.mxu0 0.0
    %2851 = vmatprep.subr.mxu0 0.0
    %2852 = vmatpush1.msra.mxu0 0.0
    %2853 = vmatprep.subr.mxu0 0.0
    %2854 = vmatpush1.msra.mxu0 0.0
    %2855 = vmatprep.subr.mxu0 0.0
    %2856 = vmatpush1.msra.mxu0 0.0
    %2857 = vmatprep.subr.mxu0 0.0
    %2858 = vmatpush1.msra.mxu0 0.0
    %2859 = vmatprep.subr.mxu0 0.0
    %2860 = vmatpush1.msra.mxu0 0.0
    %2861 = vmatprep.subr.mxu0 0.0
    %2862 = vmatpush1.msra.mxu0 0.0
    %2863 = vmatprep.subr.mxu0 0.0
    %2864 = vmatpush1.msra.mxu0 0.0
    %2865 = vmatprep.subr.mxu0 0.0
    %2866 = vmatpush1.msra.mxu0 0.0
    %2867 = vmatprep.subr.mxu0 0.0
    %2868 = vmatpush1.msra.mxu0 0.0
    %2869 = vmatprep.subr.mxu0 0.0
    %2870 = vmatpush1.msra.mxu0 0.0
    %2871 = vmatprep.subr.mxu0 0.0
    %2872 = vmatpush1.msra.mxu0 0.0
    %2873 = vmatprep.subr.mxu0 0.0
    %2874 = vmatpush1.msra.mxu0 0.0
    %2875 = vmatprep.subr.mxu0 0.0
    %2876 = vmatpush1.msra.mxu0 0.0
    %2877 = vmatprep.subr.mxu0 0.0
    %2878 = vmatpush1.msra.mxu0 0.0
    %2879 = vmatprep.subr.mxu0 0.0
    %2880 = vmatpush1.msra.mxu0 0.0
    %2881 = vmatprep.mubr.f32.mxu0 0.0
    %2882 = vmatmul.mubr.f32.gmra.mrb[0].mxu0 %v2812
    %v2883 = vpop.f32.mrb[0].mxu0
    %v2884 = vadd.f32 0.0, %v2883
    %v2885 = vpop.f32.mrb[0].mxu0
    %2886 = vdwg.mxu0
    %v2888 = vsel %vm2505, %v2502, 0
    %v2891 = vsel %vm2509, %v1648, 0
    %2893 = vmatprep.subr.mxu0 0.0
    %2894 = vmatpush1.msra.mxu0 %v2891
    %2895 = vmatprep.subr.mxu0 0.0
    %2896 = vmatpush1.msra.mxu0 0.0
    %2897 = vmatprep.subr.mxu0 0.0
    %2898 = vmatpush1.msra.mxu0 0.0
    %2899 = vmatprep.subr.mxu0 0.0
    %2900 = vmatpush1.msra.mxu0 0.0
    %2901 = vmatprep.subr.mxu0 0.0
    %2902 = vmatpush1.msra.mxu0 0.0
    %2903 = vmatprep.subr.mxu0 0.0
    %2904 = vmatpush1.msra.mxu0 0.0
    %2905 = vmatprep.subr.mxu0 0.0
    %2906 = vmatpush1.msra.mxu0 0.0
    %2907 = vmatprep.subr.mxu0 0.0
    %2908 = vmatpush1.msra.mxu0 0.0
    %2909 = vmatprep.subr.mxu0 0.0
    %2910 = vmatpush1.msra.mxu0 0.0
    %2911 = vmatprep.subr.mxu0 0.0
    %2912 = vmatpush1.msra.mxu0 0.0
    %2913 = vmatprep.subr.mxu0 0.0
    %2914 = vmatpush1.msra.mxu0 0.0
    %2915 = vmatprep.subr.mxu0 0.0
    %2916 = vmatpush1.msra.mxu0 0.0
    %2917 = vmatprep.subr.mxu0 0.0
    %2918 = vmatpush1.msra.mxu0 0.0
    %2919 = vmatprep.subr.mxu0 0.0
    %2920 = vmatpush1.msra.mxu0 0.0
    %2921 = vmatprep.subr.mxu0 0.0
    %2922 = vmatpush1.msra.mxu0 0.0
    %2923 = vmatprep.subr.mxu0 0.0
    %2924 = vmatpush1.msra.mxu0 0.0
    %2925 = vmatprep.subr.mxu0 0.0
    %2926 = vmatpush1.msra.mxu0 0.0
    %2927 = vmatprep.subr.mxu0 0.0
    %2928 = vmatpush1.msra.mxu0 0.0
    %2929 = vmatprep.subr.mxu0 0.0
    %2930 = vmatpush1.msra.mxu0 0.0
    %2931 = vmatprep.subr.mxu0 0.0
    %2932 = vmatpush1.msra.mxu0 0.0
    %2933 = vmatprep.subr.mxu0 0.0
    %2934 = vmatpush1.msra.mxu0 0.0
    %2935 = vmatprep.subr.mxu0 0.0
    %2936 = vmatpush1.msra.mxu0 0.0
    %2937 = vmatprep.subr.mxu0 0.0
    %2938 = vmatpush1.msra.mxu0 0.0
    %2939 = vmatprep.subr.mxu0 0.0
    %2940 = vmatpush1.msra.mxu0 0.0
    %2941 = vmatprep.subr.mxu0 0.0
    %2942 = vmatpush1.msra.mxu0 0.0
    %2943 = vmatprep.subr.mxu0 0.0
    %2944 = vmatpush1.msra.mxu0 0.0
    %2945 = vmatprep.subr.mxu0 0.0
    %2946 = vmatpush1.msra.mxu0 0.0
    %2947 = vmatprep.subr.mxu0 0.0
    %2948 = vmatpush1.msra.mxu0 0.0
    %2949 = vmatprep.subr.mxu0 0.0
    %2950 = vmatpush1.msra.mxu0 0.0
    %2951 = vmatprep.subr.mxu0 0.0
    %2952 = vmatpush1.msra.mxu0 0.0
    %2953 = vmatprep.subr.mxu0 0.0
    %2954 = vmatpush1.msra.mxu0 0.0
    %2955 = vmatprep.subr.mxu0 0.0
    %2956 = vmatpush1.msra.mxu0 0.0
    %2957 = vmatprep.mubr.f32.mxu0 0.0
    %2958 = vmatmul.mubr.f32.gmra.mrb[0].mxu0 %v2888
    %v2959 = vpop.f32.mrb[0].mxu0
    %v2960 = vadd.f32 0.0, %v2959
    %v2961 = vpop.f32.mrb[0].mxu0
    %2962 = vdwg.mxu0
    %v2964 = vsel %vm2505, %v2503, 0
    %v2967 = vsel %vm2509, %v1718, 0
    %2969 = vmatprep.subr.mxu0 0.0
    %2970 = vmatpush1.msra.mxu0 %v2967
    %2971 = vmatprep.subr.mxu0 0.0
    %2972 = vmatpush1.msra.mxu0 0.0
    %2973 = vmatprep.subr.mxu0 0.0
    %2974 = vmatpush1.msra.mxu0 0.0
    %2975 = vmatprep.subr.mxu0 0.0
    %2976 = vmatpush1.msra.mxu0 0.0
    %2977 = vmatprep.subr.mxu0 0.0
    %2978 = vmatpush1.msra.mxu0 0.0
    %2979 = vmatprep.subr.mxu0 0.0
    %2980 = vmatpush1.msra.mxu0 0.0
    %2981 = vmatprep.subr.mxu0 0.0
    %2982 = vmatpush1.msra.mxu0 0.0
    %2983 = vmatprep.subr.mxu0 0.0
    %2984 = vmatpush1.msra.mxu0 0.0
    %2985 = vmatprep.subr.mxu0 0.0
    %2986 = vmatpush1.msra.mxu0 0.0
    %2987 = vmatprep.subr.mxu0 0.0
    %2988 = vmatpush1.msra.mxu0 0.0
    %2989 = vmatprep.subr.mxu0 0.0
    %2990 = vmatpush1.msra.mxu0 0.0
    %2991 = vmatprep.subr.mxu0 0.0
    %2992 = vmatpush1.msra.mxu0 0.0
    %2993 = vmatprep.subr.mxu0 0.0
    %2994 = vmatpush1.msra.mxu0 0.0
    %2995 = vmatprep.subr.mxu0 0.0
    %2996 = vmatpush1.msra.mxu0 0.0
    %2997 = vmatprep.subr.mxu0 0.0
    %2998 = vmatpush1.msra.mxu0 0.0
    %2999 = vmatprep.subr.mxu0 0.0
    %3000 = vmatpush1.msra.mxu0 0.0
    %3001 = vmatprep.subr.mxu0 0.0
    %3002 = vmatpush1.msra.mxu0 0.0
    %3003 = vmatprep.subr.mxu0 0.0
    %3004 = vmatpush1.msra.mxu0 0.0
    %3005 = vmatprep.subr.mxu0 0.0
    %3006 = vmatpush1.msra.mxu0 0.0
    %3007 = vmatprep.subr.mxu0 0.0
    %3008 = vmatpush1.msra.mxu0 0.0
    %3009 = vmatprep.subr.mxu0 0.0
    %3010 = vmatpush1.msra.mxu0 0.0
    %3011 = vmatprep.subr.mxu0 0.0
    %3012 = vmatpush1.msra.mxu0 0.0
    %3013 = vmatprep.subr.mxu0 0.0
    %3014 = vmatpush1.msra.mxu0 0.0
    %3015 = vmatprep.subr.mxu0 0.0
    %3016 = vmatpush1.msra.mxu0 0.0
    %3017 = vmatprep.subr.mxu0 0.0
    %3018 = vmatpush1.msra.mxu0 0.0
    %3019 = vmatprep.subr.mxu0 0.0
    %3020 = vmatpush1.msra.mxu0 0.0
    %3021 = vmatprep.subr.mxu0 0.0
    %3022 = vmatpush1.msra.mxu0 0.0
    %3023 = vmatprep.subr.mxu0 0.0
    %3024 = vmatpush1.msra.mxu0 0.0
    %3025 = vmatprep.subr.mxu0 0.0
    %3026 = vmatpush1.msra.mxu0 0.0
    %3027 = vmatprep.subr.mxu0 0.0
    %3028 = vmatpush1.msra.mxu0 0.0
    %3029 = vmatprep.subr.mxu0 0.0
    %3030 = vmatpush1.msra.mxu0 0.0
    %3031 = vmatprep.subr.mxu0 0.0
    %3032 = vmatpush1.msra.mxu0 0.0
    %3033 = vmatprep.mubr.f32.mxu0 0.0
    %3034 = vmatmul.mubr.f32.gmra.mrb[0].mxu0 %v2964
    %v3035 = vpop.f32.mrb[0].mxu0
    %v3036 = vadd.f32 0.0, %v3035
    %v3037 = vpop.f32.mrb[0].mxu0
    %3038 = vdwg.mxu0
    %v3040 = vsel %vm2505, %v2504, 0
    %v3043 = vsel %vm2509, %v1788, 0
    %3045 = vmatprep.subr.mxu0 0.0
    %3046 = vmatpush1.msra.mxu0 %v3043
    %3047 = vmatprep.subr.mxu0 0.0
    %3048 = vmatpush1.msra.mxu0 0.0
    %3049 = vmatprep.subr.mxu0 0.0
    %3050 = vmatpush1.msra.mxu0 0.0
    %3051 = vmatprep.subr.mxu0 0.0
    %3052 = vmatpush1.msra.mxu0 0.0
    %3053 = vmatprep.subr.mxu0 0.0
    %3054 = vmatpush1.msra.mxu0 0.0
    %3055 = vmatprep.subr.mxu0 0.0
    %3056 = vmatpush1.msra.mxu0 0.0
    %3057 = vmatprep.subr.mxu0 0.0
    %3058 = vmatpush1.msra.mxu0 0.0
    %3059 = vmatprep.subr.mxu0 0.0
    %3060 = vmatpush1.msra.mxu0 0.0
    %3061 = vmatprep.subr.mxu0 0.0
    %3062 = vmatpush1.msra.mxu0 0.0
    %3063 = vmatprep.subr.mxu0 0.0
    %3064 = vmatpush1.msra.mxu0 0.0
    %3065 = vmatprep.subr.mxu0 0.0
    %3066 = vmatpush1.msra.mxu0 0.0
    %3067 = vmatprep.subr.mxu0 0.0
    %3068 = vmatpush1.msra.mxu0 0.0
    %3069 = vmatprep.subr.mxu0 0.0
    %3070 = vmatpush1.msra.mxu0 0.0
    %3071 = vmatprep.subr.mxu0 0.0
    %3072 = vmatpush1.msra.mxu0 0.0
    %3073 = vmatprep.subr.mxu0 0.0
    %3074 = vmatpush1.msra.mxu0 0.0
    %3075 = vmatprep.subr.mxu0 0.0
    %3076 = vmatpush1.msra.mxu0 0.0
    %3077 = vmatprep.subr.mxu0 0.0
    %3078 = vmatpush1.msra.mxu0 0.0
    %3079 = vmatprep.subr.mxu0 0.0
    %3080 = vmatpush1.msra.mxu0 0.0
    %3081 = vmatprep.subr.mxu0 0.0
    %3082 = vmatpush1.msra.mxu0 0.0
    %3083 = vmatprep.subr.mxu0 0.0
    %3084 = vmatpush1.msra.mxu0 0.0
    %3085 = vmatprep.subr.mxu0 0.0
    %3086 = vmatpush1.msra.mxu0 0.0
    %3087 = vmatprep.subr.mxu0 0.0
    %3088 = vmatpush1.msra.mxu0 0.0
    %3089 = vmatprep.subr.mxu0 0.0
    %3090 = vmatpush1.msra.mxu0 0.0
    %3091 = vmatprep.subr.mxu0 0.0
    %3092 = vmatpush1.msra.mxu0 0.0
    %3093 = vmatprep.subr.mxu0 0.0
    %3094 = vmatpush1.msra.mxu0 0.0
    %3095 = vmatprep.subr.mxu0 0.0
    %3096 = vmatpush1.msra.mxu0 0.0
    %3097 = vmatprep.subr.mxu0 0.0
    %3098 = vmatpush1.msra.mxu0 0.0
    %3099 = vmatprep.subr.mxu0 0.0
    %3100 = vmatpush1.msra.mxu0 0.0
    %3101 = vmatprep.subr.mxu0 0.0
    %3102 = vmatpush1.msra.mxu0 0.0
    %3103 = vmatprep.subr.mxu0 0.0
    %3104 = vmatpush1.msra.mxu0 0.0
    %3105 = vmatprep.subr.mxu0 0.0
    %3106 = vmatpush1.msra.mxu0 0.0
    %3107 = vmatprep.subr.mxu0 0.0
    %3108 = vmatpush1.msra.mxu0 0.0
    %3109 = vmatprep.mubr.f32.mxu0 0.0
    %3110 = vmatmul.mubr.f32.gmra.mrb[0].mxu0 %v3040
    %v3111 = vpop.f32.mrb[0].mxu0
    %v3112 = vadd.f32 0.0, %v3111
    %v3113 = vpop.f32.mrb[0].mxu0
    %3114 = vdwg.mxu0
    %v3116 = vsel %vm1791, %v2580, 0
    %3118 = vmatprep.subr.mxu0 0.0
    %3119 = vmatpush1.msra.mxu0 %v88
    %3120 = vmatprep.subr.mxu0 0.0
    %3121 = vmatpush1.msra.mxu0 0.0
    %3122 = vmatprep.subr.mxu0 0.0
    %3123 = vmatpush1.msra.mxu0 0.0
    %3124 = vmatprep.subr.mxu0 0.0
    %3125 = vmatpush1.msra.mxu0 0.0
    %3126 = vmatprep.subr.mxu0 0.0
    %3127 = vmatpush1.msra.mxu0 0.0
    %3128 = vmatprep.subr.mxu0 0.0
    %3129 = vmatpush1.msra.mxu0 0.0
    %3130 = vmatprep.subr.mxu0 0.0
    %3131 = vmatpush1.msra.mxu0 0.0
    %3132 = vmatprep.subr.mxu0 0.0
    %3133 = vmatpush1.msra.mxu0 0.0
    %3134 = vmatprep.subr.mxu0 0.0
    %3135 = vmatpush1.msra.mxu0 0.0
    %3136 = vmatprep.subr.mxu0 0.0
    %3137 = vmatpush1.msra.mxu0 0.0
    %3138 = vmatprep.subr.mxu0 0.0
    %3139 = vmatpush1.msra.mxu0 0.0
    %3140 = vmatprep.subr.mxu0 0.0
    %3141 = vmatpush1.msra.mxu0 0.0
    %3142 = vmatprep.subr.mxu0 0.0
    %3143 = vmatpush1.msra.mxu0 0.0
    %3144 = vmatprep.subr.mxu0 0.0
    %3145 = vmatpush1.msra.mxu0 0.0
    %3146 = vmatprep.subr.mxu0 0.0
    %3147 = vmatpush1.msra.mxu0 0.0
    %3148 = vmatprep.subr.mxu0 0.0
    %3149 = vmatpush1.msra.mxu0 0.0
    %3150 = vmatprep.subr.mxu0 0.0
    %3151 = vmatpush1.msra.mxu0 0.0
    %3152 = vmatprep.subr.mxu0 0.0
    %3153 = vmatpush1.msra.mxu0 0.0
    %3154 = vmatprep.subr.mxu0 0.0
    %3155 = vmatpush1.msra.mxu0 0.0
    %3156 = vmatprep.subr.mxu0 0.0
    %3157 = vmatpush1.msra.mxu0 0.0
    %3158 = vmatprep.subr.mxu0 0.0
    %3159 = vmatpush1.msra.mxu0 0.0
    %3160 = vmatprep.subr.mxu0 0.0
    %3161 = vmatpush1.msra.mxu0 0.0
    %3162 = vmatprep.subr.mxu0 0.0
    %3163 = vmatpush1.msra.mxu0 0.0
    %3164 = vmatprep.subr.mxu0 0.0
    %3165 = vmatpush1.msra.mxu0 0.0
    %3166 = vmatprep.subr.mxu0 0.0
    %3167 = vmatpush1.msra.mxu0 0.0
    %3168 = vmatprep.subr.mxu0 0.0
    %3169 = vmatpush1.msra.mxu0 0.0
    %3170 = vmatprep.subr.mxu0 0.0
    %3171 = vmatpush1.msra.mxu0 0.0
    %3172 = vmatprep.subr.mxu0 0.0
    %3173 = vmatpush1.msra.mxu0 0.0
    %3174 = vmatprep.subr.mxu0 0.0
    %3175 = vmatpush1.msra.mxu0 0.0
    %3176 = vmatprep.subr.mxu0 0.0
    %3177 = vmatpush1.msra.mxu0 0.0
    %3178 = vmatprep.subr.mxu0 0.0
    %3179 = vmatpush1.msra.mxu0 0.0
    %3180 = vmatprep.subr.mxu0 0.0
    %3181 = vmatpush1.msra.mxu0 0.0
    %3182 = vmatprep.mubr.f32.mxu0 0.0
    %3183 = vmatmul.mubr.f32.gmra.mrb[0].mxu0 %v3116
    %v3184 = vpop.f32.mrb[0].mxu0
    %v3185 = vadd.f32 0.0, %v3184
    %v3186 = vpop.f32.mrb[0].mxu0
    %3187 = vdwg.mxu0
    %v3189 = vsel %vm1791, %v2656, 0
    %3191 = vmatprep.subr.mxu0 0.0
    %3192 = vmatpush1.msra.mxu0 %v89
    %3193 = vmatprep.subr.mxu0 0.0
    %3194 = vmatpush1.msra.mxu0 0.0
    %3195 = vmatprep.subr.mxu0 0.0
    %3196 = vmatpush1.msra.mxu0 0.0
    %3197 = vmatprep.subr.mxu0 0.0
    %3198 = vmatpush1.msra.mxu0 0.0
    %3199 = vmatprep.subr.mxu0 0.0
    %3200 = vmatpush1.msra.mxu0 0.0
    %3201 = vmatprep.subr.mxu0 0.0
    %3202 = vmatpush1.msra.mxu0 0.0
    %3203 = vmatprep.subr.mxu0 0.0
    %3204 = vmatpush1.msra.mxu0 0.0
    %3205 = vmatprep.subr.mxu0 0.0
    %3206 = vmatpush1.msra.mxu0 0.0
    %3207 = vmatprep.subr.mxu0 0.0
    %3208 = vmatpush1.msra.mxu0 0.0
    %3209 = vmatprep.subr.mxu0 0.0
    %3210 = vmatpush1.msra.mxu0 0.0
    %3211 = vmatprep.subr.mxu0 0.0
    %3212 = vmatpush1.msra.mxu0 0.0
    %3213 = vmatprep.subr.mxu0 0.0
    %3214 = vmatpush1.msra.mxu0 0.0
    %3215 = vmatprep.subr.mxu0 0.0
    %3216 = vmatpush1.msra.mxu0 0.0
    %3217 = vmatprep.subr.mxu0 0.0
    %3218 = vmatpush1.msra.mxu0 0.0
    %3219 = vmatprep.subr.mxu0 0.0
    %3220 = vmatpush1.msra.mxu0 0.0
    %3221 = vmatprep.subr.mxu0 0.0
    %3222 = vmatpush1.msra.mxu0 0.0
    %3223 = vmatprep.subr.mxu0 0.0
    %3224 = vmatpush1.msra.mxu0 0.0
    %3225 = vmatprep.subr.mxu0 0.0
    %3226 = vmatpush1.msra.mxu0 0.0
    %3227 = vmatprep.subr.mxu0 0.0
    %3228 = vmatpush1.msra.mxu0 0.0
    %3229 = vmatprep.subr.mxu0 0.0
    %3230 = vmatpush1.msra.mxu0 0.0
    %3231 = vmatprep.subr.mxu0 0.0
    %3232 = vmatpush1.msra.mxu0 0.0
    %3233 = vmatprep.subr.mxu0 0.0
    %3234 = vmatpush1.msra.mxu0 0.0
    %3235 = vmatprep.subr.mxu0 0.0
    %3236 = vmatpush1.msra.mxu0 0.0
    %3237 = vmatprep.subr.mxu0 0.0
    %3238 = vmatpush1.msra.mxu0 0.0
    %3239 = vmatprep.subr.mxu0 0.0
    %3240 = vmatpush1.msra.mxu0 0.0
    %3241 = vmatprep.subr.mxu0 0.0
    %3242 = vmatpush1.msra.mxu0 0.0
    %3243 = vmatprep.subr.mxu0 0.0
    %3244 = vmatpush1.msra.mxu0 0.0
    %3245 = vmatprep.subr.mxu0 0.0
    %3246 = vmatpush1.msra.mxu0 0.0
    %3247 = vmatprep.subr.mxu0 0.0
    %3248 = vmatpush1.msra.mxu0 0.0
    %3249 = vmatprep.subr.mxu0 0.0
    %3250 = vmatpush1.msra.mxu0 0.0
    %3251 = vmatprep.subr.mxu0 0.0
    %3252 = vmatpush1.msra.mxu0 0.0
    %3253 = vmatprep.subr.mxu0 0.0
    %3254 = vmatpush1.msra.mxu0 0.0
    %3255 = vmatprep.mubr.f32.mxu0 0.0
    %3256 = vmatmul.mubr.f32.gmra.mrb[0].mxu0 %v3189
    %v3257 = vpop.f32.mrb[0].mxu0
    %v3258 = vadd.f32 0.0, %v3257
    %v3259 = vpop.f32.mrb[0].mxu0
    %3260 = vdwg.mxu0
    %v3262 = vsel %vm1791, %v2732, 0
    %3264 = vmatprep.subr.mxu0 0.0
    %3265 = vmatpush1.msra.mxu0 %v90
    %3266 = vmatprep.subr.mxu0 0.0
    %3267 = vmatpush1.msra.mxu0 0.0
    %3268 = vmatprep.subr.mxu0 0.0
    %3269 = vmatpush1.msra.mxu0 0.0
    %3270 = vmatprep.subr.mxu0 0.0
    %3271 = vmatpush1.msra.mxu0 0.0
    %3272 = vmatprep.subr.mxu0 0.0
    %3273 = vmatpush1.msra.mxu0 0.0
    %3274 = vmatprep.subr.mxu0 0.0
    %3275 = vmatpush1.msra.mxu0 0.0
    %3276 = vmatprep.subr.mxu0 0.0
    %3277 = vmatpush1.msra.mxu0 0.0
    %3278 = vmatprep.subr.mxu0 0.0
    %3279 = vmatpush1.msra.mxu0 0.0
    %3280 = vmatprep.subr.mxu0 0.0
    %3281 = vmatpush1.msra.mxu0 0.0
    %3282 = vmatprep.subr.mxu0 0.0
    %3283 = vmatpush1.msra.mxu0 0.0
    %3284 = vmatprep.subr.mxu0 0.0
    %3285 = vmatpush1.msra.mxu0 0.0
    %3286 = vmatprep.subr.mxu0 0.0
    %3287 = vmatpush1.msra.mxu0 0.0
    %3288 = vmatprep.subr.mxu0 0.0
    %3289 = vmatpush1.msra.mxu0 0.0
    %3290 = vmatprep.subr.mxu0 0.0
    %3291 = vmatpush1.msra.mxu0 0.0
    %3292 = vmatprep.subr.mxu0 0.0
    %3293 = vmatpush1.msra.mxu0 0.0
    %3294 = vmatprep.subr.mxu0 0.0
    %3295 = vmatpush1.msra.mxu0 0.0
    %3296 = vmatprep.subr.mxu0 0.0
    %3297 = vmatpush1.msra.mxu0 0.0
    %3298 = vmatprep.subr.mxu0 0.0
    %3299 = vmatpush1.msra.mxu0 0.0
    %3300 = vmatprep.subr.mxu0 0.0
    %3301 = vmatpush1.msra.mxu0 0.0
    %3302 = vmatprep.subr.mxu0 0.0
    %3303 = vmatpush1.msra.mxu0 0.0
    %3304 = vmatprep.subr.mxu0 0.0
    %3305 = vmatpush1.msra.mxu0 0.0
    %3306 = vmatprep.subr.mxu0 0.0
    %3307 = vmatpush1.msra.mxu0 0.0
    %3308 = vmatprep.subr.mxu0 0.0
    %3309 = vmatpush1.msra.mxu0 0.0
    %3310 = vmatprep.subr.mxu0 0.0
    %3311 = vmatpush1.msra.mxu0 0.0
    %3312 = vmatprep.subr.mxu0 0.0
    %3313 = vmatpush1.msra.mxu0 0.0
    %3314 = vmatprep.subr.mxu0 0.0
    %3315 = vmatpush1.msra.mxu0 0.0
    %3316 = vmatprep.subr.mxu0 0.0
    %3317 = vmatpush1.msra.mxu0 0.0
    %3318 = vmatprep.subr.mxu0 0.0
    %3319 = vmatpush1.msra.mxu0 0.0
    %3320 = vmatprep.subr.mxu0 0.0
    %3321 = vmatpush1.msra.mxu0 0.0
    %3322 = vmatprep.subr.mxu0 0.0
    %3323 = vmatpush1.msra.mxu0 0.0
    %3324 = vmatprep.subr.mxu0 0.0
    %3325 = vmatpush1.msra.mxu0 0.0
    %3326 = vmatprep.subr.mxu0 0.0
    %3327 = vmatpush1.msra.mxu0 0.0
    %3328 = vmatprep.mubr.f32.mxu0 0.0
    %3329 = vmatmul.mubr.f32.gmra.mrb[0].mxu0 %v3262
    %v3330 = vpop.f32.mrb[0].mxu0
    %v3331 = vadd.f32 0.0, %v3330
    %v3332 = vpop.f32.mrb[0].mxu0
    %3333 = vdwg.mxu0
    %v3335 = vsel %vm1791, %v2808, 0
    %3337 = vmatprep.subr.mxu0 0.0
    %3338 = vmatpush1.msra.mxu0 %v91
    %3339 = vmatprep.subr.mxu0 0.0
    %3340 = vmatpush1.msra.mxu0 0.0
    %3341 = vmatprep.subr.mxu0 0.0
    %3342 = vmatpush1.msra.mxu0 0.0
    %3343 = vmatprep.subr.mxu0 0.0
    %3344 = vmatpush1.msra.mxu0 0.0
    %3345 = vmatprep.subr.mxu0 0.0
    %3346 = vmatpush1.msra.mxu0 0.0
    %3347 = vmatprep.subr.mxu0 0.0
    %3348 = vmatpush1.msra.mxu0 0.0
    %3349 = vmatprep.subr.mxu0 0.0
    %3350 = vmatpush1.msra.mxu0 0.0
    %3351 = vmatprep.subr.mxu0 0.0
    %3352 = vmatpush1.msra.mxu0 0.0
    %3353 = vmatprep.subr.mxu0 0.0
    %3354 = vmatpush1.msra.mxu0 0.0
    %3355 = vmatprep.subr.mxu0 0.0
    %3356 = vmatpush1.msra.mxu0 0.0
    %3357 = vmatprep.subr.mxu0 0.0
    %3358 = vmatpush1.msra.mxu0 0.0
    %3359 = vmatprep.subr.mxu0 0.0
    %3360 = vmatpush1.msra.mxu0 0.0
    %3361 = vmatprep.subr.mxu0 0.0
    %3362 = vmatpush1.msra.mxu0 0.0
    %3363 = vmatprep.subr.mxu0 0.0
    %3364 = vmatpush1.msra.mxu0 0.0
    %3365 = vmatprep.subr.mxu0 0.0
    %3366 = vmatpush1.msra.mxu0 0.0
    %3367 = vmatprep.subr.mxu0 0.0
    %3368 = vmatpush1.msra.mxu0 0.0
    %3369 = vmatprep.subr.mxu0 0.0
    %3370 = vmatpush1.msra.mxu0 0.0
    %3371 = vmatprep.subr.mxu0 0.0
    %3372 = vmatpush1.msra.mxu0 0.0
    %3373 = vmatprep.subr.mxu0 0.0
    %3374 = vmatpush1.msra.mxu0 0.0
    %3375 = vmatprep.subr.mxu0 0.0
    %3376 = vmatpush1.msra.mxu0 0.0
    %3377 = vmatprep.subr.mxu0 0.0
    %3378 = vmatpush1.msra.mxu0 0.0
    %3379 = vmatprep.subr.mxu0 0.0
    %3380 = vmatpush1.msra.mxu0 0.0
    %3381 = vmatprep.subr.mxu0 0.0
    %3382 = vmatpush1.msra.mxu0 0.0
    %3383 = vmatprep.subr.mxu0 0.0
    %3384 = vmatpush1.msra.mxu0 0.0
    %3385 = vmatprep.subr.mxu0 0.0
    %3386 = vmatpush1.msra.mxu0 0.0
    %3387 = vmatprep.subr.mxu0 0.0
    %3388 = vmatpush1.msra.mxu0 0.0
    %3389 = vmatprep.subr.mxu0 0.0
    %3390 = vmatpush1.msra.mxu0 0.0
    %3391 = vmatprep.subr.mxu0 0.0
    %3392 = vmatpush1.msra.mxu0 0.0
    %3393 = vmatprep.subr.mxu0 0.0
    %3394 = vmatpush1.msra.mxu0 0.0
    %3395 = vmatprep.subr.mxu0 0.0
    %3396 = vmatpush1.msra.mxu0 0.0
    %3397 = vmatprep.subr.mxu0 0.0
    %3398 = vmatpush1.msra.mxu0 0.0
    %3399 = vmatprep.subr.mxu0 0.0
    %3400 = vmatpush1.msra.mxu0 0.0
    %3401 = vmatprep.mubr.f32.mxu0 0.0
    %3402 = vmatmul.mubr.f32.gmra.mrb[0].mxu0 %v3335
    %v3403 = vpop.f32.mrb[0].mxu0
    %v3404 = vadd.f32 0.0, %v3403
    %v3405 = vpop.f32.mrb[0].mxu0
    %3406 = vdwg.mxu0
    %v3408 = vsel %vm1791, %v2884, 0
    %3410 = vmatprep.subr.mxu0 0.0
    %3411 = vmatpush1.msra.mxu0 %v88
    %3412 = vmatprep.subr.mxu0 0.0
    %3413 = vmatpush1.msra.mxu0 0.0
    %3414 = vmatprep.subr.mxu0 0.0
    %3415 = vmatpush1.msra.mxu0 0.0
    %3416 = vmatprep.subr.mxu0 0.0
    %3417 = vmatpush1.msra.mxu0 0.0
    %3418 = vmatprep.subr.mxu0 0.0
    %3419 = vmatpush1.msra.mxu0 0.0
    %3420 = vmatprep.subr.mxu0 0.0
    %3421 = vmatpush1.msra.mxu0 0.0
    %3422 = vmatprep.subr.mxu0 0.0
    %3423 = vmatpush1.msra.mxu0 0.0
    %3424 = vmatprep.subr.mxu0 0.0
    %3425 = vmatpush1.msra.mxu0 0.0
    %3426 = vmatprep.subr.mxu0 0.0
    %3427 = vmatpush1.msra.mxu0 0.0
    %3428 = vmatprep.subr.mxu0 0.0
    %3429 = vmatpush1.msra.mxu0 0.0
    %3430 = vmatprep.subr.mxu0 0.0
    %3431 = vmatpush1.msra.mxu0 0.0
    %3432 = vmatprep.subr.mxu0 0.0
    %3433 = vmatpush1.msra.mxu0 0.0
    %3434 = vmatprep.subr.mxu0 0.0
    %3435 = vmatpush1.msra.mxu0 0.0
    %3436 = vmatprep.subr.mxu0 0.0
    %3437 = vmatpush1.msra.mxu0 0.0
    %3438 = vmatprep.subr.mxu0 0.0
    %3439 = vmatpush1.msra.mxu0 0.0
    %3440 = vmatprep.subr.mxu0 0.0
    %3441 = vmatpush1.msra.mxu0 0.0
    %3442 = vmatprep.subr.mxu0 0.0
    %3443 = vmatpush1.msra.mxu0 0.0
    %3444 = vmatprep.subr.mxu0 0.0
    %3445 = vmatpush1.msra.mxu0 0.0
    %3446 = vmatprep.subr.mxu0 0.0
    %3447 = vmatpush1.msra.mxu0 0.0
    %3448 = vmatprep.subr.mxu0 0.0
    %3449 = vmatpush1.msra.mxu0 0.0
    %3450 = vmatprep.subr.mxu0 0.0
    %3451 = vmatpush1.msra.mxu0 0.0
    %3452 = vmatprep.subr.mxu0 0.0
    %3453 = vmatpush1.msra.mxu0 0.0
    %3454 = vmatprep.subr.mxu0 0.0
    %3455 = vmatpush1.msra.mxu0 0.0
    %3456 = vmatprep.subr.mxu0 0.0
    %3457 = vmatpush1.msra.mxu0 0.0
    %3458 = vmatprep.subr.mxu0 0.0
    %3459 = vmatpush1.msra.mxu0 0.0
    %3460 = vmatprep.subr.mxu0 0.0
    %3461 = vmatpush1.msra.mxu0 0.0
    %3462 = vmatprep.subr.mxu0 0.0
    %3463 = vmatpush1.msra.mxu0 0.0
    %3464 = vmatprep.subr.mxu0 0.0
    %3465 = vmatpush1.msra.mxu0 0.0
    %3466 = vmatprep.subr.mxu0 0.0
    %3467 = vmatpush1.msra.mxu0 0.0
    %3468 = vmatprep.subr.mxu0 0.0
    %3469 = vmatpush1.msra.mxu0 0.0
    %3470 = vmatprep.subr.mxu0 0.0
    %3471 = vmatpush1.msra.mxu0 0.0
    %3472 = vmatprep.subr.mxu0 0.0
    %3473 = vmatpush1.msra.mxu0 0.0
    %3474 = vmatprep.mubr.f32.mxu0 0.0
    %3475 = vmatmul.mubr.f32.gmra.mrb[0].mxu0 %v3408
    %v3476 = vpop.f32.mrb[0].mxu0
    %v3477 = vadd.f32 0.0, %v3476
    %v3478 = vpop.f32.mrb[0].mxu0
    %3479 = vdwg.mxu0
    %v3481 = vsel %vm1791, %v2960, 0
    %3483 = vmatprep.subr.mxu0 0.0
    %3484 = vmatpush1.msra.mxu0 %v89
    %3485 = vmatprep.subr.mxu0 0.0
    %3486 = vmatpush1.msra.mxu0 0.0
    %3487 = vmatprep.subr.mxu0 0.0
    %3488 = vmatpush1.msra.mxu0 0.0
    %3489 = vmatprep.subr.mxu0 0.0
    %3490 = vmatpush1.msra.mxu0 0.0
    %3491 = vmatprep.subr.mxu0 0.0
    %3492 = vmatpush1.msra.mxu0 0.0
    %3493 = vmatprep.subr.mxu0 0.0
    %3494 = vmatpush1.msra.mxu0 0.0
    %3495 = vmatprep.subr.mxu0 0.0
    %3496 = vmatpush1.msra.mxu0 0.0
    %3497 = vmatprep.subr.mxu0 0.0
    %3498 = vmatpush1.msra.mxu0 0.0
    %3499 = vmatprep.subr.mxu0 0.0
    %3500 = vmatpush1.msra.mxu0 0.0
    %3501 = vmatprep.subr.mxu0 0.0
    %3502 = vmatpush1.msra.mxu0 0.0
    %3503 = vmatprep.subr.mxu0 0.0
    %3504 = vmatpush1.msra.mxu0 0.0
    %3505 = vmatprep.subr.mxu0 0.0
    %3506 = vmatpush1.msra.mxu0 0.0
    %3507 = vmatprep.subr.mxu0 0.0
    %3508 = vmatpush1.msra.mxu0 0.0
    %3509 = vmatprep.subr.mxu0 0.0
    %3510 = vmatpush1.msra.mxu0 0.0
    %3511 = vmatprep.subr.mxu0 0.0
    %3512 = vmatpush1.msra.mxu0 0.0
    %3513 = vmatprep.subr.mxu0 0.0
    %3514 = vmatpush1.msra.mxu0 0.0
    %3515 = vmatprep.subr.mxu0 0.0
    %3516 = vmatpush1.msra.mxu0 0.0
    %3517 = vmatprep.subr.mxu0 0.0
    %3518 = vmatpush1.msra.mxu0 0.0
    %3519 = vmatprep.subr.mxu0 0.0
    %3520 = vmatpush1.msra.mxu0 0.0
    %3521 = vmatprep.subr.mxu0 0.0
    %3522 = vmatpush1.msra.mxu0 0.0
    %3523 = vmatprep.subr.mxu0 0.0
    %3524 = vmatpush1.msra.mxu0 0.0
    %3525 = vmatprep.subr.mxu0 0.0
    %3526 = vmatpush1.msra.mxu0 0.0
    %3527 = vmatprep.subr.mxu0 0.0
    %3528 = vmatpush1.msra.mxu0 0.0
    %3529 = vmatprep.subr.mxu0 0.0
    %3530 = vmatpush1.msra.mxu0 0.0
    %3531 = vmatprep.subr.mxu0 0.0
    %3532 = vmatpush1.msra.mxu0 0.0
    %3533 = vmatprep.subr.mxu0 0.0
    %3534 = vmatpush1.msra.mxu0 0.0
    %3535 = vmatprep.subr.mxu0 0.0
    %3536 = vmatpush1.msra.mxu0 0.0
    %3537 = vmatprep.subr.mxu0 0.0
    %3538 = vmatpush1.msra.mxu0 0.0
    %3539 = vmatprep.subr.mxu0 0.0
    %3540 = vmatpush1.msra.mxu0 0.0
    %3541 = vmatprep.subr.mxu0 0.0
    %3542 = vmatpush1.msra.mxu0 0.0
    %3543 = vmatprep.subr.mxu0 0.0
    %3544 = vmatpush1.msra.mxu0 0.0
    %3545 = vmatprep.subr.mxu0 0.0
    %3546 = vmatpush1.msra.mxu0 0.0
    %3547 = vmatprep.mubr.f32.mxu0 0.0
    %3548 = vmatmul.mubr.f32.gmra.mrb[0].mxu0 %v3481
    %v3549 = vpop.f32.mrb[0].mxu0
    %v3550 = vadd.f32 0.0, %v3549
    %v3551 = vpop.f32.mrb[0].mxu0
    %3552 = vdwg.mxu0
    %v3554 = vsel %vm1791, %v3036, 0
    %3556 = vmatprep.subr.mxu0 0.0
    %3557 = vmatpush1.msra.mxu0 %v90
    %3558 = vmatprep.subr.mxu0 0.0
    %3559 = vmatpush1.msra.mxu0 0.0
    %3560 = vmatprep.subr.mxu0 0.0
    %3561 = vmatpush1.msra.mxu0 0.0
    %3562 = vmatprep.subr.mxu0 0.0
    %3563 = vmatpush1.msra.mxu0 0.0
    %3564 = vmatprep.subr.mxu0 0.0
    %3565 = vmatpush1.msra.mxu0 0.0
    %3566 = vmatprep.subr.mxu0 0.0
    %3567 = vmatpush1.msra.mxu0 0.0
    %3568 = vmatprep.subr.mxu0 0.0
    %3569 = vmatpush1.msra.mxu0 0.0
    %3570 = vmatprep.subr.mxu0 0.0
    %3571 = vmatpush1.msra.mxu0 0.0
    %3572 = vmatprep.subr.mxu0 0.0
    %3573 = vmatpush1.msra.mxu0 0.0
    %3574 = vmatprep.subr.mxu0 0.0
    %3575 = vmatpush1.msra.mxu0 0.0
    %3576 = vmatprep.subr.mxu0 0.0
    %3577 = vmatpush1.msra.mxu0 0.0
    %3578 = vmatprep.subr.mxu0 0.0
    %3579 = vmatpush1.msra.mxu0 0.0
    %3580 = vmatprep.subr.mxu0 0.0
    %3581 = vmatpush1.msra.mxu0 0.0
    %3582 = vmatprep.subr.mxu0 0.0
    %3583 = vmatpush1.msra.mxu0 0.0
    %3584 = vmatprep.subr.mxu0 0.0
    %3585 = vmatpush1.msra.mxu0 0.0
    %3586 = vmatprep.subr.mxu0 0.0
    %3587 = vmatpush1.msra.mxu0 0.0
    %3588 = vmatprep.subr.mxu0 0.0
    %3589 = vmatpush1.msra.mxu0 0.0
    %3590 = vmatprep.subr.mxu0 0.0
    %3591 = vmatpush1.msra.mxu0 0.0
    %3592 = vmatprep.subr.mxu0 0.0
    %3593 = vmatpush1.msra.mxu0 0.0
    %3594 = vmatprep.subr.mxu0 0.0
    %3595 = vmatpush1.msra.mxu0 0.0
    %3596 = vmatprep.subr.mxu0 0.0
    %3597 = vmatpush1.msra.mxu0 0.0
    %3598 = vmatprep.subr.mxu0 0.0
    %3599 = vmatpush1.msra.mxu0 0.0
    %3600 = vmatprep.subr.mxu0 0.0
    %3601 = vmatpush1.msra.mxu0 0.0
    %3602 = vmatprep.subr.mxu0 0.0
    %3603 = vmatpush1.msra.mxu0 0.0
    %3604 = vmatprep.subr.mxu0 0.0
    %3605 = vmatpush1.msra.mxu0 0.0
    %3606 = vmatprep.subr.mxu0 0.0
    %3607 = vmatpush1.msra.mxu0 0.0
    %3608 = vmatprep.subr.mxu0 0.0
    %3609 = vmatpush1.msra.mxu0 0.0
    %3610 = vmatprep.subr.mxu0 0.0
    %3611 = vmatpush1.msra.mxu0 0.0
    %3612 = vmatprep.subr.mxu0 0.0
    %3613 = vmatpush1.msra.mxu0 0.0
    %3614 = vmatprep.subr.mxu0 0.0
    %3615 = vmatpush1.msra.mxu0 0.0
    %3616 = vmatprep.subr.mxu0 0.0
    %3617 = vmatpush1.msra.mxu0 0.0
    %3618 = vmatprep.subr.mxu0 0.0
    %3619 = vmatpush1.msra.mxu0 0.0
    %3620 = vmatprep.mubr.f32.mxu0 0.0
    %3621 = vmatmul.mubr.f32.gmra.mrb[0].mxu0 %v3554
    %v3622 = vpop.f32.mrb[0].mxu0
    %v3623 = vadd.f32 0.0, %v3622
    %v3624 = vpop.f32.mrb[0].mxu0
    %3625 = vdwg.mxu0
    %v3627 = vsel %vm1791, %v3112, 0
    %3629 = vmatprep.subr.mxu0 0.0
    %3630 = vmatpush1.msra.mxu0 %v91
    %3631 = vmatprep.subr.mxu0 0.0
    %3632 = vmatpush1.msra.mxu0 0.0
    %3633 = vmatprep.subr.mxu0 0.0
    %3634 = vmatpush1.msra.mxu0 0.0
    %3635 = vmatprep.subr.mxu0 0.0
    %3636 = vmatpush1.msra.mxu0 0.0
    %3637 = vmatprep.subr.mxu0 0.0
    %3638 = vmatpush1.msra.mxu0 0.0
    %3639 = vmatprep.subr.mxu0 0.0
    %3640 = vmatpush1.msra.mxu0 0.0
    %3641 = vmatprep.subr.mxu0 0.0
    %3642 = vmatpush1.msra.mxu0 0.0
    %3643 = vmatprep.subr.mxu0 0.0
    %3644 = vmatpush1.msra.mxu0 0.0
    %3645 = vmatprep.subr.mxu0 0.0
    %3646 = vmatpush1.msra.mxu0 0.0
    %3647 = vmatprep.subr.mxu0 0.0
    %3648 = vmatpush1.msra.mxu0 0.0
    %3649 = vmatprep.subr.mxu0 0.0
    %3650 = vmatpush1.msra.mxu0 0.0
    %3651 = vmatprep.subr.mxu0 0.0
    %3652 = vmatpush1.msra.mxu0 0.0
    %3653 = vmatprep.subr.mxu0 0.0
    %3654 = vmatpush1.msra.mxu0 0.0
    %3655 = vmatprep.subr.mxu0 0.0
    %3656 = vmatpush1.msra.mxu0 0.0
    %3657 = vmatprep.subr.mxu0 0.0
    %3658 = vmatpush1.msra.mxu0 0.0
    %3659 = vmatprep.subr.mxu0 0.0
    %3660 = vmatpush1.msra.mxu0 0.0
    %3661 = vmatprep.subr.mxu0 0.0
    %3662 = vmatpush1.msra.mxu0 0.0
    %3663 = vmatprep.subr.mxu0 0.0
    %3664 = vmatpush1.msra.mxu0 0.0
    %3665 = vmatprep.subr.mxu0 0.0
    %3666 = vmatpush1.msra.mxu0 0.0
    %3667 = vmatprep.subr.mxu0 0.0
    %3668 = vmatpush1.msra.mxu0 0.0
    %3669 = vmatprep.subr.mxu0 0.0
    %3670 = vmatpush1.msra.mxu0 0.0
    %3671 = vmatprep.subr.mxu0 0.0
    %3672 = vmatpush1.msra.mxu0 0.0
    %3673 = vmatprep.subr.mxu0 0.0
    %3674 = vmatpush1.msra.mxu0 0.0
    %3675 = vmatprep.subr.mxu0 0.0
    %3676 = vmatpush1.msra.mxu0 0.0
    %3677 = vmatprep.subr.mxu0 0.0
    %3678 = vmatpush1.msra.mxu0 0.0
    %3679 = vmatprep.subr.mxu0 0.0
    %3680 = vmatpush1.msra.mxu0 0.0
    %3681 = vmatprep.subr.mxu0 0.0
    %3682 = vmatpush1.msra.mxu0 0.0
    %3683 = vmatprep.subr.mxu0 0.0
    %3684 = vmatpush1.msra.mxu0 0.0
    %3685 = vmatprep.subr.mxu0 0.0
    %3686 = vmatpush1.msra.mxu0 0.0
    %3687 = vmatprep.subr.mxu0 0.0
    %3688 = vmatpush1.msra.mxu0 0.0
    %3689 = vmatprep.subr.mxu0 0.0
    %3690 = vmatpush1.msra.mxu0 0.0
    %3691 = vmatprep.subr.mxu0 0.0
    %3692 = vmatpush1.msra.mxu0 0.0
    %3693 = vmatprep.mubr.f32.mxu0 0.0
    %3694 = vmatmul.mubr.f32.gmra.mrb[0].mxu0 %v3627
    %v3695 = vpop.f32.mrb[0].mxu0
    %v3696 = vadd.f32 0.0, %v3695
    %v3697 = vpop.f32.mrb[0].mxu0
    %3698 = vdwg.mxu0
    %vm3699 = vcmask 257024
    %v3700 = vsel %vm3699, %v3185, 0.0
    %v3701 = vsel %vm3699, %v3258, 0.0
    %v3702 = vadd.f32 %v3700, %v3701
    %v3703 = vsel %vm3699, %v3331, 0.0
    %v3704 = vadd.f32 %v3702, %v3703
    %v3705 = vsel %vm3699, %v3404, 0.0
    %v3706 = vadd.f32 %v3704, %v3705
    %v3707 = vsel %vm3699, %v3477, 0.0
    %v3708 = vsel %vm3699, %v3550, 0.0
    %v3709 = vadd.f32 %v3707, %v3708
    %v3710 = vsel %vm3699, %v3623, 0.0
    %v3711 = vadd.f32 %v3709, %v3710
    %v3712 = vsel %vm3699, %v3696, 0.0
    %v3713 = vadd.f32 %v3711, %v3712
    %3714 = vst.msk [vmem:[#allocation4] sm:$0xf] %vm3699, %v3706
    %3715 = vst.msk [vmem:[#allocation4 + $0x4] sm:$0xf] %vm3699, %v3713
    // Predicated region
    $region30: #{tpu_custom_call.1} parent=1 // pred_check
      _
    $region31: #{tpu_custom_call.1} parent=1 // pred_check_branch
      %3717 = sbr.rel (0) target = $region33
    $region32: #{tpu_custom_call.1} parent=1 // pred_region
      %s3719 = ssub.s32 128, 128
      %3720 = vsyncadd [#allocation5], %s3719
      %s3721 = sshll.u32 [#allocation4], 4
      %s3722 = int_to_ptr.vmem [resolvable:$true] %s3721
      %3727 = dma.vmem_to_hbm [thread:$0]  %s3722, 128, %s8, [#allocation5], 64, 64, 4
    $region33: #{tpu_custom_call.1} parent=1 // pred_fallthru
      _
    // Predicated region
    $region34: #{tpu_custom_call.1} parent=1 // pred_check
      _
    $region35: #{tpu_custom_call.1} parent=1 // pred_check_branch
      %3729 = sbr.rel (0) target = $region37
    $region36: #{tpu_custom_call.1} parent=1 // pred_region
      %3730 = dma.done [#allocation5], 128
    $region37: #{tpu_custom_call.1} parent=1 // pred_fallthru
      _
    %3731 = vsyncpa [#allocation5], 1

</llo_original>
